<compile_context>
chip_gen: v7x
topology: tpu7x:2x2x1
jax: 0.10.0
libtpu: 0.0.40
codegen_flags: <defaults>
</compile_context>

<pallas_src>
import functools
import math

import jax
import jax.numpy as jnp
from jax import lax
from jax.experimental import pallas as pl
from jax.experimental.pallas import tpu as pltpu

EPS = 1e-6
NEG_INF = -1e30  # finite mask value: avoids any inf-inf -> NaN hazard


def _fuse_heads(w):
    """(H, D, nh) stack of per-head projections -> single (D, H*nh) matrix.

    Column block [h*nh, (h+1)*nh) of the result equals w[h], so one lane-dense MXU matmul
    projects all heads at once."""
    H, D, nh = w.shape
    return jnp.transpose(w, (1, 0, 2)).reshape(D, H * nh)


# ----------------------------- Pallas kernel ---------------------------------
def _decoder_layer_kernel(dec_ref, enc_ref,
                          wq1_ref, wk1_ref, wv1_ref, wo1_ref, g1_ref, b1_ref,
                          wq2_ref, wk2_ref, wv2_ref, wo2_ref, g2_ref, b2_ref,
                          wlin_ref, blin_ref, g3_ref, b3_ref,
                          out_ref, attn_ref,
                          *, batch, num_heads, matmul_dtype, approx_recip):
    NB, D = dec_ref.shape            # NB = B * S_dec, batch-major rows (b*S_dec + s)
    NE = enc_ref.shape[0]            # NE = B * S_enc
    B = batch
    S_dec = NB // B
    S_enc = NE // B
    nh = D // num_heads
    f32 = jnp.float32
    mm = matmul_dtype

    # ---- loads: everything resident in VMEM; single invocation, no per-step pipeline ----
    dec_f32 = dec_ref[...].astype(f32)          # (B*S_dec, D) residual / LayerNorm path
    dec_mm = dec_f32.astype(mm)                 # single cast for MXU operands
    enc_mm = enc_ref[...].astype(mm)            # keys/values only (no residual on encoder)

    wq1 = wq1_ref[...]; wk1 = wk1_ref[...]; wv1 = wv1_ref[...]; wo1 = wo1_ref[...]
    wq2 = wq2_ref[...]; wk2 = wk2_ref[...]; wv2 = wv2_ref[...]; wo2 = wo2_ref[...]
    wlin = wlin_ref[...]
    g1 = g1_ref[...].astype(f32); b1 = b1_ref[...].astype(f32)
    g2 = g2_ref[...].astype(f32); b2 = b2_ref[...].astype(f32)
    g3 = g3_ref[...].astype(f32); b3 = b3_ref[...].astype(f32)
    blin = blin_ref[...].astype(f32)

    # Additive causal bias, hoisted once: 0 where key step <= query step, -1e30 elsewhere.
    row = lax.broadcasted_iota(jnp.int32, (S_dec, S_dec), 0)
    col = lax.broadcasted_iota(jnp.int32, (S_dec, S_dec), 1)
    causal_bias = jnp.where(col <= row, 0.0, NEG_INF).astype(f32)

    def recip(x):
        # approx (EUP) reciprocal only when bf16 rounding already dominates; exact otherwise.
        return pl.reciprocal(x, approx=approx_recip)

    def layer_norm(x, g, b):
        # quicknlp LayerNorm: unbiased std (ddof=1), eps added to std (not to variance).
        mean = jnp.mean(x, axis=-1, keepdims=True)
        c = x - mean
        var = jnp.sum(c * c, axis=-1, keepdims=True) * (1.0 / (D - 1))
        return g * (c * recip(jnp.sqrt(var) + EPS)) + b

    def mha(xq_mm, xkv_mm, s_kv, wq, wk, wv, wo, bias):
        """xq_mm (B*S_dec, D), xkv_mm (B*s_kv, D) in MXU dtype -> (B*S_dec, D) f32."""
        # Head-fused Q/K/V projections, batched over the whole (B*S, D) slab: one
        # (B*S, D) x (D, D) MXU matmul each (scale already folded into wq).
        q_all = jnp.dot(xq_mm, wq, preferred_element_type=f32).astype(mm)
        k_all = jnp.dot(xkv_mm, wk, preferred_element_type=f32).astype(mm)
        v_all = jnp.dot(xkv_mm, wv, preferred_element_type=f32).astype(mm)

        # Only the per-(batch, head) score/softmax/PV work lives in these small static loops.
        for bb in range(B):
            q_b = q_all[bb * S_dec:(bb + 1) * S_dec, :]     # (S_dec, D) contiguous rows
            k_b = k_all[bb * s_kv:(bb + 1) * s_kv, :]       # (s_kv, D)
            v_b = v_all[bb * s_kv:(bb + 1) * s_kv, :]
            for h in range(num_heads):
                sl = slice(h * nh, (h + 1) * nh)
                # q k^T without an explicit transpose (contract last dims).
                s = lax.dot_general(q_b[:, sl], k_b[:, sl], (((1,), (1,)), ((), ())),
                                    preferred_element_type=f32)          # (S_dec, s_kv)
                if bias is not None:
                    s = s + bias                                          # additive mask
                s = s - jnp.max(s, axis=-1, keepdims=True)
                p = jnp.exp(s)
                p = p * recip(jnp.sum(p, axis=-1, keepdims=True))
                pv = jnp.dot(p.astype(mm), v_b[:, sl],
                             preferred_element_type=f32)                  # (S_dec, nh)
                # Stage each head's output in its lane-contiguous column slice.
                attn_ref[bb * S_dec:(bb + 1) * S_dec, sl] = pv
        # ONE deep-K (B*S_dec, D) x (D, D) output projection for all heads and batch rows.
        return jnp.dot(attn_ref[...].astype(mm), wo, preferred_element_type=f32)

    # 1) causal multi-head self attention + residual + layernorm1   (all on (B*S_dec, D))
    y1 = layer_norm(mha(dec_mm, dec_mm, S_dec, wq1, wk1, wv1, wo1, causal_bias) + dec_f32,
                    g1, b1)
    # 2) cross attention over the encoder + residual + layernorm2
    y2 = layer_norm(mha(y1.astype(mm), enc_mm, S_enc, wq2, wk2, wv2, wo2, None) + y1,
                    g2, b2)
    # 3) position-wise linear (+bias); dropout3 == identity (eval); residual; layernorm3
    y3 = jnp.dot(y2.astype(mm), wlin, preferred_element_type=f32) + blin
    out_flat = layer_norm(y3 + y2, g3, b3)

    # Single full-block dense 2-D store of the whole result.
    out_ref[...] = out_flat.astype(out_ref.dtype)


# ------------------------------- wrapper --------------------------------------
def transformer_layer_decoder(encoder_input, decoder_input, p, *,
                              matmul_dtype=jnp.bfloat16):
    """encoder_input: (S_enc, B, D), decoder_input: (S_dec, B, D) — time-major like PyTorch.

    The wrapper flattens activations to batch-major (B*S, D) slabs (pure layout plumbing,
    outside the kernel) so every in-kernel access is a dense 2-D block; the whole batch is
    processed in a single pallas_call, so every weight enters VMEM exactly once.
    `matmul_dtype` controls the MXU operand dtype (bf16 by default; accumulation is f32)."""
    S_dec, B, D = decoder_input.shape
    S_enc, B2, D2 = encoder_input.shape
    assert (B, D) == (B2, D2)
    H, _, nh = p["wq1"].shape
    scale = 1.0 / math.sqrt(nh)

    # Batch-major flatten: per-batch rows become contiguous chunks inside the kernel.
    dec2 = jnp.transpose(decoder_input, (1, 0, 2)).reshape(B * S_dec, D)
    enc2 = jnp.transpose(encoder_input, (1, 0, 2)).reshape(B * S_enc, D)

    cast = lambda w: w.astype(matmul_dtype)          # pre-cast matmul weights on the host
    # Head-fused projections; 1/sqrt(nh) score scale folded into the query weights.
    wq1 = cast(_fuse_heads(p["wq1"]) * scale)
    wk1 = cast(_fuse_heads(p["wk1"])); wv1 = cast(_fuse_heads(p["wv1"]))
    wq2 = cast(_fuse_heads(p["wq2"]) * scale)
    wk2 = cast(_fuse_heads(p["wk2"])); wv2 = cast(_fuse_heads(p["wv2"]))
    wo1 = cast(p["wo1"]); wo2 = cast(p["wo2"]); wlin = cast(p["wlin"])

    kernel = functools.partial(
        _decoder_layer_kernel, batch=B, num_heads=H, matmul_dtype=matmul_dtype,
        approx_recip=(jnp.dtype(matmul_dtype) != jnp.dtype(jnp.float32)))

    out2 = pl.pallas_call(
        kernel,
        out_shape=jax.ShapeDtypeStruct((B * S_dec, D), decoder_input.dtype),
        scratch_shapes=[pltpu.VMEM((B * S_dec, D), jnp.float32)],   # head-concat staging
    )(dec2, enc2,
      wq1, wk1, wv1, wo1, p["g1"], p["b1"],
      wq2, wk2, wv2, wo2, p["g2"], p["b2"],
      wlin, p["blin"], p["g3"], p["b3"])

    # Back to the module's time-major (S_dec, B, D) layout.
    return jnp.transpose(out2.reshape(B, S_dec, D), (1, 0, 2))


# ----------------------- pure-JAX reference (PyTorch-faithful loops) ----------
def _mha_ref(query, keys, wq, wk, wv, wo):
    H, _, nh = wq.shape
    outs = []
    for h in range(H):
        qp = query @ wq[h]                                  # (B, nh)
        kp = jnp.einsum("tbd,dn->tbn", keys, wk[h])         # (T, B, nh)
        vp = jnp.einsum("tbd,dn->tbn", keys, wv[h])
        scores = (kp * qp[None]).sum(-1) / math.sqrt(nh)    # (T, B)
        w = jax.nn.softmax(scores, axis=0)
        outs.append((w[..., None] * vp).sum(0))             # (B, nh)
    return jnp.concatenate(outs, -1) @ wo


def _layer_norm_ref(x, g, b):
    mean = x.mean(-1, keepdims=True)
    std = jnp.sqrt(((x - mean) ** 2).sum(-1, keepdims=True) / (x.shape[-1] - 1))
    return g * (x - mean) / (std + EPS) + b


def _reference(enc, dec, p):
    S_dec = dec.shape[0]
    self_outs = [_mha_ref(dec[i - 1], dec[:i], p["wq1"], p["wk1"], p["wv1"], p["wo1"])
                 for i in range(1, S_dec + 1)]
    y1 = _layer_norm_ref(jnp.stack(self_outs, 0) + dec, p["g1"], p["b1"])
    cross = [_mha_ref(y1[t], enc, p["wq2"], p["wk2"], p["wv2"], p["wo2"])
             for t in range(S_dec)]
    y2 = _layer_norm_ref(jnp.stack(cross, 0) + y1, p["g2"], p["b2"])
    y3 = y2 @ p["wlin"] + p["blin"]
    return _layer_norm_ref(y3 + y2, p["g3"], p["b3"])


# --------------------------------- main ----------------------------------------
if __name__ == "__main__":
    D, H = 32, 4
    nh = D // H
    B, S_dec, S_enc = 2, 8, 12

    key = jax.random.PRNGKey(0)
    ks = jax.random.split(key, 20)

    def nrm(k, shape, s=0.1):
        return (s * jax.random.normal(k, shape)).astype(jnp.float32)

    params = {
        "wq1": nrm(ks[0], (H, D, nh)), "wk1": nrm(ks[1], (H, D, nh)), "wv1": nrm(ks[2], (H, D, nh)),
        "wo1": nrm(ks[3], (D, D)),
        "g1": (1.0 + nrm(ks[4], (1, D))), "b1": nrm(ks[5], (1, D)),
        "wq2": nrm(ks[6], (H, D, nh)), "wk2": nrm(ks[7], (H, D, nh)), "wv2": nrm(ks[8], (H, D, nh)),
        "wo2": nrm(ks[9], (D, D)),
        "g2": (1.0 + nrm(ks[10], (1, D))), "b2": nrm(ks[11], (1, D)),
        "wlin": nrm(ks[12], (D, D)), "blin": nrm(ks[13], (1, D)),
        "g3": (1.0 + nrm(ks[14], (1, D))), "b3": nrm(ks[15], (1, D)),
    }

    encoder_input = nrm(ks[16], (S_enc, B, D), s=1.0)
    decoder_input = nrm(ks[17], (S_dec, B, D), s=1.0)

    ref = _reference(encoder_input, decoder_input, params)

    # Production path: bf16 MXU operands, f32 accumulation (loose tolerance for bf16 rounding).
    out_bf16 = jax.block_until_ready(
        transformer_layer_decoder(encoder_input, decoder_input, params))
    assert out_bf16.shape == (S_dec, B, D)
    assert jnp.allclose(out_bf16, ref, rtol=5e-2, atol=5e-2), "bf16 kernel mismatch vs reference"

    # f32 operands + exact reciprocals: tighter structural / numerical check.
    out_f32 = jax.block_until_ready(
        transformer_layer_decoder(encoder_input, decoder_input, params,
                                  matmul_dtype=jnp.float32))
    assert jnp.allclose(out_f32, ref, rtol=1e-2, atol=1e-2), "f32 kernel mismatch vs reference"

    print("KERNEL_OK")
</pallas_src>

<mosaic_0001>
module attributes {stable_mosaic.version = 11 : i64} {
  func.func @_decoder_layer_kernel(%arg0: memref<16x32xf32, #tpu.memory_space<vmem>>, %arg1: memref<24x32xf32, #tpu.memory_space<vmem>>, %arg2: memref<32x32xbf16, #tpu.memory_space<vmem>>, %arg3: memref<32x32xbf16, #tpu.memory_space<vmem>>, %arg4: memref<32x32xbf16, #tpu.memory_space<vmem>>, %arg5: memref<32x32xbf16, #tpu.memory_space<vmem>>, %arg6: memref<1x32xf32, #tpu.memory_space<vmem>>, %arg7: memref<1x32xf32, #tpu.memory_space<vmem>>, %arg8: memref<32x32xbf16, #tpu.memory_space<vmem>>, %arg9: memref<32x32xbf16, #tpu.memory_space<vmem>>, %arg10: memref<32x32xbf16, #tpu.memory_space<vmem>>, %arg11: memref<32x32xbf16, #tpu.memory_space<vmem>>, %arg12: memref<1x32xf32, #tpu.memory_space<vmem>>, %arg13: memref<1x32xf32, #tpu.memory_space<vmem>>, %arg14: memref<32x32xbf16, #tpu.memory_space<vmem>>, %arg15: memref<1x32xf32, #tpu.memory_space<vmem>>, %arg16: memref<1x32xf32, #tpu.memory_space<vmem>>, %arg17: memref<1x32xf32, #tpu.memory_space<vmem>>, %arg18: memref<16x32xf32, #tpu.memory_space<vmem>>, %arg19: memref<16x32xf32, #tpu.memory_space<vmem>>) attributes {dimension_semantics = [], scalar_prefetch = 0 : i64, scratch_operands = 1 : i64, tpu.core_type = #tpu.core_type<tc>} {
    %c0 = arith.constant 0 : index
    %c0_0 = arith.constant 0 : index
    %0 = vector.load %arg0[%c0, %c0_0] : memref<16x32xf32, #tpu.memory_space<vmem>>, vector<16x32xf32>
    %1 = arith.truncf %0 : vector<16x32xf32> to vector<16x32xbf16>
    %c0_1 = arith.constant 0 : index
    %c0_2 = arith.constant 0 : index
    %2 = vector.load %arg1[%c0_1, %c0_2] : memref<24x32xf32, #tpu.memory_space<vmem>>, vector<24x32xf32>
    %3 = arith.truncf %2 : vector<24x32xf32> to vector<24x32xbf16>
    %c0_3 = arith.constant 0 : index
    %c0_4 = arith.constant 0 : index
    %4 = vector.load %arg2[%c0_3, %c0_4] : memref<32x32xbf16, #tpu.memory_space<vmem>>, vector<32x32xbf16>
    %c0_5 = arith.constant 0 : index
    %c0_6 = arith.constant 0 : index
    %5 = vector.load %arg3[%c0_5, %c0_6] : memref<32x32xbf16, #tpu.memory_space<vmem>>, vector<32x32xbf16>
    %c0_7 = arith.constant 0 : index
    %c0_8 = arith.constant 0 : index
    %6 = vector.load %arg4[%c0_7, %c0_8] : memref<32x32xbf16, #tpu.memory_space<vmem>>, vector<32x32xbf16>
    %c0_9 = arith.constant 0 : index
    %c0_10 = arith.constant 0 : index
    %7 = vector.load %arg5[%c0_9, %c0_10] : memref<32x32xbf16, #tpu.memory_space<vmem>>, vector<32x32xbf16>
    %c0_11 = arith.constant 0 : index
    %c0_12 = arith.constant 0 : index
    %8 = vector.load %arg8[%c0_11, %c0_12] : memref<32x32xbf16, #tpu.memory_space<vmem>>, vector<32x32xbf16>
    %c0_13 = arith.constant 0 : index
    %c0_14 = arith.constant 0 : index
    %9 = vector.load %arg9[%c0_13, %c0_14] : memref<32x32xbf16, #tpu.memory_space<vmem>>, vector<32x32xbf16>
    %c0_15 = arith.constant 0 : index
    %c0_16 = arith.constant 0 : index
    %10 = vector.load %arg10[%c0_15, %c0_16] : memref<32x32xbf16, #tpu.memory_space<vmem>>, vector<32x32xbf16>
    %c0_17 = arith.constant 0 : index
    %c0_18 = arith.constant 0 : index
    %11 = vector.load %arg11[%c0_17, %c0_18] : memref<32x32xbf16, #tpu.memory_space<vmem>>, vector<32x32xbf16>
    %c0_19 = arith.constant 0 : index
    %c0_20 = arith.constant 0 : index
    %12 = vector.load %arg14[%c0_19, %c0_20] : memref<32x32xbf16, #tpu.memory_space<vmem>>, vector<32x32xbf16>
    %c0_21 = arith.constant 0 : index
    %c0_22 = arith.constant 0 : index
    %13 = vector.load %arg6[%c0_21, %c0_22] : memref<1x32xf32, #tpu.memory_space<vmem>>, vector<1x32xf32>
    %c0_23 = arith.constant 0 : index
    %c0_24 = arith.constant 0 : index
    %14 = vector.load %arg7[%c0_23, %c0_24] : memref<1x32xf32, #tpu.memory_space<vmem>>, vector<1x32xf32>
    %c0_25 = arith.constant 0 : index
    %c0_26 = arith.constant 0 : index
    %15 = vector.load %arg12[%c0_25, %c0_26] : memref<1x32xf32, #tpu.memory_space<vmem>>, vector<1x32xf32>
    %c0_27 = arith.constant 0 : index
    %c0_28 = arith.constant 0 : index
    %16 = vector.load %arg13[%c0_27, %c0_28] : memref<1x32xf32, #tpu.memory_space<vmem>>, vector<1x32xf32>
    %c0_29 = arith.constant 0 : index
    %c0_30 = arith.constant 0 : index
    %17 = vector.load %arg16[%c0_29, %c0_30] : memref<1x32xf32, #tpu.memory_space<vmem>>, vector<1x32xf32>
    %c0_31 = arith.constant 0 : index
    %c0_32 = arith.constant 0 : index
    %18 = vector.load %arg17[%c0_31, %c0_32] : memref<1x32xf32, #tpu.memory_space<vmem>>, vector<1x32xf32>
    %c0_33 = arith.constant 0 : index
    %c0_34 = arith.constant 0 : index
    %19 = vector.load %arg15[%c0_33, %c0_34] : memref<1x32xf32, #tpu.memory_space<vmem>>, vector<1x32xf32>
    %20 = tpu.iota {dimensions = array<i32: 0>} : vector<8x8xi32>
    %21 = tpu.iota {dimensions = array<i32: 1>} : vector<8x8xi32>
    %22 = arith.cmpi sle, %21, %20 : vector<8x8xi32>
    %cst = arith.constant 0.000000e+00 : f32
    %cst_35 = arith.constant -1.000000e+30 : f32
    %23 = vector.broadcast %cst : f32 to vector<8x8xf32>
    %24 = vector.broadcast %cst_35 : f32 to vector<8x8xf32>
    %25 = arith.select %22, %23, %24 : vector<8x8xi1>, vector<8x8xf32>
    %cst_36 = arith.constant dense<0.000000e+00> : vector<16x32xf32>
    %26 = tpu.matmul %1, %4, %cst_36 {dimension_numbers = #tpu.dot_dimension_numbers<[1], [0], [0], [1], [0, 0, 1, 1], [], []>} : vector<16x32xbf16>, vector<32x32xbf16>, vector<16x32xf32> -> vector<16x32xf32>
    %27 = arith.truncf %26 : vector<16x32xf32> to vector<16x32xbf16>
    %cst_37 = arith.constant dense<0.000000e+00> : vector<16x32xf32>
    %28 = tpu.matmul %1, %5, %cst_37 {dimension_numbers = #tpu.dot_dimension_numbers<[1], [0], [0], [1], [0, 0, 1, 1], [], []>} : vector<16x32xbf16>, vector<32x32xbf16>, vector<16x32xf32> -> vector<16x32xf32>
    %29 = arith.truncf %28 : vector<16x32xf32> to vector<16x32xbf16>
    %cst_38 = arith.constant dense<0.000000e+00> : vector<16x32xf32>
    %30 = tpu.matmul %1, %6, %cst_38 {dimension_numbers = #tpu.dot_dimension_numbers<[1], [0], [0], [1], [0, 0, 1, 1], [], []>} : vector<16x32xbf16>, vector<32x32xbf16>, vector<16x32xf32> -> vector<16x32xf32>
    %31 = arith.truncf %30 : vector<16x32xf32> to vector<16x32xbf16>
    %32 = vector.extract_strided_slice %27 {offsets = [0, 0], sizes = [8, 32], strides = [1, 1]} : vector<16x32xbf16> to vector<8x32xbf16>
    %33 = vector.extract_strided_slice %29 {offsets = [0, 0], sizes = [8, 32], strides = [1, 1]} : vector<16x32xbf16> to vector<8x32xbf16>
    %34 = vector.extract_strided_slice %31 {offsets = [0, 0], sizes = [8, 32], strides = [1, 1]} : vector<16x32xbf16> to vector<8x32xbf16>
    %35 = vector.extract_strided_slice %32 {offsets = [0, 0], sizes = [8, 8], strides = [1, 1]} : vector<8x32xbf16> to vector<8x8xbf16>
    %36 = vector.extract_strided_slice %33 {offsets = [0, 0], sizes = [8, 8], strides = [1, 1]} : vector<8x32xbf16> to vector<8x8xbf16>
    %cst_39 = arith.constant dense<0.000000e+00> : vector<8x8xf32>
    %37 = tpu.matmul %35, %36, %cst_39 {dimension_numbers = #tpu.dot_dimension_numbers<[1], [1], [0], [0], [0, 0, 1, 0], [], []>} : vector<8x8xbf16>, vector<8x8xbf16>, vector<8x8xf32> -> vector<8x8xf32>
    %38 = arith.addf %37, %25 : vector<8x8xf32>
    %cst_40 = arith.constant dense<0xFF800000> : vector<8xf32>
    %39 = vector.multi_reduction <maximumf>, %38, %cst_40 [1] : vector<8x8xf32> to vector<8xf32>
    %40 = vector.shape_cast %39 : vector<8xf32> to vector<8x1xf32>
    %41 = vector.broadcast %40 : vector<8x1xf32> to vector<8x8xf32>
    %42 = arith.subf %38, %41 : vector<8x8xf32>
    %43 = math.exp %42 : vector<8x8xf32>
    %cst_41 = arith.constant dense<0.000000e+00> : vector<8xf32>
    %44 = vector.multi_reduction <add>, %43, %cst_41 [1] : vector<8x8xf32> to vector<8xf32>
    %45 = vector.shape_cast %44 : vector<8xf32> to vector<8x1xf32>
    %46 = tpu.reciprocal %45 {approx = true} : vector<8x1xf32> -> vector<8x1xf32>
    %47 = vector.broadcast %46 : vector<8x1xf32> to vector<8x8xf32>
    %48 = arith.mulf %43, %47 : vector<8x8xf32>
    %49 = arith.truncf %48 : vector<8x8xf32> to vector<8x8xbf16>
    %50 = vector.extract_strided_slice %34 {offsets = [0, 0], sizes = [8, 8], strides = [1, 1]} : vector<8x32xbf16> to vector<8x8xbf16>
    %cst_42 = arith.constant dense<0.000000e+00> : vector<8x8xf32>
    %51 = tpu.matmul %49, %50, %cst_42 {dimension_numbers = #tpu.dot_dimension_numbers<[1], [0], [0], [1], [0, 0, 1, 1], [], []>} : vector<8x8xbf16>, vector<8x8xbf16>, vector<8x8xf32> -> vector<8x8xf32>
    %c0_43 = arith.constant 0 : index
    %c0_44 = arith.constant 0 : index
    %52 = vector.load %arg19[%c0_43, %c0_44] : memref<16x32xf32, #tpu.memory_space<vmem>>, vector<8x8xf32>
    tpu.vector_store %arg19[%c0_43, %c0_44], %51 {strides = array<i32>} : memref<16x32xf32, #tpu.memory_space<vmem>>, vector<8x8xf32>,
    %53 = vector.extract_strided_slice %32 {offsets = [0, 8], sizes = [8, 8], strides = [1, 1]} : vector<8x32xbf16> to vector<8x8xbf16>
    %54 = vector.extract_strided_slice %33 {offsets = [0, 8], sizes = [8, 8], strides = [1, 1]} : vector<8x32xbf16> to vector<8x8xbf16>
    %cst_45 = arith.constant dense<0.000000e+00> : vector<8x8xf32>
    %55 = tpu.matmul %53, %54, %cst_45 {dimension_numbers = #tpu.dot_dimension_numbers<[1], [1], [0], [0], [0, 0, 1, 0], [], []>} : vector<8x8xbf16>, vector<8x8xbf16>, vector<8x8xf32> -> vector<8x8xf32>
    %56 = arith.addf %55, %25 : vector<8x8xf32>
    %cst_46 = arith.constant dense<0xFF800000> : vector<8xf32>
    %57 = vector.multi_reduction <maximumf>, %56, %cst_46 [1] : vector<8x8xf32> to vector<8xf32>
    %58 = vector.shape_cast %57 : vector<8xf32> to vector<8x1xf32>
    %59 = vector.broadcast %58 : vector<8x1xf32> to vector<8x8xf32>
    %60 = arith.subf %56, %59 : vector<8x8xf32>
    %61 = math.exp %60 : vector<8x8xf32>
    %cst_47 = arith.constant dense<0.000000e+00> : vector<8xf32>
    %62 = vector.multi_reduction <add>, %61, %cst_47 [1] : vector<8x8xf32> to vector<8xf32>
    %63 = vector.shape_cast %62 : vector<8xf32> to vector<8x1xf32>
    %64 = tpu.reciprocal %63 {approx = true} : vector<8x1xf32> -> vector<8x1xf32>
    %65 = vector.broadcast %64 : vector<8x1xf32> to vector<8x8xf32>
    %66 = arith.mulf %61, %65 : vector<8x8xf32>
    %67 = arith.truncf %66 : vector<8x8xf32> to vector<8x8xbf16>
    %68 = vector.extract_strided_slice %34 {offsets = [0, 8], sizes = [8, 8], strides = [1, 1]} : vector<8x32xbf16> to vector<8x8xbf16>
    %cst_48 = arith.constant dense<0.000000e+00> : vector<8x8xf32>
    %69 = tpu.matmul %67, %68, %cst_48 {dimension_numbers = #tpu.dot_dimension_numbers<[1], [0], [0], [1], [0, 0, 1, 1], [], []>} : vector<8x8xbf16>, vector<8x8xbf16>, vector<8x8xf32> -> vector<8x8xf32>
    %c0_49 = arith.constant 0 : index
    %c8 = arith.constant 8 : index
    %70 = vector.load %arg19[%c0_49, %c8] : memref<16x32xf32, #tpu.memory_space<vmem>>, vector<8x8xf32>
    tpu.vector_store %arg19[%c0_49, %c8], %69 {strides = array<i32>} : memref<16x32xf32, #tpu.memory_space<vmem>>, vector<8x8xf32>,
    %71 = vector.extract_strided_slice %32 {offsets = [0, 16], sizes = [8, 8], strides = [1, 1]} : vector<8x32xbf16> to vector<8x8xbf16>
    %72 = vector.extract_strided_slice %33 {offsets = [0, 16], sizes = [8, 8], strides = [1, 1]} : vector<8x32xbf16> to vector<8x8xbf16>
    %cst_50 = arith.constant dense<0.000000e+00> : vector<8x8xf32>
    %73 = tpu.matmul %71, %72, %cst_50 {dimension_numbers = #tpu.dot_dimension_numbers<[1], [1], [0], [0], [0, 0, 1, 0], [], []>} : vector<8x8xbf16>, vector<8x8xbf16>, vector<8x8xf32> -> vector<8x8xf32>
    %74 = arith.addf %73, %25 : vector<8x8xf32>
    %cst_51 = arith.constant dense<0xFF800000> : vector<8xf32>
    %75 = vector.multi_reduction <maximumf>, %74, %cst_51 [1] : vector<8x8xf32> to vector<8xf32>
    %76 = vector.shape_cast %75 : vector<8xf32> to vector<8x1xf32>
    %77 = vector.broadcast %76 : vector<8x1xf32> to vector<8x8xf32>
    %78 = arith.subf %74, %77 : vector<8x8xf32>
    %79 = math.exp %78 : vector<8x8xf32>
    %cst_52 = arith.constant dense<0.000000e+00> : vector<8xf32>
    %80 = vector.multi_reduction <add>, %79, %cst_52 [1] : vector<8x8xf32> to vector<8xf32>
    %81 = vector.shape_cast %80 : vector<8xf32> to vector<8x1xf32>
    %82 = tpu.reciprocal %81 {approx = true} : vector<8x1xf32> -> vector<8x1xf32>
    %83 = vector.broadcast %82 : vector<8x1xf32> to vector<8x8xf32>
    %84 = arith.mulf %79, %83 : vector<8x8xf32>
    %85 = arith.truncf %84 : vector<8x8xf32> to vector<8x8xbf16>
    %86 = vector.extract_strided_slice %34 {offsets = [0, 16], sizes = [8, 8], strides = [1, 1]} : vector<8x32xbf16> to vector<8x8xbf16>
    %cst_53 = arith.constant dense<0.000000e+00> : vector<8x8xf32>
    %87 = tpu.matmul %85, %86, %cst_53 {dimension_numbers = #tpu.dot_dimension_numbers<[1], [0], [0], [1], [0, 0, 1, 1], [], []>} : vector<8x8xbf16>, vector<8x8xbf16>, vector<8x8xf32> -> vector<8x8xf32>
    %c0_54 = arith.constant 0 : index
    %c16 = arith.constant 16 : index
    %88 = vector.load %arg19[%c0_54, %c16] : memref<16x32xf32, #tpu.memory_space<vmem>>, vector<8x8xf32>
    tpu.vector_store %arg19[%c0_54, %c16], %87 {strides = array<i32>} : memref<16x32xf32, #tpu.memory_space<vmem>>, vector<8x8xf32>,
    %89 = vector.extract_strided_slice %32 {offsets = [0, 24], sizes = [8, 8], strides = [1, 1]} : vector<8x32xbf16> to vector<8x8xbf16>
    %90 = vector.extract_strided_slice %33 {offsets = [0, 24], sizes = [8, 8], strides = [1, 1]} : vector<8x32xbf16> to vector<8x8xbf16>
    %cst_55 = arith.constant dense<0.000000e+00> : vector<8x8xf32>
    %91 = tpu.matmul %89, %90, %cst_55 {dimension_numbers = #tpu.dot_dimension_numbers<[1], [1], [0], [0], [0, 0, 1, 0], [], []>} : vector<8x8xbf16>, vector<8x8xbf16>, vector<8x8xf32> -> vector<8x8xf32>
    %92 = arith.addf %91, %25 : vector<8x8xf32>
    %cst_56 = arith.constant dense<0xFF800000> : vector<8xf32>
    %93 = vector.multi_reduction <maximumf>, %92, %cst_56 [1] : vector<8x8xf32> to vector<8xf32>
    %94 = vector.shape_cast %93 : vector<8xf32> to vector<8x1xf32>
    %95 = vector.broadcast %94 : vector<8x1xf32> to vector<8x8xf32>
    %96 = arith.subf %92, %95 : vector<8x8xf32>
    %97 = math.exp %96 : vector<8x8xf32>
    %cst_57 = arith.constant dense<0.000000e+00> : vector<8xf32>
    %98 = vector.multi_reduction <add>, %97, %cst_57 [1] : vector<8x8xf32> to vector<8xf32>
    %99 = vector.shape_cast %98 : vector<8xf32> to vector<8x1xf32>
    %100 = tpu.reciprocal %99 {approx = true} : vector<8x1xf32> -> vector<8x1xf32>
    %101 = vector.broadcast %100 : vector<8x1xf32> to vector<8x8xf32>
    %102 = arith.mulf %97, %101 : vector<8x8xf32>
    %103 = arith.truncf %102 : vector<8x8xf32> to vector<8x8xbf16>
    %104 = vector.extract_strided_slice %34 {offsets = [0, 24], sizes = [8, 8], strides = [1, 1]} : vector<8x32xbf16> to vector<8x8xbf16>
    %cst_58 = arith.constant dense<0.000000e+00> : vector<8x8xf32>
    %105 = tpu.matmul %103, %104, %cst_58 {dimension_numbers = #tpu.dot_dimension_numbers<[1], [0], [0], [1], [0, 0, 1, 1], [], []>} : vector<8x8xbf16>, vector<8x8xbf16>, vector<8x8xf32> -> vector<8x8xf32>
    %c0_59 = arith.constant 0 : index
    %c24 = arith.constant 24 : index
    %106 = vector.load %arg19[%c0_59, %c24] : memref<16x32xf32, #tpu.memory_space<vmem>>, vector<8x8xf32>
    tpu.vector_store %arg19[%c0_59, %c24], %105 {strides = array<i32>} : memref<16x32xf32, #tpu.memory_space<vmem>>, vector<8x8xf32>,
    %107 = vector.extract_strided_slice %27 {offsets = [8, 0], sizes = [8, 32], strides = [1, 1]} : vector<16x32xbf16> to vector<8x32xbf16>
    %108 = vector.extract_strided_slice %29 {offsets = [8, 0], sizes = [8, 32], strides = [1, 1]} : vector<16x32xbf16> to vector<8x32xbf16>
    %109 = vector.extract_strided_slice %31 {offsets = [8, 0], sizes = [8, 32], strides = [1, 1]} : vector<16x32xbf16> to vector<8x32xbf16>
    %110 = vector.extract_strided_slice %107 {offsets = [0, 0], sizes = [8, 8], strides = [1, 1]} : vector<8x32xbf16> to vector<8x8xbf16>
    %111 = vector.extract_strided_slice %108 {offsets = [0, 0], sizes = [8, 8], strides = [1, 1]} : vector<8x32xbf16> to vector<8x8xbf16>
    %cst_60 = arith.constant dense<0.000000e+00> : vector<8x8xf32>
    %112 = tpu.matmul %110, %111, %cst_60 {dimension_numbers = #tpu.dot_dimension_numbers<[1], [1], [0], [0], [0, 0, 1, 0], [], []>} : vector<8x8xbf16>, vector<8x8xbf16>, vector<8x8xf32> -> vector<8x8xf32>
    %113 = arith.addf %112, %25 : vector<8x8xf32>
    %cst_61 = arith.constant dense<0xFF800000> : vector<8xf32>
    %114 = vector.multi_reduction <maximumf>, %113, %cst_61 [1] : vector<8x8xf32> to vector<8xf32>
    %115 = vector.shape_cast %114 : vector<8xf32> to vector<8x1xf32>
    %116 = vector.broadcast %115 : vector<8x1xf32> to vector<8x8xf32>
    %117 = arith.subf %113, %116 : vector<8x8xf32>
    %118 = math.exp %117 : vector<8x8xf32>
    %cst_62 = arith.constant dense<0.000000e+00> : vector<8xf32>
    %119 = vector.multi_reduction <add>, %118, %cst_62 [1] : vector<8x8xf32> to vector<8xf32>
    %120 = vector.shape_cast %119 : vector<8xf32> to vector<8x1xf32>
    %121 = tpu.reciprocal %120 {approx = true} : vector<8x1xf32> -> vector<8x1xf32>
    %122 = vector.broadcast %121 : vector<8x1xf32> to vector<8x8xf32>
    %123 = arith.mulf %118, %122 : vector<8x8xf32>
    %124 = arith.truncf %123 : vector<8x8xf32> to vector<8x8xbf16>
    %125 = vector.extract_strided_slice %109 {offsets = [0, 0], sizes = [8, 8], strides = [1, 1]} : vector<8x32xbf16> to vector<8x8xbf16>
    %cst_63 = arith.constant dense<0.000000e+00> : vector<8x8xf32>
    %126 = tpu.matmul %124, %125, %cst_63 {dimension_numbers = #tpu.dot_dimension_numbers<[1], [0], [0], [1], [0, 0, 1, 1], [], []>} : vector<8x8xbf16>, vector<8x8xbf16>, vector<8x8xf32> -> vector<8x8xf32>
    %c8_64 = arith.constant 8 : index
    %c0_65 = arith.constant 0 : index
    %127 = vector.load %arg19[%c8_64, %c0_65] : memref<16x32xf32, #tpu.memory_space<vmem>>, vector<8x8xf32>
    tpu.vector_store %arg19[%c8_64, %c0_65], %126 {strides = array<i32>} : memref<16x32xf32, #tpu.memory_space<vmem>>, vector<8x8xf32>,
    %128 = vector.extract_strided_slice %107 {offsets = [0, 8], sizes = [8, 8], strides = [1, 1]} : vector<8x32xbf16> to vector<8x8xbf16>
    %129 = vector.extract_strided_slice %108 {offsets = [0, 8], sizes = [8, 8], strides = [1, 1]} : vector<8x32xbf16> to vector<8x8xbf16>
    %cst_66 = arith.constant dense<0.000000e+00> : vector<8x8xf32>
    %130 = tpu.matmul %128, %129, %cst_66 {dimension_numbers = #tpu.dot_dimension_numbers<[1], [1], [0], [0], [0, 0, 1, 0], [], []>} : vector<8x8xbf16>, vector<8x8xbf16>, vector<8x8xf32> -> vector<8x8xf32>
    %131 = arith.addf %130, %25 : vector<8x8xf32>
    %cst_67 = arith.constant dense<0xFF800000> : vector<8xf32>
    %132 = vector.multi_reduction <maximumf>, %131, %cst_67 [1] : vector<8x8xf32> to vector<8xf32>
    %133 = vector.shape_cast %132 : vector<8xf32> to vector<8x1xf32>
    %134 = vector.broadcast %133 : vector<8x1xf32> to vector<8x8xf32>
    %135 = arith.subf %131, %134 : vector<8x8xf32>
    %136 = math.exp %135 : vector<8x8xf32>
    %cst_68 = arith.constant dense<0.000000e+00> : vector<8xf32>
    %137 = vector.multi_reduction <add>, %136, %cst_68 [1] : vector<8x8xf32> to vector<8xf32>
    %138 = vector.shape_cast %137 : vector<8xf32> to vector<8x1xf32>
    %139 = tpu.reciprocal %138 {approx = true} : vector<8x1xf32> -> vector<8x1xf32>
    %140 = vector.broadcast %139 : vector<8x1xf32> to vector<8x8xf32>
    %141 = arith.mulf %136, %140 : vector<8x8xf32>
    %142 = arith.truncf %141 : vector<8x8xf32> to vector<8x8xbf16>
    %143 = vector.extract_strided_slice %109 {offsets = [0, 8], sizes = [8, 8], strides = [1, 1]} : vector<8x32xbf16> to vector<8x8xbf16>
    %cst_69 = arith.constant dense<0.000000e+00> : vector<8x8xf32>
    %144 = tpu.matmul %142, %143, %cst_69 {dimension_numbers = #tpu.dot_dimension_numbers<[1], [0], [0], [1], [0, 0, 1, 1], [], []>} : vector<8x8xbf16>, vector<8x8xbf16>, vector<8x8xf32> -> vector<8x8xf32>
    %c8_70 = arith.constant 8 : index
    %c8_71 = arith.constant 8 : index
    %145 = vector.load %arg19[%c8_70, %c8_71] : memref<16x32xf32, #tpu.memory_space<vmem>>, vector<8x8xf32>
    tpu.vector_store %arg19[%c8_70, %c8_71], %144 {strides = array<i32>} : memref<16x32xf32, #tpu.memory_space<vmem>>, vector<8x8xf32>,
    %146 = vector.extract_strided_slice %107 {offsets = [0, 16], sizes = [8, 8], strides = [1, 1]} : vector<8x32xbf16> to vector<8x8xbf16>
    %147 = vector.extract_strided_slice %108 {offsets = [0, 16], sizes = [8, 8], strides = [1, 1]} : vector<8x32xbf16> to vector<8x8xbf16>
    %cst_72 = arith.constant dense<0.000000e+00> : vector<8x8xf32>
    %148 = tpu.matmul %146, %147, %cst_72 {dimension_numbers = #tpu.dot_dimension_numbers<[1], [1], [0], [0], [0, 0, 1, 0], [], []>} : vector<8x8xbf16>, vector<8x8xbf16>, vector<8x8xf32> -> vector<8x8xf32>
    %149 = arith.addf %148, %25 : vector<8x8xf32>
    %cst_73 = arith.constant dense<0xFF800000> : vector<8xf32>
    %150 = vector.multi_reduction <maximumf>, %149, %cst_73 [1] : vector<8x8xf32> to vector<8xf32>
    %151 = vector.shape_cast %150 : vector<8xf32> to vector<8x1xf32>
    %152 = vector.broadcast %151 : vector<8x1xf32> to vector<8x8xf32>
    %153 = arith.subf %149, %152 : vector<8x8xf32>
    %154 = math.exp %153 : vector<8x8xf32>
    %cst_74 = arith.constant dense<0.000000e+00> : vector<8xf32>
    %155 = vector.multi_reduction <add>, %154, %cst_74 [1] : vector<8x8xf32> to vector<8xf32>
    %156 = vector.shape_cast %155 : vector<8xf32> to vector<8x1xf32>
    %157 = tpu.reciprocal %156 {approx = true} : vector<8x1xf32> -> vector<8x1xf32>
    %158 = vector.broadcast %157 : vector<8x1xf32> to vector<8x8xf32>
    %159 = arith.mulf %154, %158 : vector<8x8xf32>
    %160 = arith.truncf %159 : vector<8x8xf32> to vector<8x8xbf16>
    %161 = vector.extract_strided_slice %109 {offsets = [0, 16], sizes = [8, 8], strides = [1, 1]} : vector<8x32xbf16> to vector<8x8xbf16>
    %cst_75 = arith.constant dense<0.000000e+00> : vector<8x8xf32>
    %162 = tpu.matmul %160, %161, %cst_75 {dimension_numbers = #tpu.dot_dimension_numbers<[1], [0], [0], [1], [0, 0, 1, 1], [], []>} : vector<8x8xbf16>, vector<8x8xbf16>, vector<8x8xf32> -> vector<8x8xf32>
    %c8_76 = arith.constant 8 : index
    %c16_77 = arith.constant 16 : index
    %163 = vector.load %arg19[%c8_76, %c16_77] : memref<16x32xf32, #tpu.memory_space<vmem>>, vector<8x8xf32>
    tpu.vector_store %arg19[%c8_76, %c16_77], %162 {strides = array<i32>} : memref<16x32xf32, #tpu.memory_space<vmem>>, vector<8x8xf32>,
    %164 = vector.extract_strided_slice %107 {offsets = [0, 24], sizes = [8, 8], strides = [1, 1]} : vector<8x32xbf16> to vector<8x8xbf16>
    %165 = vector.extract_strided_slice %108 {offsets = [0, 24], sizes = [8, 8], strides = [1, 1]} : vector<8x32xbf16> to vector<8x8xbf16>
    %cst_78 = arith.constant dense<0.000000e+00> : vector<8x8xf32>
    %166 = tpu.matmul %164, %165, %cst_78 {dimension_numbers = #tpu.dot_dimension_numbers<[1], [1], [0], [0], [0, 0, 1, 0], [], []>} : vector<8x8xbf16>, vector<8x8xbf16>, vector<8x8xf32> -> vector<8x8xf32>
    %167 = arith.addf %166, %25 : vector<8x8xf32>
    %cst_79 = arith.constant dense<0xFF800000> : vector<8xf32>
    %168 = vector.multi_reduction <maximumf>, %167, %cst_79 [1] : vector<8x8xf32> to vector<8xf32>
    %169 = vector.shape_cast %168 : vector<8xf32> to vector<8x1xf32>
    %170 = vector.broadcast %169 : vector<8x1xf32> to vector<8x8xf32>
    %171 = arith.subf %167, %170 : vector<8x8xf32>
    %172 = math.exp %171 : vector<8x8xf32>
    %cst_80 = arith.constant dense<0.000000e+00> : vector<8xf32>
    %173 = vector.multi_reduction <add>, %172, %cst_80 [1] : vector<8x8xf32> to vector<8xf32>
    %174 = vector.shape_cast %173 : vector<8xf32> to vector<8x1xf32>
    %175 = tpu.reciprocal %174 {approx = true} : vector<8x1xf32> -> vector<8x1xf32>
    %176 = vector.broadcast %175 : vector<8x1xf32> to vector<8x8xf32>
    %177 = arith.mulf %172, %176 : vector<8x8xf32>
    %178 = arith.truncf %177 : vector<8x8xf32> to vector<8x8xbf16>
    %179 = vector.extract_strided_slice %109 {offsets = [0, 24], sizes = [8, 8], strides = [1, 1]} : vector<8x32xbf16> to vector<8x8xbf16>
    %cst_81 = arith.constant dense<0.000000e+00> : vector<8x8xf32>
    %180 = tpu.matmul %178, %179, %cst_81 {dimension_numbers = #tpu.dot_dimension_numbers<[1], [0], [0], [1], [0, 0, 1, 1], [], []>} : vector<8x8xbf16>, vector<8x8xbf16>, vector<8x8xf32> -> vector<8x8xf32>
    %c8_82 = arith.constant 8 : index
    %c24_83 = arith.constant 24 : index
    %181 = vector.load %arg19[%c8_82, %c24_83] : memref<16x32xf32, #tpu.memory_space<vmem>>, vector<8x8xf32>
    tpu.vector_store %arg19[%c8_82, %c24_83], %180 {strides = array<i32>} : memref<16x32xf32, #tpu.memory_space<vmem>>, vector<8x8xf32>,
    %c0_84 = arith.constant 0 : index
    %c0_85 = arith.constant 0 : index
    %182 = vector.load %arg19[%c0_84, %c0_85] : memref<16x32xf32, #tpu.memory_space<vmem>>, vector<16x32xf32>
    %183 = arith.truncf %182 : vector<16x32xf32> to vector<16x32xbf16>
    %cst_86 = arith.constant dense<0.000000e+00> : vector<16x32xf32>
    %184 = tpu.matmul %183, %7, %cst_86 {dimension_numbers = #tpu.dot_dimension_numbers<[1], [0], [0], [1], [0, 0, 1, 1], [], []>} : vector<16x32xbf16>, vector<32x32xbf16>, vector<16x32xf32> -> vector<16x32xf32>
    %185 = arith.addf %184, %0 : vector<16x32xf32>
    %cst_87 = arith.constant dense<0.000000e+00> : vector<16xf32>
    %186 = vector.multi_reduction <add>, %185, %cst_87 [1] : vector<16x32xf32> to vector<16xf32>
    %187 = vector.shape_cast %186 : vector<16xf32> to vector<16x1xf32>
    %cst_88 = arith.constant 3.200000e+01 : f32
    %188 = vector.broadcast %cst_88 : f32 to vector<16x1xf32>
    %189 = arith.divf %187, %188 : vector<16x1xf32>
    %190 = vector.broadcast %189 : vector<16x1xf32> to vector<16x32xf32>
    %191 = arith.subf %185, %190 : vector<16x32xf32>
    %192 = arith.mulf %191, %191 : vector<16x32xf32>
    %cst_89 = arith.constant dense<0.000000e+00> : vector<16xf32>
    %193 = vector.multi_reduction <add>, %192, %cst_89 [1] : vector<16x32xf32> to vector<16xf32>
    %194 = vector.shape_cast %193 : vector<16xf32> to vector<16x1xf32>
    %cst_90 = arith.constant 0.0322580636 : f32
    %195 = vector.broadcast %cst_90 : f32 to vector<16x1xf32>
    %196 = arith.mulf %194, %195 : vector<16x1xf32>
    %197 = math.sqrt %196 : vector<16x1xf32>
    %cst_91 = arith.constant 9.99999997E-7 : f32
    %198 = vector.broadcast %cst_91 : f32 to vector<16x1xf32>
    %199 = arith.addf %197, %198 : vector<16x1xf32>
    %200 = tpu.reciprocal %199 {approx = true} : vector<16x1xf32> -> vector<16x1xf32>
    %201 = vector.broadcast %200 : vector<16x1xf32> to vector<16x32xf32>
    %202 = arith.mulf %191, %201 : vector<16x32xf32>
    %203 = vector.broadcast %13 : vector<1x32xf32> to vector<16x32xf32>
    %204 = arith.mulf %203, %202 : vector<16x32xf32>
    %205 = vector.broadcast %14 : vector<1x32xf32> to vector<16x32xf32>
    %206 = arith.addf %204, %205 : vector<16x32xf32>
    %207 = arith.truncf %206 : vector<16x32xf32> to vector<16x32xbf16>
    %cst_92 = arith.constant dense<0.000000e+00> : vector<16x32xf32>
    %208 = tpu.matmul %207, %8, %cst_92 {dimension_numbers = #tpu.dot_dimension_numbers<[1], [0], [0], [1], [0, 0, 1, 1], [], []>} : vector<16x32xbf16>, vector<32x32xbf16>, vector<16x32xf32> -> vector<16x32xf32>
    %209 = arith.truncf %208 : vector<16x32xf32> to vector<16x32xbf16>
    %cst_93 = arith.constant dense<0.000000e+00> : vector<24x32xf32>
    %210 = tpu.matmul %3, %9, %cst_93 {dimension_numbers = #tpu.dot_dimension_numbers<[1], [0], [0], [1], [0, 0, 1, 1], [], []>} : vector<24x32xbf16>, vector<32x32xbf16>, vector<24x32xf32> -> vector<24x32xf32>
    %211 = arith.truncf %210 : vector<24x32xf32> to vector<24x32xbf16>
    %cst_94 = arith.constant dense<0.000000e+00> : vector<24x32xf32>
    %212 = tpu.matmul %3, %10, %cst_94 {dimension_numbers = #tpu.dot_dimension_numbers<[1], [0], [0], [1], [0, 0, 1, 1], [], []>} : vector<24x32xbf16>, vector<32x32xbf16>, vector<24x32xf32> -> vector<24x32xf32>
    %213 = arith.truncf %212 : vector<24x32xf32> to vector<24x32xbf16>
    %214 = vector.extract_strided_slice %209 {offsets = [0, 0], sizes = [8, 32], strides = [1, 1]} : vector<16x32xbf16> to vector<8x32xbf16>
    %215 = vector.extract_strided_slice %211 {offsets = [0, 0], sizes = [12, 32], strides = [1, 1]} : vector<24x32xbf16> to vector<12x32xbf16>
    %216 = vector.extract_strided_slice %213 {offsets = [0, 0], sizes = [12, 32], strides = [1, 1]} : vector<24x32xbf16> to vector<12x32xbf16>
    %217 = vector.extract_strided_slice %214 {offsets = [0, 0], sizes = [8, 8], strides = [1, 1]} : vector<8x32xbf16> to vector<8x8xbf16>
    %218 = vector.extract_strided_slice %215 {offsets = [0, 0], sizes = [12, 8], strides = [1, 1]} : vector<12x32xbf16> to vector<12x8xbf16>
    %cst_95 = arith.constant dense<0.000000e+00> : vector<8x12xf32>
    %219 = tpu.matmul %217, %218, %cst_95 {dimension_numbers = #tpu.dot_dimension_numbers<[1], [1], [0], [0], [0, 0, 1, 0], [], []>} : vector<8x8xbf16>, vector<12x8xbf16>, vector<8x12xf32> -> vector<8x12xf32>
    %cst_96 = arith.constant dense<0xFF800000> : vector<8xf32>
    %220 = vector.multi_reduction <maximumf>, %219, %cst_96 [1] : vector<8x12xf32> to vector<8xf32>
    %221 = vector.shape_cast %220 : vector<8xf32> to vector<8x1xf32>
    %222 = vector.broadcast %221 : vector<8x1xf32> to vector<8x12xf32>
    %223 = arith.subf %219, %222 : vector<8x12xf32>
    %224 = math.exp %223 : vector<8x12xf32>
    %cst_97 = arith.constant dense<0.000000e+00> : vector<8xf32>
    %225 = vector.multi_reduction <add>, %224, %cst_97 [1] : vector<8x12xf32> to vector<8xf32>
    %226 = vector.shape_cast %225 : vector<8xf32> to vector<8x1xf32>
    %227 = tpu.reciprocal %226 {approx = true} : vector<8x1xf32> -> vector<8x1xf32>
    %228 = vector.broadcast %227 : vector<8x1xf32> to vector<8x12xf32>
    %229 = arith.mulf %224, %228 : vector<8x12xf32>
    %230 = arith.truncf %229 : vector<8x12xf32> to vector<8x12xbf16>
    %231 = vector.extract_strided_slice %216 {offsets = [0, 0], sizes = [12, 8], strides = [1, 1]} : vector<12x32xbf16> to vector<12x8xbf16>
    %cst_98 = arith.constant dense<0.000000e+00> : vector<8x8xf32>
    %232 = tpu.matmul %230, %231, %cst_98 {dimension_numbers = #tpu.dot_dimension_numbers<[1], [0], [0], [1], [0, 0, 1, 1], [], []>} : vector<8x12xbf16>, vector<12x8xbf16>, vector<8x8xf32> -> vector<8x8xf32>
    %c0_99 = arith.constant 0 : index
    %c0_100 = arith.constant 0 : index
    %233 = vector.load %arg19[%c0_99, %c0_100] : memref<16x32xf32, #tpu.memory_space<vmem>>, vector<8x8xf32>
    tpu.vector_store %arg19[%c0_99, %c0_100], %232 {strides = array<i32>} : memref<16x32xf32, #tpu.memory_space<vmem>>, vector<8x8xf32>,
    %234 = vector.extract_strided_slice %214 {offsets = [0, 8], sizes = [8, 8], strides = [1, 1]} : vector<8x32xbf16> to vector<8x8xbf16>
    %235 = vector.extract_strided_slice %215 {offsets = [0, 8], sizes = [12, 8], strides = [1, 1]} : vector<12x32xbf16> to vector<12x8xbf16>
    %cst_101 = arith.constant dense<0.000000e+00> : vector<8x12xf32>
    %236 = tpu.matmul %234, %235, %cst_101 {dimension_numbers = #tpu.dot_dimension_numbers<[1], [1], [0], [0], [0, 0, 1, 0], [], []>} : vector<8x8xbf16>, vector<12x8xbf16>, vector<8x12xf32> -> vector<8x12xf32>
    %cst_102 = arith.constant dense<0xFF800000> : vector<8xf32>
    %237 = vector.multi_reduction <maximumf>, %236, %cst_102 [1] : vector<8x12xf32> to vector<8xf32>
    %238 = vector.shape_cast %237 : vector<8xf32> to vector<8x1xf32>
    %239 = vector.broadcast %238 : vector<8x1xf32> to vector<8x12xf32>
    %240 = arith.subf %236, %239 : vector<8x12xf32>
    %241 = math.exp %240 : vector<8x12xf32>
    %cst_103 = arith.constant dense<0.000000e+00> : vector<8xf32>
    %242 = vector.multi_reduction <add>, %241, %cst_103 [1] : vector<8x12xf32> to vector<8xf32>
    %243 = vector.shape_cast %242 : vector<8xf32> to vector<8x1xf32>
    %244 = tpu.reciprocal %243 {approx = true} : vector<8x1xf32> -> vector<8x1xf32>
    %245 = vector.broadcast %244 : vector<8x1xf32> to vector<8x12xf32>
    %246 = arith.mulf %241, %245 : vector<8x12xf32>
    %247 = arith.truncf %246 : vector<8x12xf32> to vector<8x12xbf16>
    %248 = vector.extract_strided_slice %216 {offsets = [0, 8], sizes = [12, 8], strides = [1, 1]} : vector<12x32xbf16> to vector<12x8xbf16>
    %cst_104 = arith.constant dense<0.000000e+00> : vector<8x8xf32>
    %249 = tpu.matmul %247, %248, %cst_104 {dimension_numbers = #tpu.dot_dimension_numbers<[1], [0], [0], [1], [0, 0, 1, 1], [], []>} : vector<8x12xbf16>, vector<12x8xbf16>, vector<8x8xf32> -> vector<8x8xf32>
    %c0_105 = arith.constant 0 : index
    %c8_106 = arith.constant 8 : index
    %250 = vector.load %arg19[%c0_105, %c8_106] : memref<16x32xf32, #tpu.memory_space<vmem>>, vector<8x8xf32>
    tpu.vector_store %arg19[%c0_105, %c8_106], %249 {strides = array<i32>} : memref<16x32xf32, #tpu.memory_space<vmem>>, vector<8x8xf32>,
    %251 = vector.extract_strided_slice %214 {offsets = [0, 16], sizes = [8, 8], strides = [1, 1]} : vector<8x32xbf16> to vector<8x8xbf16>
    %252 = vector.extract_strided_slice %215 {offsets = [0, 16], sizes = [12, 8], strides = [1, 1]} : vector<12x32xbf16> to vector<12x8xbf16>
    %cst_107 = arith.constant dense<0.000000e+00> : vector<8x12xf32>
    %253 = tpu.matmul %251, %252, %cst_107 {dimension_numbers = #tpu.dot_dimension_numbers<[1], [1], [0], [0], [0, 0, 1, 0], [], []>} : vector<8x8xbf16>, vector<12x8xbf16>, vector<8x12xf32> -> vector<8x12xf32>
    %cst_108 = arith.constant dense<0xFF800000> : vector<8xf32>
    %254 = vector.multi_reduction <maximumf>, %253, %cst_108 [1] : vector<8x12xf32> to vector<8xf32>
    %255 = vector.shape_cast %254 : vector<8xf32> to vector<8x1xf32>
    %256 = vector.broadcast %255 : vector<8x1xf32> to vector<8x12xf32>
    %257 = arith.subf %253, %256 : vector<8x12xf32>
    %258 = math.exp %257 : vector<8x12xf32>
    %cst_109 = arith.constant dense<0.000000e+00> : vector<8xf32>
    %259 = vector.multi_reduction <add>, %258, %cst_109 [1] : vector<8x12xf32> to vector<8xf32>
    %260 = vector.shape_cast %259 : vector<8xf32> to vector<8x1xf32>
    %261 = tpu.reciprocal %260 {approx = true} : vector<8x1xf32> -> vector<8x1xf32>
    %262 = vector.broadcast %261 : vector<8x1xf32> to vector<8x12xf32>
    %263 = arith.mulf %258, %262 : vector<8x12xf32>
    %264 = arith.truncf %263 : vector<8x12xf32> to vector<8x12xbf16>
    %265 = vector.extract_strided_slice %216 {offsets = [0, 16], sizes = [12, 8], strides = [1, 1]} : vector<12x32xbf16> to vector<12x8xbf16>
    %cst_110 = arith.constant dense<0.000000e+00> : vector<8x8xf32>
    %266 = tpu.matmul %264, %265, %cst_110 {dimension_numbers = #tpu.dot_dimension_numbers<[1], [0], [0], [1], [0, 0, 1, 1], [], []>} : vector<8x12xbf16>, vector<12x8xbf16>, vector<8x8xf32> -> vector<8x8xf32>
    %c0_111 = arith.constant 0 : index
    %c16_112 = arith.constant 16 : index
    %267 = vector.load %arg19[%c0_111, %c16_112] : memref<16x32xf32, #tpu.memory_space<vmem>>, vector<8x8xf32>
    tpu.vector_store %arg19[%c0_111, %c16_112], %266 {strides = array<i32>} : memref<16x32xf32, #tpu.memory_space<vmem>>, vector<8x8xf32>,
    %268 = vector.extract_strided_slice %214 {offsets = [0, 24], sizes = [8, 8], strides = [1, 1]} : vector<8x32xbf16> to vector<8x8xbf16>
    %269 = vector.extract_strided_slice %215 {offsets = [0, 24], sizes = [12, 8], strides = [1, 1]} : vector<12x32xbf16> to vector<12x8xbf16>
    %cst_113 = arith.constant dense<0.000000e+00> : vector<8x12xf32>
    %270 = tpu.matmul %268, %269, %cst_113 {dimension_numbers = #tpu.dot_dimension_numbers<[1], [1], [0], [0], [0, 0, 1, 0], [], []>} : vector<8x8xbf16>, vector<12x8xbf16>, vector<8x12xf32> -> vector<8x12xf32>
    %cst_114 = arith.constant dense<0xFF800000> : vector<8xf32>
    %271 = vector.multi_reduction <maximumf>, %270, %cst_114 [1] : vector<8x12xf32> to vector<8xf32>
    %272 = vector.shape_cast %271 : vector<8xf32> to vector<8x1xf32>
    %273 = vector.broadcast %272 : vector<8x1xf32> to vector<8x12xf32>
    %274 = arith.subf %270, %273 : vector<8x12xf32>
    %275 = math.exp %274 : vector<8x12xf32>
    %cst_115 = arith.constant dense<0.000000e+00> : vector<8xf32>
    %276 = vector.multi_reduction <add>, %275, %cst_115 [1] : vector<8x12xf32> to vector<8xf32>
    %277 = vector.shape_cast %276 : vector<8xf32> to vector<8x1xf32>
    %278 = tpu.reciprocal %277 {approx = true} : vector<8x1xf32> -> vector<8x1xf32>
    %279 = vector.broadcast %278 : vector<8x1xf32> to vector<8x12xf32>
    %280 = arith.mulf %275, %279 : vector<8x12xf32>
    %281 = arith.truncf %280 : vector<8x12xf32> to vector<8x12xbf16>
    %282 = vector.extract_strided_slice %216 {offsets = [0, 24], sizes = [12, 8], strides = [1, 1]} : vector<12x32xbf16> to vector<12x8xbf16>
    %cst_116 = arith.constant dense<0.000000e+00> : vector<8x8xf32>
    %283 = tpu.matmul %281, %282, %cst_116 {dimension_numbers = #tpu.dot_dimension_numbers<[1], [0], [0], [1], [0, 0, 1, 1], [], []>} : vector<8x12xbf16>, vector<12x8xbf16>, vector<8x8xf32> -> vector<8x8xf32>
    %c0_117 = arith.constant 0 : index
    %c24_118 = arith.constant 24 : index
    %284 = vector.load %arg19[%c0_117, %c24_118] : memref<16x32xf32, #tpu.memory_space<vmem>>, vector<8x8xf32>
    tpu.vector_store %arg19[%c0_117, %c24_118], %283 {strides = array<i32>} : memref<16x32xf32, #tpu.memory_space<vmem>>, vector<8x8xf32>,
    %285 = vector.extract_strided_slice %209 {offsets = [8, 0], sizes = [8, 32], strides = [1, 1]} : vector<16x32xbf16> to vector<8x32xbf16>
    %286 = vector.extract_strided_slice %211 {offsets = [12, 0], sizes = [12, 32], strides = [1, 1]} : vector<24x32xbf16> to vector<12x32xbf16>
    %287 = vector.extract_strided_slice %213 {offsets = [12, 0], sizes = [12, 32], strides = [1, 1]} : vector<24x32xbf16> to vector<12x32xbf16>
    %288 = vector.extract_strided_slice %285 {offsets = [0, 0], sizes = [8, 8], strides = [1, 1]} : vector<8x32xbf16> to vector<8x8xbf16>
    %289 = vector.extract_strided_slice %286 {offsets = [0, 0], sizes = [12, 8], strides = [1, 1]} : vector<12x32xbf16> to vector<12x8xbf16>
    %cst_119 = arith.constant dense<0.000000e+00> : vector<8x12xf32>
    %290 = tpu.matmul %288, %289, %cst_119 {dimension_numbers = #tpu.dot_dimension_numbers<[1], [1], [0], [0], [0, 0, 1, 0], [], []>} : vector<8x8xbf16>, vector<12x8xbf16>, vector<8x12xf32> -> vector<8x12xf32>
    %cst_120 = arith.constant dense<0xFF800000> : vector<8xf32>
    %291 = vector.multi_reduction <maximumf>, %290, %cst_120 [1] : vector<8x12xf32> to vector<8xf32>
    %292 = vector.shape_cast %291 : vector<8xf32> to vector<8x1xf32>
    %293 = vector.broadcast %292 : vector<8x1xf32> to vector<8x12xf32>
    %294 = arith.subf %290, %293 : vector<8x12xf32>
    %295 = math.exp %294 : vector<8x12xf32>
    %cst_121 = arith.constant dense<0.000000e+00> : vector<8xf32>
    %296 = vector.multi_reduction <add>, %295, %cst_121 [1] : vector<8x12xf32> to vector<8xf32>
    %297 = vector.shape_cast %296 : vector<8xf32> to vector<8x1xf32>
    %298 = tpu.reciprocal %297 {approx = true} : vector<8x1xf32> -> vector<8x1xf32>
    %299 = vector.broadcast %298 : vector<8x1xf32> to vector<8x12xf32>
    %300 = arith.mulf %295, %299 : vector<8x12xf32>
    %301 = arith.truncf %300 : vector<8x12xf32> to vector<8x12xbf16>
    %302 = vector.extract_strided_slice %287 {offsets = [0, 0], sizes = [12, 8], strides = [1, 1]} : vector<12x32xbf16> to vector<12x8xbf16>
    %cst_122 = arith.constant dense<0.000000e+00> : vector<8x8xf32>
    %303 = tpu.matmul %301, %302, %cst_122 {dimension_numbers = #tpu.dot_dimension_numbers<[1], [0], [0], [1], [0, 0, 1, 1], [], []>} : vector<8x12xbf16>, vector<12x8xbf16>, vector<8x8xf32> -> vector<8x8xf32>
    %c8_123 = arith.constant 8 : index
    %c0_124 = arith.constant 0 : index
    %304 = vector.load %arg19[%c8_123, %c0_124] : memref<16x32xf32, #tpu.memory_space<vmem>>, vector<8x8xf32>
    tpu.vector_store %arg19[%c8_123, %c0_124], %303 {strides = array<i32>} : memref<16x32xf32, #tpu.memory_space<vmem>>, vector<8x8xf32>,
    %305 = vector.extract_strided_slice %285 {offsets = [0, 8], sizes = [8, 8], strides = [1, 1]} : vector<8x32xbf16> to vector<8x8xbf16>
    %306 = vector.extract_strided_slice %286 {offsets = [0, 8], sizes = [12, 8], strides = [1, 1]} : vector<12x32xbf16> to vector<12x8xbf16>
    %cst_125 = arith.constant dense<0.000000e+00> : vector<8x12xf32>
    %307 = tpu.matmul %305, %306, %cst_125 {dimension_numbers = #tpu.dot_dimension_numbers<[1], [1], [0], [0], [0, 0, 1, 0], [], []>} : vector<8x8xbf16>, vector<12x8xbf16>, vector<8x12xf32> -> vector<8x12xf32>
    %cst_126 = arith.constant dense<0xFF800000> : vector<8xf32>
    %308 = vector.multi_reduction <maximumf>, %307, %cst_126 [1] : vector<8x12xf32> to vector<8xf32>
    %309 = vector.shape_cast %308 : vector<8xf32> to vector<8x1xf32>
    %310 = vector.broadcast %309 : vector<8x1xf32> to vector<8x12xf32>
    %311 = arith.subf %307, %310 : vector<8x12xf32>
    %312 = math.exp %311 : vector<8x12xf32>
    %cst_127 = arith.constant dense<0.000000e+00> : vector<8xf32>
    %313 = vector.multi_reduction <add>, %312, %cst_127 [1] : vector<8x12xf32> to vector<8xf32>
    %314 = vector.shape_cast %313 : vector<8xf32> to vector<8x1xf32>
    %315 = tpu.reciprocal %314 {approx = true} : vector<8x1xf32> -> vector<8x1xf32>
    %316 = vector.broadcast %315 : vector<8x1xf32> to vector<8x12xf32>
    %317 = arith.mulf %312, %316 : vector<8x12xf32>
    %318 = arith.truncf %317 : vector<8x12xf32> to vector<8x12xbf16>
    %319 = vector.extract_strided_slice %287 {offsets = [0, 8], sizes = [12, 8], strides = [1, 1]} : vector<12x32xbf16> to vector<12x8xbf16>
    %cst_128 = arith.constant dense<0.000000e+00> : vector<8x8xf32>
    %320 = tpu.matmul %318, %319, %cst_128 {dimension_numbers = #tpu.dot_dimension_numbers<[1], [0], [0], [1], [0, 0, 1, 1], [], []>} : vector<8x12xbf16>, vector<12x8xbf16>, vector<8x8xf32> -> vector<8x8xf32>
    %c8_129 = arith.constant 8 : index
    %c8_130 = arith.constant 8 : index
    %321 = vector.load %arg19[%c8_129, %c8_130] : memref<16x32xf32, #tpu.memory_space<vmem>>, vector<8x8xf32>
    tpu.vector_store %arg19[%c8_129, %c8_130], %320 {strides = array<i32>} : memref<16x32xf32, #tpu.memory_space<vmem>>, vector<8x8xf32>,
    %322 = vector.extract_strided_slice %285 {offsets = [0, 16], sizes = [8, 8], strides = [1, 1]} : vector<8x32xbf16> to vector<8x8xbf16>
    %323 = vector.extract_strided_slice %286 {offsets = [0, 16], sizes = [12, 8], strides = [1, 1]} : vector<12x32xbf16> to vector<12x8xbf16>
    %cst_131 = arith.constant dense<0.000000e+00> : vector<8x12xf32>
    %324 = tpu.matmul %322, %323, %cst_131 {dimension_numbers = #tpu.dot_dimension_numbers<[1], [1], [0], [0], [0, 0, 1, 0], [], []>} : vector<8x8xbf16>, vector<12x8xbf16>, vector<8x12xf32> -> vector<8x12xf32>
    %cst_132 = arith.constant dense<0xFF800000> : vector<8xf32>
    %325 = vector.multi_reduction <maximumf>, %324, %cst_132 [1] : vector<8x12xf32> to vector<8xf32>
    %326 = vector.shape_cast %325 : vector<8xf32> to vector<8x1xf32>
    %327 = vector.broadcast %326 : vector<8x1xf32> to vector<8x12xf32>
    %328 = arith.subf %324, %327 : vector<8x12xf32>
    %329 = math.exp %328 : vector<8x12xf32>
    %cst_133 = arith.constant dense<0.000000e+00> : vector<8xf32>
    %330 = vector.multi_reduction <add>, %329, %cst_133 [1] : vector<8x12xf32> to vector<8xf32>
    %331 = vector.shape_cast %330 : vector<8xf32> to vector<8x1xf32>
    %332 = tpu.reciprocal %331 {approx = true} : vector<8x1xf32> -> vector<8x1xf32>
    %333 = vector.broadcast %332 : vector<8x1xf32> to vector<8x12xf32>
    %334 = arith.mulf %329, %333 : vector<8x12xf32>
    %335 = arith.truncf %334 : vector<8x12xf32> to vector<8x12xbf16>
    %336 = vector.extract_strided_slice %287 {offsets = [0, 16], sizes = [12, 8], strides = [1, 1]} : vector<12x32xbf16> to vector<12x8xbf16>
    %cst_134 = arith.constant dense<0.000000e+00> : vector<8x8xf32>
    %337 = tpu.matmul %335, %336, %cst_134 {dimension_numbers = #tpu.dot_dimension_numbers<[1], [0], [0], [1], [0, 0, 1, 1], [], []>} : vector<8x12xbf16>, vector<12x8xbf16>, vector<8x8xf32> -> vector<8x8xf32>
    %c8_135 = arith.constant 8 : index
    %c16_136 = arith.constant 16 : index
    %338 = vector.load %arg19[%c8_135, %c16_136] : memref<16x32xf32, #tpu.memory_space<vmem>>, vector<8x8xf32>
    tpu.vector_store %arg19[%c8_135, %c16_136], %337 {strides = array<i32>} : memref<16x32xf32, #tpu.memory_space<vmem>>, vector<8x8xf32>,
    %339 = vector.extract_strided_slice %285 {offsets = [0, 24], sizes = [8, 8], strides = [1, 1]} : vector<8x32xbf16> to vector<8x8xbf16>
    %340 = vector.extract_strided_slice %286 {offsets = [0, 24], sizes = [12, 8], strides = [1, 1]} : vector<12x32xbf16> to vector<12x8xbf16>
    %cst_137 = arith.constant dense<0.000000e+00> : vector<8x12xf32>
    %341 = tpu.matmul %339, %340, %cst_137 {dimension_numbers = #tpu.dot_dimension_numbers<[1], [1], [0], [0], [0, 0, 1, 0], [], []>} : vector<8x8xbf16>, vector<12x8xbf16>, vector<8x12xf32> -> vector<8x12xf32>
    %cst_138 = arith.constant dense<0xFF800000> : vector<8xf32>
    %342 = vector.multi_reduction <maximumf>, %341, %cst_138 [1] : vector<8x12xf32> to vector<8xf32>
    %343 = vector.shape_cast %342 : vector<8xf32> to vector<8x1xf32>
    %344 = vector.broadcast %343 : vector<8x1xf32> to vector<8x12xf32>
    %345 = arith.subf %341, %344 : vector<8x12xf32>
    %346 = math.exp %345 : vector<8x12xf32>
    %cst_139 = arith.constant dense<0.000000e+00> : vector<8xf32>
    %347 = vector.multi_reduction <add>, %346, %cst_139 [1] : vector<8x12xf32> to vector<8xf32>
    %348 = vector.shape_cast %347 : vector<8xf32> to vector<8x1xf32>
    %349 = tpu.reciprocal %348 {approx = true} : vector<8x1xf32> -> vector<8x1xf32>
    %350 = vector.broadcast %349 : vector<8x1xf32> to vector<8x12xf32>
    %351 = arith.mulf %346, %350 : vector<8x12xf32>
    %352 = arith.truncf %351 : vector<8x12xf32> to vector<8x12xbf16>
    %353 = vector.extract_strided_slice %287 {offsets = [0, 24], sizes = [12, 8], strides = [1, 1]} : vector<12x32xbf16> to vector<12x8xbf16>
    %cst_140 = arith.constant dense<0.000000e+00> : vector<8x8xf32>
    %354 = tpu.matmul %352, %353, %cst_140 {dimension_numbers = #tpu.dot_dimension_numbers<[1], [0], [0], [1], [0, 0, 1, 1], [], []>} : vector<8x12xbf16>, vector<12x8xbf16>, vector<8x8xf32> -> vector<8x8xf32>
    %c8_141 = arith.constant 8 : index
    %c24_142 = arith.constant 24 : index
    %355 = vector.load %arg19[%c8_141, %c24_142] : memref<16x32xf32, #tpu.memory_space<vmem>>, vector<8x8xf32>
    tpu.vector_store %arg19[%c8_141, %c24_142], %354 {strides = array<i32>} : memref<16x32xf32, #tpu.memory_space<vmem>>, vector<8x8xf32>,
    %c0_143 = arith.constant 0 : index
    %c0_144 = arith.constant 0 : index
    %356 = vector.load %arg19[%c0_143, %c0_144] : memref<16x32xf32, #tpu.memory_space<vmem>>, vector<16x32xf32>
    %357 = arith.truncf %356 : vector<16x32xf32> to vector<16x32xbf16>
    %cst_145 = arith.constant dense<0.000000e+00> : vector<16x32xf32>
    %358 = tpu.matmul %357, %11, %cst_145 {dimension_numbers = #tpu.dot_dimension_numbers<[1], [0], [0], [1], [0, 0, 1, 1], [], []>} : vector<16x32xbf16>, vector<32x32xbf16>, vector<16x32xf32> -> vector<16x32xf32>
    %359 = arith.addf %358, %206 : vector<16x32xf32>
    %cst_146 = arith.constant dense<0.000000e+00> : vector<16xf32>
    %360 = vector.multi_reduction <add>, %359, %cst_146 [1] : vector<16x32xf32> to vector<16xf32>
    %361 = vector.shape_cast %360 : vector<16xf32> to vector<16x1xf32>
    %cst_147 = arith.constant 3.200000e+01 : f32
    %362 = vector.broadcast %cst_147 : f32 to vector<16x1xf32>
    %363 = arith.divf %361, %362 : vector<16x1xf32>
    %364 = vector.broadcast %363 : vector<16x1xf32> to vector<16x32xf32>
    %365 = arith.subf %359, %364 : vector<16x32xf32>
    %366 = arith.mulf %365, %365 : vector<16x32xf32>
    %cst_148 = arith.constant dense<0.000000e+00> : vector<16xf32>
    %367 = vector.multi_reduction <add>, %366, %cst_148 [1] : vector<16x32xf32> to vector<16xf32>
    %368 = vector.shape_cast %367 : vector<16xf32> to vector<16x1xf32>
    %cst_149 = arith.constant 0.0322580636 : f32
    %369 = vector.broadcast %cst_149 : f32 to vector<16x1xf32>
    %370 = arith.mulf %368, %369 : vector<16x1xf32>
    %371 = math.sqrt %370 : vector<16x1xf32>
    %cst_150 = arith.constant 9.99999997E-7 : f32
    %372 = vector.broadcast %cst_150 : f32 to vector<16x1xf32>
    %373 = arith.addf %371, %372 : vector<16x1xf32>
    %374 = tpu.reciprocal %373 {approx = true} : vector<16x1xf32> -> vector<16x1xf32>
    %375 = vector.broadcast %374 : vector<16x1xf32> to vector<16x32xf32>
    %376 = arith.mulf %365, %375 : vector<16x32xf32>
    %377 = vector.broadcast %15 : vector<1x32xf32> to vector<16x32xf32>
    %378 = arith.mulf %377, %376 : vector<16x32xf32>
    %379 = vector.broadcast %16 : vector<1x32xf32> to vector<16x32xf32>
    %380 = arith.addf %378, %379 : vector<16x32xf32>
    %381 = arith.truncf %380 : vector<16x32xf32> to vector<16x32xbf16>
    %cst_151 = arith.constant dense<0.000000e+00> : vector<16x32xf32>
    %382 = tpu.matmul %381, %12, %cst_151 {dimension_numbers = #tpu.dot_dimension_numbers<[1], [0], [0], [1], [0, 0, 1, 1], [], []>} : vector<16x32xbf16>, vector<32x32xbf16>, vector<16x32xf32> -> vector<16x32xf32>
    %383 = vector.broadcast %19 : vector<1x32xf32> to vector<16x32xf32>
    %384 = arith.addf %382, %383 : vector<16x32xf32>
    %385 = arith.addf %384, %380 : vector<16x32xf32>
    %cst_152 = arith.constant dense<0.000000e+00> : vector<16xf32>
    %386 = vector.multi_reduction <add>, %385, %cst_152 [1] : vector<16x32xf32> to vector<16xf32>
    %387 = vector.shape_cast %386 : vector<16xf32> to vector<16x1xf32>
    %cst_153 = arith.constant 3.200000e+01 : f32
    %388 = vector.broadcast %cst_153 : f32 to vector<16x1xf32>
    %389 = arith.divf %387, %388 : vector<16x1xf32>
    %390 = vector.broadcast %389 : vector<16x1xf32> to vector<16x32xf32>
    %391 = arith.subf %385, %390 : vector<16x32xf32>
    %392 = arith.mulf %391, %391 : vector<16x32xf32>
    %cst_154 = arith.constant dense<0.000000e+00> : vector<16xf32>
    %393 = vector.multi_reduction <add>, %392, %cst_154 [1] : vector<16x32xf32> to vector<16xf32>
    %394 = vector.shape_cast %393 : vector<16xf32> to vector<16x1xf32>
    %cst_155 = arith.constant 0.0322580636 : f32
    %395 = vector.broadcast %cst_155 : f32 to vector<16x1xf32>
    %396 = arith.mulf %394, %395 : vector<16x1xf32>
    %397 = math.sqrt %396 : vector<16x1xf32>
    %cst_156 = arith.constant 9.99999997E-7 : f32
    %398 = vector.broadcast %cst_156 : f32 to vector<16x1xf32>
    %399 = arith.addf %397, %398 : vector<16x1xf32>
    %400 = tpu.reciprocal %399 {approx = true} : vector<16x1xf32> -> vector<16x1xf32>
    %401 = vector.broadcast %400 : vector<16x1xf32> to vector<16x32xf32>
    %402 = arith.mulf %391, %401 : vector<16x32xf32>
    %403 = vector.broadcast %17 : vector<1x32xf32> to vector<16x32xf32>
    %404 = arith.mulf %403, %402 : vector<16x32xf32>
    %405 = vector.broadcast %18 : vector<1x32xf32> to vector<16x32xf32>
    %406 = arith.addf %404, %405 : vector<16x32xf32>
    %c0_157 = arith.constant 0 : index
    %c0_158 = arith.constant 0 : index
    %407 = vector.load %arg18[%c0_157, %c0_158] : memref<16x32xf32, #tpu.memory_space<vmem>>, vector<16x32xf32>
    tpu.vector_store %arg18[%c0_157, %c0_158], %406 {strides = array<i32>} : memref<16x32xf32, #tpu.memory_space<vmem>>, vector<16x32xf32>,
    return
  }
}

</mosaic_0001>

<llo_original>
// kernel: tpu_custom_call.1
$region0: #{tpu_custom_call.1}
  #allocation0 [shape = 'u32[]', space=smem, size = 0x4, offset = 0x4, fixed_abs, tag = 'smem constant byte address 0x4 - core index']
  #allocation1 [shape = 'u32[144,128]{1,0:T(1,128)}', space=vmem, size = 0x12000, scoped, tag = 'internal scratch']
  #allocation2 [shape = 'f32[16,32]{1,0:T(8,128)}', space=vmem, size = 0x2000, scoped, tag = 'scratch operand']
  %s0 = inlined_call_operand.hbm [shape: f32[16,32], index: 0, kind: input, shape index: {}]
  %s1 = inlined_call_operand.hbm [shape: f32[24,32], index: 1, kind: input, shape index: {}]
  %s2 = inlined_call_operand.hbm [shape: bf16[32,32], index: 2, kind: input, shape index: {}]
  %s3 = inlined_call_operand.hbm [shape: bf16[32,32], index: 3, kind: input, shape index: {}]
  %s4 = inlined_call_operand.hbm [shape: bf16[32,32], index: 4, kind: input, shape index: {}]
  %s5 = inlined_call_operand.vmem [shape: bf16[32,32], index: 5, kind: input, shape index: {}]
  %s6 = inlined_call_operand.vmem [shape: f32[1,32], index: 6, kind: input, shape index: {}]
  %s7 = inlined_call_operand.hbm [shape: f32[1,32], index: 7, kind: input, shape index: {}]
  %s8 = inlined_call_operand.hbm [shape: bf16[32,32], index: 8, kind: input, shape index: {}]
  %s9 = inlined_call_operand.vmem [shape: bf16[32,32], index: 9, kind: input, shape index: {}]
  %s10 = inlined_call_operand.hbm [shape: bf16[32,32], index: 10, kind: input, shape index: {}]
  %s11 = inlined_call_operand.hbm [shape: bf16[32,32], index: 11, kind: input, shape index: {}]
  %s12 = inlined_call_operand.hbm [shape: f32[1,32], index: 12, kind: input, shape index: {}]
  %s13 = inlined_call_operand.hbm [shape: f32[1,32], index: 13, kind: input, shape index: {}]
  %s14 = inlined_call_operand.vmem [shape: bf16[32,32], index: 14, kind: input, shape index: {}]
  %s15 = inlined_call_operand.vmem [shape: f32[1,32], index: 15, kind: input, shape index: {}]
  %s16 = inlined_call_operand.vmem [shape: f32[1,32], index: 16, kind: input, shape index: {}]
  %s17 = inlined_call_operand.vmem [shape: f32[1,32], index: 17, kind: input, shape index: {}]
  %s18 = inlined_call_operand.hbm [shape: f32[16,32], index: 18, kind: output, shape index: {}]
  %s19 = sld [smem:[#allocation0]]
  $region126: #{tpu_custom_call.1} parent=0
    _
  %s21 = ssub.s32 1, %s19
  %s22 = scalar_select 0, %s21, %s19
  $region1: #{tpu_custom_call.1} parent=0
    #allocation3 [shape = 'u8[8192]{0}', space=vmem, size = 0x2000, scoped, tag = 'input window, operand 0, single buffered']
    #allocation4 [shape = 's32[1]{0}', space=sflag, size = 0x4, scoped, tag = 'scoped memory for tpu_custom_call.1']
    #allocation5 [shape = 's32[1]{0}', space=sflag, size = 0x4, scoped, tag = 'scoped memory for tpu_custom_call.1']
    #allocation6 [shape = 'u8[12288]{0}', space=vmem, size = 0x3000, scoped, tag = 'input window, operand 1, single buffered']
    #allocation7 [shape = 's32[1]{0}', space=sflag, size = 0x4, scoped, tag = 'scoped memory for tpu_custom_call.1']
    #allocation8 [shape = 'u8[8192]{0}', space=vmem, size = 0x2000, scoped, tag = 'input window, operand 2, single buffered']
    #allocation9 [shape = 'u8[8192]{0}', space=vmem, size = 0x2000, scoped, tag = 'input window, operand 3, single buffered']
    #allocation10 [shape = 's32[1]{0}', space=sflag, size = 0x4, scoped, tag = 'scoped memory for tpu_custom_call.1']
    #allocation11 [shape = 'u8[8192]{0}', space=vmem, size = 0x2000, scoped, tag = 'input window, operand 4, single buffered']
    #allocation12 [shape = 'u8[512]{0}', space=vmem, size = 0x400, scoped, tag = 'input window, operand 7, single buffered']
    #allocation13 [shape = 's32[1]{0}', space=sflag, size = 0x4, scoped, tag = 'scoped memory for tpu_custom_call.1']
    #allocation14 [shape = 'u8[8192]{0}', space=vmem, size = 0x2000, scoped, tag = 'input window, operand 8, single buffered']
    #allocation15 [shape = 'u8[8192]{0}', space=vmem, size = 0x2000, scoped, tag = 'input window, operand 10, single buffered']
    #allocation16 [shape = 's32[1]{0}', space=sflag, size = 0x4, scoped, tag = 'scoped memory for tpu_custom_call.1']
    #allocation17 [shape = 'u8[8192]{0}', space=vmem, size = 0x2000, scoped, tag = 'input window, operand 11, single buffered']
    #allocation18 [shape = 'u8[512]{0}', space=vmem, size = 0x400, scoped, tag = 'input window, operand 12, single buffered']
    #allocation19 [shape = 's32[1]{0}', space=sflag, size = 0x4, scoped, tag = 'scoped memory for tpu_custom_call.1']
    #allocation20 [shape = 'u8[512]{0}', space=vmem, size = 0x400, scoped, tag = 'input window, operand 13, single buffered']
    #allocation21 [shape = 'u8[8192]{0}', space=vmem, size = 0x2000, scoped, tag = 'output window, operand 0, single buffered']
    %23 = vsyncpa [#allocation4], 0
    %24 = vsyncpa [#allocation7], 0
    %25 = vsyncpa [#allocation10], 0
    %26 = vsyncpa [#allocation13], 0
    %27 = vsyncpa [#allocation16], 0
    %28 = vsyncpa [#allocation19], 0
    %29 = vsyncpa [#allocation5], 0
    // Predicated region
    $region2: #{tpu_custom_call.1} parent=1 // pred_check
      _
    $region3: #{tpu_custom_call.1} parent=1 // pred_check_branch
      %31 = sbr.rel (0) target = $region5
    $region4: #{tpu_custom_call.1} parent=1 // pred_region
      %s33 = ssub.s32 256, 256
      %34 = vsyncadd [#allocation4], %s33
      %s35 = sshll.u32 [#allocation3], 4
      %s36 = int_to_ptr.vmem [resolvable:$true] %s35
      %41 = dma.hbm_to_vmem [thread:$0]  %s0, 256, %s36, [#allocation4], 128, 128, 8
    $region5: #{tpu_custom_call.1} parent=1 // pred_fallthru
      _
    // Predicated region
    $region6: #{tpu_custom_call.1} parent=1 // pred_check
      _
    $region7: #{tpu_custom_call.1} parent=1 // pred_check_branch
      %43 = sbr.rel (0) target = $region9
    $region8: #{tpu_custom_call.1} parent=1 // pred_region
      %s45 = ssub.s32 384, 384
      %46 = vsyncadd [#allocation7], %s45
      %s47 = sshll.u32 [#allocation6], 4
      %s48 = int_to_ptr.vmem [resolvable:$true] %s47
      %53 = dma.hbm_to_vmem [thread:$0]  %s1, 384, %s48, [#allocation7], 128, 128, 8
    $region9: #{tpu_custom_call.1} parent=1 // pred_fallthru
      _
    // Predicated region
    $region10: #{tpu_custom_call.1} parent=1 // pred_check
      _
    $region11: #{tpu_custom_call.1} parent=1 // pred_check_branch
      %55 = sbr.rel (0) target = $region13
    $region12: #{tpu_custom_call.1} parent=1 // pred_region
      %s57 = ssub.s32 256, 256
      %58 = vsyncadd [#allocation7], %s57
      %s59 = sshll.u32 [#allocation8], 4
      %s60 = int_to_ptr.vmem [resolvable:$true] %s59
      %65 = dma.hbm_to_vmem [thread:$0]  %s2, 256, %s60, [#allocation7], 64, 64, 4
    $region13: #{tpu_custom_call.1} parent=1 // pred_fallthru
      _
    // Predicated region
    $region14: #{tpu_custom_call.1} parent=1 // pred_check
      _
    $region15: #{tpu_custom_call.1} parent=1 // pred_check_branch
      %67 = sbr.rel (0) target = $region17
    $region16: #{tpu_custom_call.1} parent=1 // pred_region
      %s69 = ssub.s32 256, 256
      %70 = vsyncadd [#allocation10], %s69
      %s71 = sshll.u32 [#allocation9], 4
      %s72 = int_to_ptr.vmem [resolvable:$true] %s71
      %77 = dma.hbm_to_vmem [thread:$0]  %s3, 256, %s72, [#allocation10], 64, 64, 4
    $region17: #{tpu_custom_call.1} parent=1 // pred_fallthru
      _
    // Predicated region
    $region18: #{tpu_custom_call.1} parent=1 // pred_check
      _
    $region19: #{tpu_custom_call.1} parent=1 // pred_check_branch
      %79 = sbr.rel (0) target = $region21
    $region20: #{tpu_custom_call.1} parent=1 // pred_region
      %s81 = ssub.s32 256, 256
      %82 = vsyncadd [#allocation10], %s81
      %s83 = sshll.u32 [#allocation11], 4
      %s84 = int_to_ptr.vmem [resolvable:$true] %s83
      %89 = dma.hbm_to_vmem [thread:$0]  %s4, 256, %s84, [#allocation10], 64, 64, 4
    $region21: #{tpu_custom_call.1} parent=1 // pred_fallthru
      _
    // Predicated region
    $region22: #{tpu_custom_call.1} parent=1 // pred_check
      _
    $region23: #{tpu_custom_call.1} parent=1 // pred_check_branch
      %91 = sbr.rel (0) target = $region25
    $region24: #{tpu_custom_call.1} parent=1 // pred_region
      _
    $region25: #{tpu_custom_call.1} parent=1 // pred_fallthru
      _
    // Predicated region
    $region26: #{tpu_custom_call.1} parent=1 // pred_check
      _
    $region27: #{tpu_custom_call.1} parent=1 // pred_check_branch
      %93 = sbr.rel (0) target = $region29
    $region28: #{tpu_custom_call.1} parent=1 // pred_region
      _
    $region29: #{tpu_custom_call.1} parent=1 // pred_fallthru
      _
    // Predicated region
    $region30: #{tpu_custom_call.1} parent=1 // pred_check
      _
    $region31: #{tpu_custom_call.1} parent=1 // pred_check_branch
      %95 = sbr.rel (0) target = $region33
    $region32: #{tpu_custom_call.1} parent=1 // pred_region
      %s97 = ssub.s32 16, 16
      %98 = vsyncadd [#allocation13], %s97
      %s100 = sshll.u32 [#allocation12], 4
      %s101 = int_to_ptr.vmem [resolvable:$true] %s100
      %103 = dma.hbm_to_vmem [thread:$0]  %s7, 16, %s101, [#allocation13]
    $region33: #{tpu_custom_call.1} parent=1 // pred_fallthru
      _
    // Predicated region
    $region34: #{tpu_custom_call.1} parent=1 // pred_check
      _
    $region35: #{tpu_custom_call.1} parent=1 // pred_check_branch
      %105 = sbr.rel (0) target = $region37
    $region36: #{tpu_custom_call.1} parent=1 // pred_region
      %s107 = ssub.s32 256, 256
      %108 = vsyncadd [#allocation13], %s107
      %s109 = sshll.u32 [#allocation14], 4
      %s110 = int_to_ptr.vmem [resolvable:$true] %s109
      %115 = dma.hbm_to_vmem [thread:$0]  %s8, 256, %s110, [#allocation13], 64, 64, 4
    $region37: #{tpu_custom_call.1} parent=1 // pred_fallthru
      _
    // Predicated region
    $region38: #{tpu_custom_call.1} parent=1 // pred_check
      _
    $region39: #{tpu_custom_call.1} parent=1 // pred_check_branch
      %117 = sbr.rel (0) target = $region41
    $region40: #{tpu_custom_call.1} parent=1 // pred_region
      _
    $region41: #{tpu_custom_call.1} parent=1 // pred_fallthru
      _
    // Predicated region
    $region42: #{tpu_custom_call.1} parent=1 // pred_check
      _
    $region43: #{tpu_custom_call.1} parent=1 // pred_check_branch
      %119 = sbr.rel (0) target = $region45
    $region44: #{tpu_custom_call.1} parent=1 // pred_region
      %s121 = ssub.s32 256, 256
      %122 = vsyncadd [#allocation16], %s121
      %s123 = sshll.u32 [#allocation15], 4
      %s124 = int_to_ptr.vmem [resolvable:$true] %s123
      %129 = dma.hbm_to_vmem [thread:$0]  %s10, 256, %s124, [#allocation16], 64, 64, 4
    $region45: #{tpu_custom_call.1} parent=1 // pred_fallthru
      _
    // Predicated region
    $region46: #{tpu_custom_call.1} parent=1 // pred_check
      _
    $region47: #{tpu_custom_call.1} parent=1 // pred_check_branch
      %131 = sbr.rel (0) target = $region49
    $region48: #{tpu_custom_call.1} parent=1 // pred_region
      %s133 = ssub.s32 256, 256
      %134 = vsyncadd [#allocation16], %s133
      %s135 = sshll.u32 [#allocation17], 4
      %s136 = int_to_ptr.vmem [resolvable:$true] %s135
      %141 = dma.hbm_to_vmem [thread:$0]  %s11, 256, %s136, [#allocation16], 64, 64, 4
    $region49: #{tpu_custom_call.1} parent=1 // pred_fallthru
      _
    // Predicated region
    $region50: #{tpu_custom_call.1} parent=1 // pred_check
      _
    $region51: #{tpu_custom_call.1} parent=1 // pred_check_branch
      %143 = sbr.rel (0) target = $region53
    $region52: #{tpu_custom_call.1} parent=1 // pred_region
      %s145 = ssub.s32 16, 16
      %146 = vsyncadd [#allocation19], %s145
      %s148 = sshll.u32 [#allocation18], 4
      %s149 = int_to_ptr.vmem [resolvable:$true] %s148
      %151 = dma.hbm_to_vmem [thread:$0]  %s12, 16, %s149, [#allocation19]
    $region53: #{tpu_custom_call.1} parent=1 // pred_fallthru
      _
    // Predicated region
    $region54: #{tpu_custom_call.1} parent=1 // pred_check
      _
    $region55: #{tpu_custom_call.1} parent=1 // pred_check_branch
      %153 = sbr.rel (0) target = $region57
    $region56: #{tpu_custom_call.1} parent=1 // pred_region
      %s155 = ssub.s32 16, 16
      %156 = vsyncadd [#allocation19], %s155
      %s158 = sshll.u32 [#allocation20], 4
      %s159 = int_to_ptr.vmem [resolvable:$true] %s158
      %161 = dma.hbm_to_vmem [thread:$0]  %s13, 16, %s159, [#allocation19]
    $region57: #{tpu_custom_call.1} parent=1 // pred_fallthru
      _
    // Predicated region
    $region58: #{tpu_custom_call.1} parent=1 // pred_check
      _
    $region59: #{tpu_custom_call.1} parent=1 // pred_check_branch
      %163 = sbr.rel (0) target = $region61
    $region60: #{tpu_custom_call.1} parent=1 // pred_region
      _
    $region61: #{tpu_custom_call.1} parent=1 // pred_fallthru
      _
    // Predicated region
    $region62: #{tpu_custom_call.1} parent=1 // pred_check
      _
    $region63: #{tpu_custom_call.1} parent=1 // pred_check_branch
      %165 = sbr.rel (0) target = $region65
    $region64: #{tpu_custom_call.1} parent=1 // pred_region
      _
    $region65: #{tpu_custom_call.1} parent=1 // pred_fallthru
      _
    // Predicated region
    $region66: #{tpu_custom_call.1} parent=1 // pred_check
      _
    $region67: #{tpu_custom_call.1} parent=1 // pred_check_branch
      %167 = sbr.rel (0) target = $region69
    $region68: #{tpu_custom_call.1} parent=1 // pred_region
      _
    $region69: #{tpu_custom_call.1} parent=1 // pred_fallthru
      _
    // Predicated region
    $region70: #{tpu_custom_call.1} parent=1 // pred_check
      _
    $region71: #{tpu_custom_call.1} parent=1 // pred_check_branch
      %169 = sbr.rel (0) target = $region73
    $region72: #{tpu_custom_call.1} parent=1 // pred_region
      _
    $region73: #{tpu_custom_call.1} parent=1 // pred_fallthru
      _
    // Predicated region
    $region74: #{tpu_custom_call.1} parent=1 // pred_check
      _
    $region75: #{tpu_custom_call.1} parent=1 // pred_check_branch
      %171 = sbr.rel (0) target = $region77
    $region76: #{tpu_custom_call.1} parent=1 // pred_region
      %172 = dma.done [#allocation4], 256
    $region77: #{tpu_custom_call.1} parent=1 // pred_fallthru
      _
    // Predicated region
    $region78: #{tpu_custom_call.1} parent=1 // pred_check
      _
    $region79: #{tpu_custom_call.1} parent=1 // pred_check_branch
      %174 = sbr.rel (0) target = $region81
    $region80: #{tpu_custom_call.1} parent=1 // pred_region
      %175 = dma.done [#allocation7], 384
    $region81: #{tpu_custom_call.1} parent=1 // pred_fallthru
      _
    // Predicated region
    $region82: #{tpu_custom_call.1} parent=1 // pred_check
      _
    $region83: #{tpu_custom_call.1} parent=1 // pred_check_branch
      %177 = sbr.rel (0) target = $region85
    $region84: #{tpu_custom_call.1} parent=1 // pred_region
      %178 = dma.done [#allocation7], 256
    $region85: #{tpu_custom_call.1} parent=1 // pred_fallthru
      _
    // Predicated region
    $region86: #{tpu_custom_call.1} parent=1 // pred_check
      _
    $region87: #{tpu_custom_call.1} parent=1 // pred_check_branch
      %180 = sbr.rel (0) target = $region89
    $region88: #{tpu_custom_call.1} parent=1 // pred_region
      %181 = dma.done [#allocation10], 256
    $region89: #{tpu_custom_call.1} parent=1 // pred_fallthru
      _
    // Predicated region
    $region90: #{tpu_custom_call.1} parent=1 // pred_check
      _
    $region91: #{tpu_custom_call.1} parent=1 // pred_check_branch
      %183 = sbr.rel (0) target = $region93
    $region92: #{tpu_custom_call.1} parent=1 // pred_region
      %184 = dma.done [#allocation10], 256
    $region93: #{tpu_custom_call.1} parent=1 // pred_fallthru
      _
    // Predicated region
    $region94: #{tpu_custom_call.1} parent=1 // pred_check
      _
    $region95: #{tpu_custom_call.1} parent=1 // pred_check_branch
      %186 = sbr.rel (0) target = $region97
    $region96: #{tpu_custom_call.1} parent=1 // pred_region
      %187 = dma.done [#allocation13], 16
    $region97: #{tpu_custom_call.1} parent=1 // pred_fallthru
      _
    // Predicated region
    $region98: #{tpu_custom_call.1} parent=1 // pred_check
      _
    $region99: #{tpu_custom_call.1} parent=1 // pred_check_branch
      %189 = sbr.rel (0) target = $region101
    $region100: #{tpu_custom_call.1} parent=1 // pred_region
      %190 = dma.done [#allocation13], 256
    $region101: #{tpu_custom_call.1} parent=1 // pred_fallthru
      _
    // Predicated region
    $region102: #{tpu_custom_call.1} parent=1 // pred_check
      _
    $region103: #{tpu_custom_call.1} parent=1 // pred_check_branch
      %192 = sbr.rel (0) target = $region105
    $region104: #{tpu_custom_call.1} parent=1 // pred_region
      %193 = dma.done [#allocation16], 256
    $region105: #{tpu_custom_call.1} parent=1 // pred_fallthru
      _
    // Predicated region
    $region106: #{tpu_custom_call.1} parent=1 // pred_check
      _
    $region107: #{tpu_custom_call.1} parent=1 // pred_check_branch
      %195 = sbr.rel (0) target = $region109
    $region108: #{tpu_custom_call.1} parent=1 // pred_region
      %196 = dma.done [#allocation16], 256
    $region109: #{tpu_custom_call.1} parent=1 // pred_fallthru
      _
    // Predicated region
    $region110: #{tpu_custom_call.1} parent=1 // pred_check
      _
    $region111: #{tpu_custom_call.1} parent=1 // pred_check_branch
      %198 = sbr.rel (0) target = $region113
    $region112: #{tpu_custom_call.1} parent=1 // pred_region
      %199 = dma.done [#allocation19], 16
    $region113: #{tpu_custom_call.1} parent=1 // pred_fallthru
      _
    // Predicated region
    $region114: #{tpu_custom_call.1} parent=1 // pred_check
      _
    $region115: #{tpu_custom_call.1} parent=1 // pred_check_branch
      %201 = sbr.rel (0) target = $region117
    $region116: #{tpu_custom_call.1} parent=1 // pred_region
      %202 = dma.done [#allocation19], 16
    $region117: #{tpu_custom_call.1} parent=1 // pred_fallthru
      _
    %v204 = vld [vmem:[#allocation3] sm:$0xff]
    %v205 = vld [vmem:[#allocation3 + $0x8] sm:$0xff]
    %v206 = vpack.c.bf16 %v205, %v204
    %v207 = vld [vmem:[#allocation6] sm:$0xff]
    %v208 = vld [vmem:[#allocation6 + $0x8] sm:$0xff]
    %v209 = vld [vmem:[#allocation6 + $0x10] sm:$0xff]
    %v210 = vpack.c.bf16 %v208, %v207
    %v211 = vpack.c.bf16 %v209, %v209
    %v212 = vld [vmem:[#allocation8] sm:$0xf]
    %v213 = vld [vmem:[#allocation8 + $0x4] sm:$0xf]
    %v214 = vld [vmem:[#allocation8 + $0x8] sm:$0xf]
    %v215 = vld [vmem:[#allocation8 + $0xc] sm:$0xf]
    %v216 = vld [vmem:[#allocation9] sm:$0xf]
    %v217 = vld [vmem:[#allocation9 + $0x4] sm:$0xf]
    %v218 = vld [vmem:[#allocation9 + $0x8] sm:$0xf]
    %v219 = vld [vmem:[#allocation9 + $0xc] sm:$0xf]
    %v220 = vld [vmem:[#allocation11] sm:$0xf]
    %v221 = vld [vmem:[#allocation11 + $0x4] sm:$0xf]
    %v222 = vld [vmem:[#allocation11 + $0x8] sm:$0xf]
    %v223 = vld [vmem:[#allocation11 + $0xc] sm:$0xf]
    %v224 = vld [vmem:[%s5] sm:$0xf]
    %v225 = vld [vmem:[%s5 + $0x4] sm:$0xf]
    %v226 = vld [vmem:[%s5 + $0x8] sm:$0xf]
    %v227 = vld [vmem:[%s5 + $0xc] sm:$0xf]
    %v228 = vld [vmem:[#allocation14] sm:$0xf]
    %v229 = vld [vmem:[#allocation14 + $0x4] sm:$0xf]
    %v230 = vld [vmem:[#allocation14 + $0x8] sm:$0xf]
    %v231 = vld [vmem:[#allocation14 + $0xc] sm:$0xf]
    %v232 = vld [vmem:[%s9] sm:$0xf]
    %v233 = vld [vmem:[%s9 + $0x4] sm:$0xf]
    %v234 = vld [vmem:[%s9 + $0x8] sm:$0xf]
    %v235 = vld [vmem:[%s9 + $0xc] sm:$0xf]
    %v236 = vld [vmem:[#allocation15] sm:$0xf]
    %v237 = vld [vmem:[#allocation15 + $0x4] sm:$0xf]
    %v238 = vld [vmem:[#allocation15 + $0x8] sm:$0xf]
    %v239 = vld [vmem:[#allocation15 + $0xc] sm:$0xf]
    %v240 = vld [vmem:[#allocation17] sm:$0xf]
    %v241 = vld [vmem:[#allocation17 + $0x4] sm:$0xf]
    %v242 = vld [vmem:[#allocation17 + $0x8] sm:$0xf]
    %v243 = vld [vmem:[#allocation17 + $0xc] sm:$0xf]
    %v244 = vld [vmem:[%s14] sm:$0xf]
    %v245 = vld [vmem:[%s14 + $0x4] sm:$0xf]
    %v246 = vld [vmem:[%s14 + $0x8] sm:$0xf]
    %v247 = vld [vmem:[%s14 + $0xc] sm:$0xf]
    %v248 = vld [vmem:[%s6] sm:$0x1]
    %v249 = vld [vmem:[#allocation12] sm:$0x1]
    %v250 = vld [vmem:[#allocation18] sm:$0x1]
    %v251 = vld [vmem:[#allocation20] sm:$0x1]
    %v252 = vld [vmem:[%s16] sm:$0x1]
    %v253 = vld [vmem:[%s17] sm:$0x1]
    %v254 = vld [vmem:[%s15] sm:$0x1]
    %v255 = vlaneseq
    %v256 = vshrl.u32 %v255, 7
    %v257 = vlaneseq
    %v258 = vand.u32 %v257, 127
    %vm259 = vcmp.le.s32.totalorder %v258, %v256
    %v260 = vsel %vm259, 0.0, -1e+30
    %v265 = vunpack.c.l.b16 %v212
    %v266 = vunpack.c.l.b16 %v213
    %v267 = vunpack.c.l.b16 %v214
    %v268 = vunpack.c.l.b16 %v215
    %v269 = vpack.c.b16 %v266, %v265
    %v270 = vpack.c.b16 %v268, %v267
    %vm273 = vcmask 261120
    %v275 = vsel %vm273, %v206, 0
    %277 = vmatprep.subr.bf16.mxu0 0
    %278 = vmatpush1.bf16.msra.mxu0 %v269
    %279 = vmatprep.subr.bf16.mxu0 0
    %280 = vmatpush1.bf16.msra.mxu0 %v270
    %281 = vmatprep.subr.bf16.mxu0 0
    %282 = vmatpush1.bf16.msra.mxu0 0
    %283 = vmatprep.subr.bf16.mxu0 0
    %284 = vmatpush1.bf16.msra.mxu0 0
    %285 = vmatprep.subr.bf16.mxu0 0
    %286 = vmatpush1.bf16.msra.mxu0 0
    %287 = vmatprep.subr.bf16.mxu0 0
    %288 = vmatpush1.bf16.msra.mxu0 0
    %289 = vmatprep.subr.bf16.mxu0 0
    %290 = vmatpush1.bf16.msra.mxu0 0
    %291 = vmatprep.subr.bf16.mxu0 0
    %292 = vmatpush1.bf16.msra.mxu0 0
    %293 = vmatprep.subr.bf16.mxu0 0
    %294 = vmatpush1.bf16.msra.mxu0 0
    %295 = vmatprep.subr.bf16.mxu0 0
    %296 = vmatpush1.bf16.msra.mxu0 0
    %297 = vmatprep.subr.bf16.mxu0 0
    %298 = vmatpush1.bf16.msra.mxu0 0
    %299 = vmatprep.subr.bf16.mxu0 0
    %300 = vmatpush1.bf16.msra.mxu0 0
    %301 = vmatprep.subr.bf16.mxu0 0
    %302 = vmatpush1.bf16.msra.mxu0 0
    %303 = vmatprep.subr.bf16.mxu0 0
    %304 = vmatpush1.bf16.msra.mxu0 0
    %305 = vmatprep.subr.bf16.mxu0 0
    %306 = vmatpush1.bf16.msra.mxu0 0
    %307 = vmatprep.subr.bf16.mxu0 0
    %308 = vmatpush1.bf16.msra.mxu0 0
    %309 = vmatprep.mubr.bf16.mxu0 0
    %310 = vmatmul.mubr.bf16.gmra.mrb[0].mxu0 %v275
    %v311 = vpop.f32.mrb[0].mxu0
    %v312 = vadd.f32 0.0, %v311
    %v313 = vpop.f32.mrb[0].mxu0
    %v314 = vpop.f32.mrb[0].mxu0
    %v315 = vadd.f32 0.0, %v314
    %v316 = vpop.f32.mrb[0].mxu0
    %317 = vdwg.mxu0
    %v318 = vpack.c.bf16 %v315, %v312
    %v323 = vunpack.c.l.b16 %v216
    %v324 = vunpack.c.l.b16 %v217
    %v325 = vunpack.c.l.b16 %v218
    %v326 = vunpack.c.l.b16 %v219
    %v327 = vpack.c.b16 %v324, %v323
    %v328 = vpack.c.b16 %v326, %v325
    %331 = vmatprep.subr.bf16.mxu0 0
    %332 = vmatpush1.bf16.msra.mxu0 %v327
    %333 = vmatprep.subr.bf16.mxu0 0
    %334 = vmatpush1.bf16.msra.mxu0 %v328
    %335 = vmatprep.subr.bf16.mxu0 0
    %336 = vmatpush1.bf16.msra.mxu0 0
    %337 = vmatprep.subr.bf16.mxu0 0
    %338 = vmatpush1.bf16.msra.mxu0 0
    %339 = vmatprep.subr.bf16.mxu0 0
    %340 = vmatpush1.bf16.msra.mxu0 0
    %341 = vmatprep.subr.bf16.mxu0 0
    %342 = vmatpush1.bf16.msra.mxu0 0
    %343 = vmatprep.subr.bf16.mxu0 0
    %344 = vmatpush1.bf16.msra.mxu0 0
    %345 = vmatprep.subr.bf16.mxu0 0
    %346 = vmatpush1.bf16.msra.mxu0 0
    %347 = vmatprep.subr.bf16.mxu0 0
    %348 = vmatpush1.bf16.msra.mxu0 0
    %349 = vmatprep.subr.bf16.mxu0 0
    %350 = vmatpush1.bf16.msra.mxu0 0
    %351 = vmatprep.subr.bf16.mxu0 0
    %352 = vmatpush1.bf16.msra.mxu0 0
    %353 = vmatprep.subr.bf16.mxu0 0
    %354 = vmatpush1.bf16.msra.mxu0 0
    %355 = vmatprep.subr.bf16.mxu0 0
    %356 = vmatpush1.bf16.msra.mxu0 0
    %357 = vmatprep.subr.bf16.mxu0 0
    %358 = vmatpush1.bf16.msra.mxu0 0
    %359 = vmatprep.subr.bf16.mxu0 0
    %360 = vmatpush1.bf16.msra.mxu0 0
    %361 = vmatprep.subr.bf16.mxu0 0
    %362 = vmatpush1.bf16.msra.mxu0 0
    %363 = vmatprep.mubr.bf16.mxu0 0
    %364 = vmatmul.mubr.bf16.gmra.mrb[0].mxu0 %v275
    %v365 = vpop.f32.mrb[0].mxu0
    %v366 = vadd.f32 0.0, %v365
    %v367 = vpop.f32.mrb[0].mxu0
    %v368 = vpop.f32.mrb[0].mxu0
    %v369 = vadd.f32 0.0, %v368
    %v370 = vpop.f32.mrb[0].mxu0
    %371 = vdwg.mxu0
    %v372 = vpack.c.bf16 %v369, %v366
    %v377 = vunpack.c.l.b16 %v220
    %v378 = vunpack.c.l.b16 %v221
    %v379 = vunpack.c.l.b16 %v222
    %v380 = vunpack.c.l.b16 %v223
    %v381 = vpack.c.b16 %v378, %v377
    %v382 = vpack.c.b16 %v380, %v379
    %385 = vmatprep.subr.bf16.mxu0 0
    %386 = vmatpush1.bf16.msra.mxu0 %v381
    %387 = vmatprep.subr.bf16.mxu0 0
    %388 = vmatpush1.bf16.msra.mxu0 %v382
    %389 = vmatprep.subr.bf16.mxu0 0
    %390 = vmatpush1.bf16.msra.mxu0 0
    %391 = vmatprep.subr.bf16.mxu0 0
    %392 = vmatpush1.bf16.msra.mxu0 0
    %393 = vmatprep.subr.bf16.mxu0 0
    %394 = vmatpush1.bf16.msra.mxu0 0
    %395 = vmatprep.subr.bf16.mxu0 0
    %396 = vmatpush1.bf16.msra.mxu0 0
    %397 = vmatprep.subr.bf16.mxu0 0
    %398 = vmatpush1.bf16.msra.mxu0 0
    %399 = vmatprep.subr.bf16.mxu0 0
    %400 = vmatpush1.bf16.msra.mxu0 0
    %401 = vmatprep.subr.bf16.mxu0 0
    %402 = vmatpush1.bf16.msra.mxu0 0
    %403 = vmatprep.subr.bf16.mxu0 0
    %404 = vmatpush1.bf16.msra.mxu0 0
    %405 = vmatprep.subr.bf16.mxu0 0
    %406 = vmatpush1.bf16.msra.mxu0 0
    %407 = vmatprep.subr.bf16.mxu0 0
    %408 = vmatpush1.bf16.msra.mxu0 0
    %409 = vmatprep.subr.bf16.mxu0 0
    %410 = vmatpush1.bf16.msra.mxu0 0
    %411 = vmatprep.subr.bf16.mxu0 0
    %412 = vmatpush1.bf16.msra.mxu0 0
    %413 = vmatprep.subr.bf16.mxu0 0
    %414 = vmatpush1.bf16.msra.mxu0 0
    %415 = vmatprep.subr.bf16.mxu0 0
    %416 = vmatpush1.bf16.msra.mxu0 0
    %417 = vmatprep.mubr.bf16.mxu0 0
    %418 = vmatmul.mubr.bf16.gmra.mrb[0].mxu0 %v275
    %v419 = vpop.f32.mrb[0].mxu0
    %v420 = vadd.f32 0.0, %v419
    %v421 = vpop.f32.mrb[0].mxu0
    %v422 = vpop.f32.mrb[0].mxu0
    %v423 = vadd.f32 0.0, %v422
    %v424 = vpop.f32.mrb[0].mxu0
    %425 = vdwg.mxu0
    %v426 = vpack.c.bf16 %v423, %v420
    %vm427 = vcmask 64512
    %v429 = vsel %vm427, %v318, 0
    %v432 = vsel %vm427, %v372, 0
    %434 = vmatprep.subr.bf16.mxu0 0
    %435 = vmatpush1.bf16.xpose.msra.mxu0 %v432
    %436 = vmatprep.subr.bf16.mxu0 0
    %437 = vmatpush1.bf16.xpose.msra.mxu0 0
    %438 = vmatprep.subr.bf16.mxu0 0
    %439 = vmatpush1.bf16.xpose.msra.mxu0 0
    %440 = vmatprep.subr.bf16.mxu0 0
    %441 = vmatpush1.bf16.xpose.msra.mxu0 0
    %442 = vmatprep.subr.bf16.mxu0 0
    %443 = vmatpush1.bf16.xpose.msra.mxu0 0
    %444 = vmatprep.subr.bf16.mxu0 0
    %445 = vmatpush1.bf16.xpose.msra.mxu0 0
    %446 = vmatprep.subr.bf16.mxu0 0
    %447 = vmatpush1.bf16.xpose.msra.mxu0 0
    %448 = vmatprep.subr.bf16.mxu0 0
    %449 = vmatpush1.bf16.xpose.msra.mxu0 0
    %450 = vmatprep.subr.bf16.mxu0 0
    %451 = vmatpush1.bf16.xpose.msra.mxu0 0
    %452 = vmatprep.subr.bf16.mxu0 0
    %453 = vmatpush1.bf16.xpose.msra.mxu0 0
    %454 = vmatprep.subr.bf16.mxu0 0
    %455 = vmatpush1.bf16.xpose.msra.mxu0 0
    %456 = vmatprep.subr.bf16.mxu0 0
    %457 = vmatpush1.bf16.xpose.msra.mxu0 0
    %458 = vmatprep.subr.bf16.mxu0 0
    %459 = vmatpush1.bf16.xpose.msra.mxu0 0
    %460 = vmatprep.subr.bf16.mxu0 0
    %461 = vmatpush1.bf16.xpose.msra.mxu0 0
    %462 = vmatprep.subr.bf16.mxu0 0
    %463 = vmatpush1.bf16.xpose.msra.mxu0 0
    %464 = vmatprep.subr.bf16.mxu0 0
    %465 = vmatpush1.bf16.xpose.msra.mxu0 0
    %466 = vmatprep.mubr.bf16.mxu0 0
    %467 = vmatmul.mubr.bf16.gmra.mrb[0].mxu0 %v429
    %v468 = vpop.f32.mrb[0].mxu0
    %v469 = vadd.f32 %v260, %v468
    %v470 = vpop.f32.mrb[0].mxu0
    %v471 = vpop.f32.mrb[0].mxu0
    %v472 = vpop.f32.mrb[0].mxu0
    %473 = vdwg.mxu0
    %v474 = vsel %vm427, %v469, -inf
    %475 = vmax.xlane.f32.xlu0 %v474
    %v476 = vpop.xlane.xlu0 %475
    %v477 = vsub.f32 %v469, %v476
    %v478 = vmul.f32 %v477, 1.442695
    %v479 = vpow.pop %v478
    %v480 = vsel %vm427, %v479, 0.0
    %481 = vadd.xlane.f32.xlu0 %v480
    %v482 = vpop.xlane.xlu0 %481
    %v483 = vrcp.pop %v482
    %v484 = vmul.f32 %v479, %v483
    %v485 = vpack.c.bf16 %v484, %v484
    %v487 = vsel %vm427, %v485, 0
    %vm489 = vcmask 1043456
    %v491 = vsel %vm489, %v426, 0
    %493 = vmatprep.subr.bf16.mxu0 0
    %494 = vmatpush1.bf16.msra.mxu0 %v491
    %495 = vmatprep.subr.bf16.mxu0 0
    %496 = vmatpush1.bf16.msra.mxu0 0
    %497 = vmatprep.subr.bf16.mxu0 0
    %498 = vmatpush1.bf16.msra.mxu0 0
    %499 = vmatprep.subr.bf16.mxu0 0
    %500 = vmatpush1.bf16.msra.mxu0 0
    %501 = vmatprep.subr.bf16.mxu0 0
    %502 = vmatpush1.bf16.msra.mxu0 0
    %503 = vmatprep.subr.bf16.mxu0 0
    %504 = vmatpush1.bf16.msra.mxu0 0
    %505 = vmatprep.subr.bf16.mxu0 0
    %506 = vmatpush1.bf16.msra.mxu0 0
    %507 = vmatprep.subr.bf16.mxu0 0
    %508 = vmatpush1.bf16.msra.mxu0 0
    %509 = vmatprep.subr.bf16.mxu0 0
    %510 = vmatpush1.bf16.msra.mxu0 0
    %511 = vmatprep.subr.bf16.mxu0 0
    %512 = vmatpush1.bf16.msra.mxu0 0
    %513 = vmatprep.subr.bf16.mxu0 0
    %514 = vmatpush1.bf16.msra.mxu0 0
    %515 = vmatprep.subr.bf16.mxu0 0
    %516 = vmatpush1.bf16.msra.mxu0 0
    %517 = vmatprep.subr.bf16.mxu0 0
    %518 = vmatpush1.bf16.msra.mxu0 0
    %519 = vmatprep.subr.bf16.mxu0 0
    %520 = vmatpush1.bf16.msra.mxu0 0
    %521 = vmatprep.subr.bf16.mxu0 0
    %522 = vmatpush1.bf16.msra.mxu0 0
    %523 = vmatprep.subr.bf16.mxu0 0
    %524 = vmatpush1.bf16.msra.mxu0 0
    %525 = vmatprep.mubr.bf16.mxu0 0
    %526 = vmatmul.mubr.bf16.gmra.mrb[0].mxu0 %v487
    %v527 = vpop.f32.mrb[0].mxu0
    %v528 = vadd.f32 0.0, %v527
    %v529 = vpop.f32.mrb[0].mxu0
    %v530 = vpop.f32.mrb[0].mxu0
    %v531 = vpop.f32.mrb[0].mxu0
    %532 = vdwg.mxu0
    %533 = vst.msk [vmem:[#allocation2] sm:$0xff] %vm427, %v528
    %535 = vrot.lane.b32.xlu0 %v318, 120
    %v536 = vpop.permute.xlu0 %535
    %538 = vrot.lane.b32.xlu0 %v372, 120
    %v539 = vpop.permute.xlu0 %538
    %v541 = vsel %vm427, %v536, 0
    %v544 = vsel %vm427, %v539, 0
    %546 = vmatprep.subr.bf16.mxu0 0
    %547 = vmatpush1.bf16.xpose.msra.mxu0 %v544
    %548 = vmatprep.subr.bf16.mxu0 0
    %549 = vmatpush1.bf16.xpose.msra.mxu0 0
    %550 = vmatprep.subr.bf16.mxu0 0
    %551 = vmatpush1.bf16.xpose.msra.mxu0 0
    %552 = vmatprep.subr.bf16.mxu0 0
    %553 = vmatpush1.bf16.xpose.msra.mxu0 0
    %554 = vmatprep.subr.bf16.mxu0 0
    %555 = vmatpush1.bf16.xpose.msra.mxu0 0
    %556 = vmatprep.subr.bf16.mxu0 0
    %557 = vmatpush1.bf16.xpose.msra.mxu0 0
    %558 = vmatprep.subr.bf16.mxu0 0
    %559 = vmatpush1.bf16.xpose.msra.mxu0 0
    %560 = vmatprep.subr.bf16.mxu0 0
    %561 = vmatpush1.bf16.xpose.msra.mxu0 0
    %562 = vmatprep.subr.bf16.mxu0 0
    %563 = vmatpush1.bf16.xpose.msra.mxu0 0
    %564 = vmatprep.subr.bf16.mxu0 0
    %565 = vmatpush1.bf16.xpose.msra.mxu0 0
    %566 = vmatprep.subr.bf16.mxu0 0
    %567 = vmatpush1.bf16.xpose.msra.mxu0 0
    %568 = vmatprep.subr.bf16.mxu0 0
    %569 = vmatpush1.bf16.xpose.msra.mxu0 0
    %570 = vmatprep.subr.bf16.mxu0 0
    %571 = vmatpush1.bf16.xpose.msra.mxu0 0
    %572 = vmatprep.subr.bf16.mxu0 0
    %573 = vmatpush1.bf16.xpose.msra.mxu0 0
    %574 = vmatprep.subr.bf16.mxu0 0
    %575 = vmatpush1.bf16.xpose.msra.mxu0 0
    %576 = vmatprep.subr.bf16.mxu0 0
    %577 = vmatpush1.bf16.xpose.msra.mxu0 0
    %578 = vmatprep.mubr.bf16.mxu0 0
    %579 = vmatmul.mubr.bf16.gmra.mrb[0].mxu0 %v541
    %v580 = vpop.f32.mrb[0].mxu0
    %v581 = vadd.f32 %v260, %v580
    %v582 = vpop.f32.mrb[0].mxu0
    %v583 = vpop.f32.mrb[0].mxu0
    %v584 = vpop.f32.mrb[0].mxu0
    %585 = vdwg.mxu0
    %v586 = vsel %vm427, %v581, -inf
    %587 = vmax.xlane.f32.xlu0 %v586
    %v588 = vpop.xlane.xlu0 %587
    %v589 = vsub.f32 %v581, %v588
    %v590 = vmul.f32 %v589, 1.442695
    %v591 = vpow.pop %v590
    %v592 = vsel %vm427, %v591, 0.0
    %593 = vadd.xlane.f32.xlu0 %v592
    %v594 = vpop.xlane.xlu0 %593
    %v595 = vrcp.pop %v594
    %v596 = vmul.f32 %v591, %v595
    %v597 = vpack.c.bf16 %v596, %v596
    %599 = vrot.lane.b32.xlu0 %v426, 120
    %v600 = vpop.permute.xlu0 %599
    %v602 = vsel %vm427, %v597, 0
    %v605 = vsel %vm489, %v600, 0
    %607 = vmatprep.subr.bf16.mxu0 0
    %608 = vmatpush1.bf16.msra.mxu0 %v605
    %609 = vmatprep.subr.bf16.mxu0 0
    %610 = vmatpush1.bf16.msra.mxu0 0
    %611 = vmatprep.subr.bf16.mxu0 0
    %612 = vmatpush1.bf16.msra.mxu0 0
    %613 = vmatprep.subr.bf16.mxu0 0
    %614 = vmatpush1.bf16.msra.mxu0 0
    %615 = vmatprep.subr.bf16.mxu0 0
    %616 = vmatpush1.bf16.msra.mxu0 0
    %617 = vmatprep.subr.bf16.mxu0 0
    %618 = vmatpush1.bf16.msra.mxu0 0
    %619 = vmatprep.subr.bf16.mxu0 0
    %620 = vmatpush1.bf16.msra.mxu0 0
    %621 = vmatprep.subr.bf16.mxu0 0
    %622 = vmatpush1.bf16.msra.mxu0 0
    %623 = vmatprep.subr.bf16.mxu0 0
    %624 = vmatpush1.bf16.msra.mxu0 0
    %625 = vmatprep.subr.bf16.mxu0 0
    %626 = vmatpush1.bf16.msra.mxu0 0
    %627 = vmatprep.subr.bf16.mxu0 0
    %628 = vmatpush1.bf16.msra.mxu0 0
    %629 = vmatprep.subr.bf16.mxu0 0
    %630 = vmatpush1.bf16.msra.mxu0 0
    %631 = vmatprep.subr.bf16.mxu0 0
    %632 = vmatpush1.bf16.msra.mxu0 0
    %633 = vmatprep.subr.bf16.mxu0 0
    %634 = vmatpush1.bf16.msra.mxu0 0
    %635 = vmatprep.subr.bf16.mxu0 0
    %636 = vmatpush1.bf16.msra.mxu0 0
    %637 = vmatprep.subr.bf16.mxu0 0
    %638 = vmatpush1.bf16.msra.mxu0 0
    %639 = vmatprep.mubr.bf16.mxu0 0
    %640 = vmatmul.mubr.bf16.gmra.mrb[0].mxu0 %v602
    %v641 = vpop.f32.mrb[0].mxu0
    %v642 = vadd.f32 0.0, %v641
    %v643 = vpop.f32.mrb[0].mxu0
    %v644 = vpop.f32.mrb[0].mxu0
    %v645 = vpop.f32.mrb[0].mxu0
    %646 = vdwg.mxu0
    %648 = vrot.lane.b32.xlu0 %v642, 8
    %v649 = vpop.permute.xlu0 %648
    %vm651 = vcmask 130112
    %652 = vst.msk [vmem:[#allocation2] sm:$0xff] %vm651, %v649
    %653 = vrot.lane.b32.xlu0 %v318, 112
    %v654 = vpop.permute.xlu0 %653
    %655 = vrot.lane.b32.xlu0 %v372, 112
    %v656 = vpop.permute.xlu0 %655
    %v658 = vsel %vm427, %v654, 0
    %v661 = vsel %vm427, %v656, 0
    %663 = vmatprep.subr.bf16.mxu0 0
    %664 = vmatpush1.bf16.xpose.msra.mxu0 %v661
    %665 = vmatprep.subr.bf16.mxu0 0
    %666 = vmatpush1.bf16.xpose.msra.mxu0 0
    %667 = vmatprep.subr.bf16.mxu0 0
    %668 = vmatpush1.bf16.xpose.msra.mxu0 0
    %669 = vmatprep.subr.bf16.mxu0 0
    %670 = vmatpush1.bf16.xpose.msra.mxu0 0
    %671 = vmatprep.subr.bf16.mxu0 0
    %672 = vmatpush1.bf16.xpose.msra.mxu0 0
    %673 = vmatprep.subr.bf16.mxu0 0
    %674 = vmatpush1.bf16.xpose.msra.mxu0 0
    %675 = vmatprep.subr.bf16.mxu0 0
    %676 = vmatpush1.bf16.xpose.msra.mxu0 0
    %677 = vmatprep.subr.bf16.mxu0 0
    %678 = vmatpush1.bf16.xpose.msra.mxu0 0
    %679 = vmatprep.subr.bf16.mxu0 0
    %680 = vmatpush1.bf16.xpose.msra.mxu0 0
    %681 = vmatprep.subr.bf16.mxu0 0
    %682 = vmatpush1.bf16.xpose.msra.mxu0 0
    %683 = vmatprep.subr.bf16.mxu0 0
    %684 = vmatpush1.bf16.xpose.msra.mxu0 0
    %685 = vmatprep.subr.bf16.mxu0 0
    %686 = vmatpush1.bf16.xpose.msra.mxu0 0
    %687 = vmatprep.subr.bf16.mxu0 0
    %688 = vmatpush1.bf16.xpose.msra.mxu0 0
    %689 = vmatprep.subr.bf16.mxu0 0
    %690 = vmatpush1.bf16.xpose.msra.mxu0 0
    %691 = vmatprep.subr.bf16.mxu0 0
    %692 = vmatpush1.bf16.xpose.msra.mxu0 0
    %693 = vmatprep.subr.bf16.mxu0 0
    %694 = vmatpush1.bf16.xpose.msra.mxu0 0
    %695 = vmatprep.mubr.bf16.mxu0 0
    %696 = vmatmul.mubr.bf16.gmra.mrb[0].mxu0 %v658
    %v697 = vpop.f32.mrb[0].mxu0
    %v698 = vadd.f32 %v260, %v697
    %v699 = vpop.f32.mrb[0].mxu0
    %v700 = vpop.f32.mrb[0].mxu0
    %v701 = vpop.f32.mrb[0].mxu0
    %702 = vdwg.mxu0
    %v703 = vsel %vm427, %v698, -inf
    %704 = vmax.xlane.f32.xlu0 %v703
    %v705 = vpop.xlane.xlu0 %704
    %v706 = vsub.f32 %v698, %v705
    %v707 = vmul.f32 %v706, 1.442695
    %v708 = vpow.pop %v707
    %v709 = vsel %vm427, %v708, 0.0
    %710 = vadd.xlane.f32.xlu0 %v709
    %v711 = vpop.xlane.xlu0 %710
    %v712 = vrcp.pop %v711
    %v713 = vmul.f32 %v708, %v712
    %v714 = vpack.c.bf16 %v713, %v713
    %715 = vrot.lane.b32.xlu0 %v426, 112
    %v716 = vpop.permute.xlu0 %715
    %v718 = vsel %vm427, %v714, 0
    %v721 = vsel %vm489, %v716, 0
    %723 = vmatprep.subr.bf16.mxu0 0
    %724 = vmatpush1.bf16.msra.mxu0 %v721
    %725 = vmatprep.subr.bf16.mxu0 0
    %726 = vmatpush1.bf16.msra.mxu0 0
    %727 = vmatprep.subr.bf16.mxu0 0
    %728 = vmatpush1.bf16.msra.mxu0 0
    %729 = vmatprep.subr.bf16.mxu0 0
    %730 = vmatpush1.bf16.msra.mxu0 0
    %731 = vmatprep.subr.bf16.mxu0 0
    %732 = vmatpush1.bf16.msra.mxu0 0
    %733 = vmatprep.subr.bf16.mxu0 0
    %734 = vmatpush1.bf16.msra.mxu0 0
    %735 = vmatprep.subr.bf16.mxu0 0
    %736 = vmatpush1.bf16.msra.mxu0 0
    %737 = vmatprep.subr.bf16.mxu0 0
    %738 = vmatpush1.bf16.msra.mxu0 0
    %739 = vmatprep.subr.bf16.mxu0 0
    %740 = vmatpush1.bf16.msra.mxu0 0
    %741 = vmatprep.subr.bf16.mxu0 0
    %742 = vmatpush1.bf16.msra.mxu0 0
    %743 = vmatprep.subr.bf16.mxu0 0
    %744 = vmatpush1.bf16.msra.mxu0 0
    %745 = vmatprep.subr.bf16.mxu0 0
    %746 = vmatpush1.bf16.msra.mxu0 0
    %747 = vmatprep.subr.bf16.mxu0 0
    %748 = vmatpush1.bf16.msra.mxu0 0
    %749 = vmatprep.subr.bf16.mxu0 0
    %750 = vmatpush1.bf16.msra.mxu0 0
    %751 = vmatprep.subr.bf16.mxu0 0
    %752 = vmatpush1.bf16.msra.mxu0 0
    %753 = vmatprep.subr.bf16.mxu0 0
    %754 = vmatpush1.bf16.msra.mxu0 0
    %755 = vmatprep.mubr.bf16.mxu0 0
    %756 = vmatmul.mubr.bf16.gmra.mrb[0].mxu0 %v718
    %v757 = vpop.f32.mrb[0].mxu0
    %v758 = vadd.f32 0.0, %v757
    %v759 = vpop.f32.mrb[0].mxu0
    %v760 = vpop.f32.mrb[0].mxu0
    %v761 = vpop.f32.mrb[0].mxu0
    %762 = vdwg.mxu0
    %764 = vrot.lane.b32.xlu0 %v758, 16
    %v765 = vpop.permute.xlu0 %764
    %vm767 = vcmask 195712
    %768 = vst.msk [vmem:[#allocation2] sm:$0xff] %vm767, %v765
    %769 = vrot.lane.b32.xlu0 %v318, 104
    %v770 = vpop.permute.xlu0 %769
    %771 = vrot.lane.b32.xlu0 %v372, 104
    %v772 = vpop.permute.xlu0 %771
    %v774 = vsel %vm427, %v770, 0
    %v777 = vsel %vm427, %v772, 0
    %779 = vmatprep.subr.bf16.mxu0 0
    %780 = vmatpush1.bf16.xpose.msra.mxu0 %v777
    %781 = vmatprep.subr.bf16.mxu0 0
    %782 = vmatpush1.bf16.xpose.msra.mxu0 0
    %783 = vmatprep.subr.bf16.mxu0 0
    %784 = vmatpush1.bf16.xpose.msra.mxu0 0
    %785 = vmatprep.subr.bf16.mxu0 0
    %786 = vmatpush1.bf16.xpose.msra.mxu0 0
    %787 = vmatprep.subr.bf16.mxu0 0
    %788 = vmatpush1.bf16.xpose.msra.mxu0 0
    %789 = vmatprep.subr.bf16.mxu0 0
    %790 = vmatpush1.bf16.xpose.msra.mxu0 0
    %791 = vmatprep.subr.bf16.mxu0 0
    %792 = vmatpush1.bf16.xpose.msra.mxu0 0
    %793 = vmatprep.subr.bf16.mxu0 0
    %794 = vmatpush1.bf16.xpose.msra.mxu0 0
    %795 = vmatprep.subr.bf16.mxu0 0
    %796 = vmatpush1.bf16.xpose.msra.mxu0 0
    %797 = vmatprep.subr.bf16.mxu0 0
    %798 = vmatpush1.bf16.xpose.msra.mxu0 0
    %799 = vmatprep.subr.bf16.mxu0 0
    %800 = vmatpush1.bf16.xpose.msra.mxu0 0
    %801 = vmatprep.subr.bf16.mxu0 0
    %802 = vmatpush1.bf16.xpose.msra.mxu0 0
    %803 = vmatprep.subr.bf16.mxu0 0
    %804 = vmatpush1.bf16.xpose.msra.mxu0 0
    %805 = vmatprep.subr.bf16.mxu0 0
    %806 = vmatpush1.bf16.xpose.msra.mxu0 0
    %807 = vmatprep.subr.bf16.mxu0 0
    %808 = vmatpush1.bf16.xpose.msra.mxu0 0
    %809 = vmatprep.subr.bf16.mxu0 0
    %810 = vmatpush1.bf16.xpose.msra.mxu0 0
    %811 = vmatprep.mubr.bf16.mxu0 0
    %812 = vmatmul.mubr.bf16.gmra.mrb[0].mxu0 %v774
    %v813 = vpop.f32.mrb[0].mxu0
    %v814 = vadd.f32 %v260, %v813
    %v815 = vpop.f32.mrb[0].mxu0
    %v816 = vpop.f32.mrb[0].mxu0
    %v817 = vpop.f32.mrb[0].mxu0
    %818 = vdwg.mxu0
    %v819 = vsel %vm427, %v814, -inf
    %820 = vmax.xlane.f32.xlu0 %v819
    %v821 = vpop.xlane.xlu0 %820
    %v822 = vsub.f32 %v814, %v821
    %v823 = vmul.f32 %v822, 1.442695
    %v824 = vpow.pop %v823
    %v825 = vsel %vm427, %v824, 0.0
    %826 = vadd.xlane.f32.xlu0 %v825
    %v827 = vpop.xlane.xlu0 %826
    %v828 = vrcp.pop %v827
    %v829 = vmul.f32 %v824, %v828
    %v830 = vpack.c.bf16 %v829, %v829
    %831 = vrot.lane.b32.xlu0 %v426, 104
    %v832 = vpop.permute.xlu0 %831
    %v834 = vsel %vm427, %v830, 0
    %v837 = vsel %vm489, %v832, 0
    %839 = vmatprep.subr.bf16.mxu0 0
    %840 = vmatpush1.bf16.msra.mxu0 %v837
    %841 = vmatprep.subr.bf16.mxu0 0
    %842 = vmatpush1.bf16.msra.mxu0 0
    %843 = vmatprep.subr.bf16.mxu0 0
    %844 = vmatpush1.bf16.msra.mxu0 0
    %845 = vmatprep.subr.bf16.mxu0 0
    %846 = vmatpush1.bf16.msra.mxu0 0
    %847 = vmatprep.subr.bf16.mxu0 0
    %848 = vmatpush1.bf16.msra.mxu0 0
    %849 = vmatprep.subr.bf16.mxu0 0
    %850 = vmatpush1.bf16.msra.mxu0 0
    %851 = vmatprep.subr.bf16.mxu0 0
    %852 = vmatpush1.bf16.msra.mxu0 0
    %853 = vmatprep.subr.bf16.mxu0 0
    %854 = vmatpush1.bf16.msra.mxu0 0
    %855 = vmatprep.subr.bf16.mxu0 0
    %856 = vmatpush1.bf16.msra.mxu0 0
    %857 = vmatprep.subr.bf16.mxu0 0
    %858 = vmatpush1.bf16.msra.mxu0 0
    %859 = vmatprep.subr.bf16.mxu0 0
    %860 = vmatpush1.bf16.msra.mxu0 0
    %861 = vmatprep.subr.bf16.mxu0 0
    %862 = vmatpush1.bf16.msra.mxu0 0
    %863 = vmatprep.subr.bf16.mxu0 0
    %864 = vmatpush1.bf16.msra.mxu0 0
    %865 = vmatprep.subr.bf16.mxu0 0
    %866 = vmatpush1.bf16.msra.mxu0 0
    %867 = vmatprep.subr.bf16.mxu0 0
    %868 = vmatpush1.bf16.msra.mxu0 0
    %869 = vmatprep.subr.bf16.mxu0 0
    %870 = vmatpush1.bf16.msra.mxu0 0
    %871 = vmatprep.mubr.bf16.mxu0 0
    %872 = vmatmul.mubr.bf16.gmra.mrb[0].mxu0 %v834
    %v873 = vpop.f32.mrb[0].mxu0
    %v874 = vadd.f32 0.0, %v873
    %v875 = vpop.f32.mrb[0].mxu0
    %v876 = vpop.f32.mrb[0].mxu0
    %v877 = vpop.f32.mrb[0].mxu0
    %878 = vdwg.mxu0
    %880 = vrot.lane.b32.xlu0 %v874, 24
    %v881 = vpop.permute.xlu0 %880
    %vm883 = vcmask 261312
    %884 = vst.msk [vmem:[#allocation2] sm:$0xff] %vm883, %v881
    %v885 = vrot.slane %v318, 4
    %v886 = vrot.slane %v372, 4
    %v888 = vsel %vm427, %v885, 0
    %v891 = vsel %vm427, %v886, 0
    %893 = vmatprep.subr.bf16.mxu0 0
    %894 = vmatpush1.bf16.xpose.msra.mxu0 %v891
    %895 = vmatprep.subr.bf16.mxu0 0
    %896 = vmatpush1.bf16.xpose.msra.mxu0 0
    %897 = vmatprep.subr.bf16.mxu0 0
    %898 = vmatpush1.bf16.xpose.msra.mxu0 0
    %899 = vmatprep.subr.bf16.mxu0 0
    %900 = vmatpush1.bf16.xpose.msra.mxu0 0
    %901 = vmatprep.subr.bf16.mxu0 0
    %902 = vmatpush1.bf16.xpose.msra.mxu0 0
    %903 = vmatprep.subr.bf16.mxu0 0
    %904 = vmatpush1.bf16.xpose.msra.mxu0 0
    %905 = vmatprep.subr.bf16.mxu0 0
    %906 = vmatpush1.bf16.xpose.msra.mxu0 0
    %907 = vmatprep.subr.bf16.mxu0 0
    %908 = vmatpush1.bf16.xpose.msra.mxu0 0
    %909 = vmatprep.subr.bf16.mxu0 0
    %910 = vmatpush1.bf16.xpose.msra.mxu0 0
    %911 = vmatprep.subr.bf16.mxu0 0
    %912 = vmatpush1.bf16.xpose.msra.mxu0 0
    %913 = vmatprep.subr.bf16.mxu0 0
    %914 = vmatpush1.bf16.xpose.msra.mxu0 0
    %915 = vmatprep.subr.bf16.mxu0 0
    %916 = vmatpush1.bf16.xpose.msra.mxu0 0
    %917 = vmatprep.subr.bf16.mxu0 0
    %918 = vmatpush1.bf16.xpose.msra.mxu0 0
    %919 = vmatprep.subr.bf16.mxu0 0
    %920 = vmatpush1.bf16.xpose.msra.mxu0 0
    %921 = vmatprep.subr.bf16.mxu0 0
    %922 = vmatpush1.bf16.xpose.msra.mxu0 0
    %923 = vmatprep.subr.bf16.mxu0 0
    %924 = vmatpush1.bf16.xpose.msra.mxu0 0
    %925 = vmatprep.mubr.bf16.mxu0 0
    %926 = vmatmul.mubr.bf16.gmra.mrb[0].mxu0 %v888
    %v927 = vpop.f32.mrb[0].mxu0
    %v928 = vadd.f32 %v260, %v927
    %v929 = vpop.f32.mrb[0].mxu0
    %v930 = vpop.f32.mrb[0].mxu0
    %v931 = vpop.f32.mrb[0].mxu0
    %932 = vdwg.mxu0
    %v933 = vsel %vm427, %v928, -inf
    %934 = vmax.xlane.f32.xlu0 %v933
    %v935 = vpop.xlane.xlu0 %934
    %v936 = vsub.f32 %v928, %v935
    %v937 = vmul.f32 %v936, 1.442695
    %v938 = vpow.pop %v937
    %v939 = vsel %vm427, %v938, 0.0
    %940 = vadd.xlane.f32.xlu0 %v939
    %v941 = vpop.xlane.xlu0 %940
    %v942 = vrcp.pop %v941
    %v943 = vmul.f32 %v938, %v942
    %v944 = vpack.c.bf16 %v943, %v943
    %v945 = vrot.slane %v426, 4
    %v947 = vsel %vm427, %v944, 0
    %v950 = vsel %vm489, %v945, 0
    %952 = vmatprep.subr.bf16.mxu0 0
    %953 = vmatpush1.bf16.msra.mxu0 %v950
    %954 = vmatprep.subr.bf16.mxu0 0
    %955 = vmatpush1.bf16.msra.mxu0 0
    %956 = vmatprep.subr.bf16.mxu0 0
    %957 = vmatpush1.bf16.msra.mxu0 0
    %958 = vmatprep.subr.bf16.mxu0 0
    %959 = vmatpush1.bf16.msra.mxu0 0
    %960 = vmatprep.subr.bf16.mxu0 0
    %961 = vmatpush1.bf16.msra.mxu0 0
    %962 = vmatprep.subr.bf16.mxu0 0
    %963 = vmatpush1.bf16.msra.mxu0 0
    %964 = vmatprep.subr.bf16.mxu0 0
    %965 = vmatpush1.bf16.msra.mxu0 0
    %966 = vmatprep.subr.bf16.mxu0 0
    %967 = vmatpush1.bf16.msra.mxu0 0
    %968 = vmatprep.subr.bf16.mxu0 0
    %969 = vmatpush1.bf16.msra.mxu0 0
    %970 = vmatprep.subr.bf16.mxu0 0
    %971 = vmatpush1.bf16.msra.mxu0 0
    %972 = vmatprep.subr.bf16.mxu0 0
    %973 = vmatpush1.bf16.msra.mxu0 0
    %974 = vmatprep.subr.bf16.mxu0 0
    %975 = vmatpush1.bf16.msra.mxu0 0
    %976 = vmatprep.subr.bf16.mxu0 0
    %977 = vmatpush1.bf16.msra.mxu0 0
    %978 = vmatprep.subr.bf16.mxu0 0
    %979 = vmatpush1.bf16.msra.mxu0 0
    %980 = vmatprep.subr.bf16.mxu0 0
    %981 = vmatpush1.bf16.msra.mxu0 0
    %982 = vmatprep.subr.bf16.mxu0 0
    %983 = vmatpush1.bf16.msra.mxu0 0
    %984 = vmatprep.mubr.bf16.mxu0 0
    %985 = vmatmul.mubr.bf16.gmra.mrb[0].mxu0 %v947
    %v986 = vpop.f32.mrb[0].mxu0
    %v987 = vadd.f32 0.0, %v986
    %v988 = vpop.f32.mrb[0].mxu0
    %v989 = vpop.f32.mrb[0].mxu0
    %v990 = vpop.f32.mrb[0].mxu0
    %991 = vdwg.mxu0
    %992 = vst.msk [vmem:[#allocation2 + $0x8] sm:$0xff] %vm427, %v987
    %993 = vrot.lane.b32.xlu0 %v885, 120
    %v994 = vpop.permute.xlu0 %993
    %995 = vrot.lane.b32.xlu0 %v886, 120
    %v996 = vpop.permute.xlu0 %995
    %v998 = vsel %vm427, %v994, 0
    %v1001 = vsel %vm427, %v996, 0
    %1003 = vmatprep.subr.bf16.mxu0 0
    %1004 = vmatpush1.bf16.xpose.msra.mxu0 %v1001
    %1005 = vmatprep.subr.bf16.mxu0 0
    %1006 = vmatpush1.bf16.xpose.msra.mxu0 0
    %1007 = vmatprep.subr.bf16.mxu0 0
    %1008 = vmatpush1.bf16.xpose.msra.mxu0 0
    %1009 = vmatprep.subr.bf16.mxu0 0
    %1010 = vmatpush1.bf16.xpose.msra.mxu0 0
    %1011 = vmatprep.subr.bf16.mxu0 0
    %1012 = vmatpush1.bf16.xpose.msra.mxu0 0
    %1013 = vmatprep.subr.bf16.mxu0 0
    %1014 = vmatpush1.bf16.xpose.msra.mxu0 0
    %1015 = vmatprep.subr.bf16.mxu0 0
    %1016 = vmatpush1.bf16.xpose.msra.mxu0 0
    %1017 = vmatprep.subr.bf16.mxu0 0
    %1018 = vmatpush1.bf16.xpose.msra.mxu0 0
    %1019 = vmatprep.subr.bf16.mxu0 0
    %1020 = vmatpush1.bf16.xpose.msra.mxu0 0
    %1021 = vmatprep.subr.bf16.mxu0 0
    %1022 = vmatpush1.bf16.xpose.msra.mxu0 0
    %1023 = vmatprep.subr.bf16.mxu0 0
    %1024 = vmatpush1.bf16.xpose.msra.mxu0 0
    %1025 = vmatprep.subr.bf16.mxu0 0
    %1026 = vmatpush1.bf16.xpose.msra.mxu0 0
    %1027 = vmatprep.subr.bf16.mxu0 0
    %1028 = vmatpush1.bf16.xpose.msra.mxu0 0
    %1029 = vmatprep.subr.bf16.mxu0 0
    %1030 = vmatpush1.bf16.xpose.msra.mxu0 0
    %1031 = vmatprep.subr.bf16.mxu0 0
    %1032 = vmatpush1.bf16.xpose.msra.mxu0 0
    %1033 = vmatprep.subr.bf16.mxu0 0
    %1034 = vmatpush1.bf16.xpose.msra.mxu0 0
    %1035 = vmatprep.mubr.bf16.mxu0 0
    %1036 = vmatmul.mubr.bf16.gmra.mrb[0].mxu0 %v998
    %v1037 = vpop.f32.mrb[0].mxu0
    %v1038 = vadd.f32 %v260, %v1037
    %v1039 = vpop.f32.mrb[0].mxu0
    %v1040 = vpop.f32.mrb[0].mxu0
    %v1041 = vpop.f32.mrb[0].mxu0
    %1042 = vdwg.mxu0
    %v1043 = vsel %vm427, %v1038, -inf
    %1044 = vmax.xlane.f32.xlu0 %v1043
    %v1045 = vpop.xlane.xlu0 %1044
    %v1046 = vsub.f32 %v1038, %v1045
    %v1047 = vmul.f32 %v1046, 1.442695
    %v1048 = vpow.pop %v1047
    %v1049 = vsel %vm427, %v1048, 0.0
    %1050 = vadd.xlane.f32.xlu0 %v1049
    %v1051 = vpop.xlane.xlu0 %1050
    %v1052 = vrcp.pop %v1051
    %v1053 = vmul.f32 %v1048, %v1052
    %v1054 = vpack.c.bf16 %v1053, %v1053
    %1055 = vrot.lane.b32.xlu0 %v945, 120
    %v1056 = vpop.permute.xlu0 %1055
    %v1058 = vsel %vm427, %v1054, 0
    %v1061 = vsel %vm489, %v1056, 0
    %1063 = vmatprep.subr.bf16.mxu0 0
    %1064 = vmatpush1.bf16.msra.mxu0 %v1061
    %1065 = vmatprep.subr.bf16.mxu0 0
    %1066 = vmatpush1.bf16.msra.mxu0 0
    %1067 = vmatprep.subr.bf16.mxu0 0
    %1068 = vmatpush1.bf16.msra.mxu0 0
    %1069 = vmatprep.subr.bf16.mxu0 0
    %1070 = vmatpush1.bf16.msra.mxu0 0
    %1071 = vmatprep.subr.bf16.mxu0 0
    %1072 = vmatpush1.bf16.msra.mxu0 0
    %1073 = vmatprep.subr.bf16.mxu0 0
    %1074 = vmatpush1.bf16.msra.mxu0 0
    %1075 = vmatprep.subr.bf16.mxu0 0
    %1076 = vmatpush1.bf16.msra.mxu0 0
    %1077 = vmatprep.subr.bf16.mxu0 0
    %1078 = vmatpush1.bf16.msra.mxu0 0
    %1079 = vmatprep.subr.bf16.mxu0 0
    %1080 = vmatpush1.bf16.msra.mxu0 0
    %1081 = vmatprep.subr.bf16.mxu0 0
    %1082 = vmatpush1.bf16.msra.mxu0 0
    %1083 = vmatprep.subr.bf16.mxu0 0
    %1084 = vmatpush1.bf16.msra.mxu0 0
    %1085 = vmatprep.subr.bf16.mxu0 0
    %1086 = vmatpush1.bf16.msra.mxu0 0
    %1087 = vmatprep.subr.bf16.mxu0 0
    %1088 = vmatpush1.bf16.msra.mxu0 0
    %1089 = vmatprep.subr.bf16.mxu0 0
    %1090 = vmatpush1.bf16.msra.mxu0 0
    %1091 = vmatprep.subr.bf16.mxu0 0
    %1092 = vmatpush1.bf16.msra.mxu0 0
    %1093 = vmatprep.subr.bf16.mxu0 0
    %1094 = vmatpush1.bf16.msra.mxu0 0
    %1095 = vmatprep.mubr.bf16.mxu0 0
    %1096 = vmatmul.mubr.bf16.gmra.mrb[0].mxu0 %v1058
    %v1097 = vpop.f32.mrb[0].mxu0
    %v1098 = vadd.f32 0.0, %v1097
    %v1099 = vpop.f32.mrb[0].mxu0
    %v1100 = vpop.f32.mrb[0].mxu0
    %v1101 = vpop.f32.mrb[0].mxu0
    %1102 = vdwg.mxu0
    %1104 = vrot.lane.b32.xlu0 %v1098, 8
    %v1105 = vpop.permute.xlu0 %1104
    %1107 = vst.msk [vmem:[#allocation2 + $0x8] sm:$0xff] %vm651, %v1105
    %1108 = vrot.lane.b32.xlu0 %v885, 112
    %v1109 = vpop.permute.xlu0 %1108
    %1110 = vrot.lane.b32.xlu0 %v886, 112
    %v1111 = vpop.permute.xlu0 %1110
    %v1113 = vsel %vm427, %v1109, 0
    %v1116 = vsel %vm427, %v1111, 0
    %1118 = vmatprep.subr.bf16.mxu0 0
    %1119 = vmatpush1.bf16.xpose.msra.mxu0 %v1116
    %1120 = vmatprep.subr.bf16.mxu0 0
    %1121 = vmatpush1.bf16.xpose.msra.mxu0 0
    %1122 = vmatprep.subr.bf16.mxu0 0
    %1123 = vmatpush1.bf16.xpose.msra.mxu0 0
    %1124 = vmatprep.subr.bf16.mxu0 0
    %1125 = vmatpush1.bf16.xpose.msra.mxu0 0
    %1126 = vmatprep.subr.bf16.mxu0 0
    %1127 = vmatpush1.bf16.xpose.msra.mxu0 0
    %1128 = vmatprep.subr.bf16.mxu0 0
    %1129 = vmatpush1.bf16.xpose.msra.mxu0 0
    %1130 = vmatprep.subr.bf16.mxu0 0
    %1131 = vmatpush1.bf16.xpose.msra.mxu0 0
    %1132 = vmatprep.subr.bf16.mxu0 0
    %1133 = vmatpush1.bf16.xpose.msra.mxu0 0
    %1134 = vmatprep.subr.bf16.mxu0 0
    %1135 = vmatpush1.bf16.xpose.msra.mxu0 0
    %1136 = vmatprep.subr.bf16.mxu0 0
    %1137 = vmatpush1.bf16.xpose.msra.mxu0 0
    %1138 = vmatprep.subr.bf16.mxu0 0
    %1139 = vmatpush1.bf16.xpose.msra.mxu0 0
    %1140 = vmatprep.subr.bf16.mxu0 0
    %1141 = vmatpush1.bf16.xpose.msra.mxu0 0
    %1142 = vmatprep.subr.bf16.mxu0 0
    %1143 = vmatpush1.bf16.xpose.msra.mxu0 0
    %1144 = vmatprep.subr.bf16.mxu0 0
    %1145 = vmatpush1.bf16.xpose.msra.mxu0 0
    %1146 = vmatprep.subr.bf16.mxu0 0
    %1147 = vmatpush1.bf16.xpose.msra.mxu0 0
    %1148 = vmatprep.subr.bf16.mxu0 0
    %1149 = vmatpush1.bf16.xpose.msra.mxu0 0
    %1150 = vmatprep.mubr.bf16.mxu0 0
    %1151 = vmatmul.mubr.bf16.gmra.mrb[0].mxu0 %v1113
    %v1152 = vpop.f32.mrb[0].mxu0
    %v1153 = vadd.f32 %v260, %v1152
    %v1154 = vpop.f32.mrb[0].mxu0
    %v1155 = vpop.f32.mrb[0].mxu0
    %v1156 = vpop.f32.mrb[0].mxu0
    %1157 = vdwg.mxu0
    %v1158 = vsel %vm427, %v1153, -inf
    %1159 = vmax.xlane.f32.xlu0 %v1158
    %v1160 = vpop.xlane.xlu0 %1159
    %v1161 = vsub.f32 %v1153, %v1160
    %v1162 = vmul.f32 %v1161, 1.442695
    %v1163 = vpow.pop %v1162
    %v1164 = vsel %vm427, %v1163, 0.0
    %1165 = vadd.xlane.f32.xlu0 %v1164
    %v1166 = vpop.xlane.xlu0 %1165
    %v1167 = vrcp.pop %v1166
    %v1168 = vmul.f32 %v1163, %v1167
    %v1169 = vpack.c.bf16 %v1168, %v1168
    %1170 = vrot.lane.b32.xlu0 %v945, 112
    %v1171 = vpop.permute.xlu0 %1170
    %v1173 = vsel %vm427, %v1169, 0
    %v1176 = vsel %vm489, %v1171, 0
    %1178 = vmatprep.subr.bf16.mxu0 0
    %1179 = vmatpush1.bf16.msra.mxu0 %v1176
    %1180 = vmatprep.subr.bf16.mxu0 0
    %1181 = vmatpush1.bf16.msra.mxu0 0
    %1182 = vmatprep.subr.bf16.mxu0 0
    %1183 = vmatpush1.bf16.msra.mxu0 0
    %1184 = vmatprep.subr.bf16.mxu0 0
    %1185 = vmatpush1.bf16.msra.mxu0 0
    %1186 = vmatprep.subr.bf16.mxu0 0
    %1187 = vmatpush1.bf16.msra.mxu0 0
    %1188 = vmatprep.subr.bf16.mxu0 0
    %1189 = vmatpush1.bf16.msra.mxu0 0
    %1190 = vmatprep.subr.bf16.mxu0 0
    %1191 = vmatpush1.bf16.msra.mxu0 0
    %1192 = vmatprep.subr.bf16.mxu0 0
    %1193 = vmatpush1.bf16.msra.mxu0 0
    %1194 = vmatprep.subr.bf16.mxu0 0
    %1195 = vmatpush1.bf16.msra.mxu0 0
    %1196 = vmatprep.subr.bf16.mxu0 0
    %1197 = vmatpush1.bf16.msra.mxu0 0
    %1198 = vmatprep.subr.bf16.mxu0 0
    %1199 = vmatpush1.bf16.msra.mxu0 0
    %1200 = vmatprep.subr.bf16.mxu0 0
    %1201 = vmatpush1.bf16.msra.mxu0 0
    %1202 = vmatprep.subr.bf16.mxu0 0
    %1203 = vmatpush1.bf16.msra.mxu0 0
    %1204 = vmatprep.subr.bf16.mxu0 0
    %1205 = vmatpush1.bf16.msra.mxu0 0
    %1206 = vmatprep.subr.bf16.mxu0 0
    %1207 = vmatpush1.bf16.msra.mxu0 0
    %1208 = vmatprep.subr.bf16.mxu0 0
    %1209 = vmatpush1.bf16.msra.mxu0 0
    %1210 = vmatprep.mubr.bf16.mxu0 0
    %1211 = vmatmul.mubr.bf16.gmra.mrb[0].mxu0 %v1173
    %v1212 = vpop.f32.mrb[0].mxu0
    %v1213 = vadd.f32 0.0, %v1212
    %v1214 = vpop.f32.mrb[0].mxu0
    %v1215 = vpop.f32.mrb[0].mxu0
    %v1216 = vpop.f32.mrb[0].mxu0
    %1217 = vdwg.mxu0
    %1219 = vrot.lane.b32.xlu0 %v1213, 16
    %v1220 = vpop.permute.xlu0 %1219
    %1222 = vst.msk [vmem:[#allocation2 + $0x8] sm:$0xff] %vm767, %v1220
    %1223 = vrot.lane.b32.xlu0 %v885, 104
    %v1224 = vpop.permute.xlu0 %1223
    %1225 = vrot.lane.b32.xlu0 %v886, 104
    %v1226 = vpop.permute.xlu0 %1225
    %v1228 = vsel %vm427, %v1224, 0
    %v1231 = vsel %vm427, %v1226, 0
    %1233 = vmatprep.subr.bf16.mxu0 0
    %1234 = vmatpush1.bf16.xpose.msra.mxu0 %v1231
    %1235 = vmatprep.subr.bf16.mxu0 0
    %1236 = vmatpush1.bf16.xpose.msra.mxu0 0
    %1237 = vmatprep.subr.bf16.mxu0 0
    %1238 = vmatpush1.bf16.xpose.msra.mxu0 0
    %1239 = vmatprep.subr.bf16.mxu0 0
    %1240 = vmatpush1.bf16.xpose.msra.mxu0 0
    %1241 = vmatprep.subr.bf16.mxu0 0
    %1242 = vmatpush1.bf16.xpose.msra.mxu0 0
    %1243 = vmatprep.subr.bf16.mxu0 0
    %1244 = vmatpush1.bf16.xpose.msra.mxu0 0
    %1245 = vmatprep.subr.bf16.mxu0 0
    %1246 = vmatpush1.bf16.xpose.msra.mxu0 0
    %1247 = vmatprep.subr.bf16.mxu0 0
    %1248 = vmatpush1.bf16.xpose.msra.mxu0 0
    %1249 = vmatprep.subr.bf16.mxu0 0
    %1250 = vmatpush1.bf16.xpose.msra.mxu0 0
    %1251 = vmatprep.subr.bf16.mxu0 0
    %1252 = vmatpush1.bf16.xpose.msra.mxu0 0
    %1253 = vmatprep.subr.bf16.mxu0 0
    %1254 = vmatpush1.bf16.xpose.msra.mxu0 0
    %1255 = vmatprep.subr.bf16.mxu0 0
    %1256 = vmatpush1.bf16.xpose.msra.mxu0 0
    %1257 = vmatprep.subr.bf16.mxu0 0
    %1258 = vmatpush1.bf16.xpose.msra.mxu0 0
    %1259 = vmatprep.subr.bf16.mxu0 0
    %1260 = vmatpush1.bf16.xpose.msra.mxu0 0
    %1261 = vmatprep.subr.bf16.mxu0 0
    %1262 = vmatpush1.bf16.xpose.msra.mxu0 0
    %1263 = vmatprep.subr.bf16.mxu0 0
    %1264 = vmatpush1.bf16.xpose.msra.mxu0 0
    %1265 = vmatprep.mubr.bf16.mxu0 0
    %1266 = vmatmul.mubr.bf16.gmra.mrb[0].mxu0 %v1228
    %v1267 = vpop.f32.mrb[0].mxu0
    %v1268 = vadd.f32 %v260, %v1267
    %v1269 = vpop.f32.mrb[0].mxu0
    %v1270 = vpop.f32.mrb[0].mxu0
    %v1271 = vpop.f32.mrb[0].mxu0
    %1272 = vdwg.mxu0
    %v1273 = vsel %vm427, %v1268, -inf
    %1274 = vmax.xlane.f32.xlu0 %v1273
    %v1275 = vpop.xlane.xlu0 %1274
    %v1276 = vsub.f32 %v1268, %v1275
    %v1277 = vmul.f32 %v1276, 1.442695
    %v1278 = vpow.pop %v1277
    %v1279 = vsel %vm427, %v1278, 0.0
    %1280 = vadd.xlane.f32.xlu0 %v1279
    %v1281 = vpop.xlane.xlu0 %1280
    %v1282 = vrcp.pop %v1281
    %v1283 = vmul.f32 %v1278, %v1282
    %v1284 = vpack.c.bf16 %v1283, %v1283
    %1285 = vrot.lane.b32.xlu0 %v945, 104
    %v1286 = vpop.permute.xlu0 %1285
    %v1288 = vsel %vm427, %v1284, 0
    %v1291 = vsel %vm489, %v1286, 0
    %1293 = vmatprep.subr.bf16.mxu0 0
    %1294 = vmatpush1.bf16.msra.mxu0 %v1291
    %1295 = vmatprep.subr.bf16.mxu0 0
    %1296 = vmatpush1.bf16.msra.mxu0 0
    %1297 = vmatprep.subr.bf16.mxu0 0
    %1298 = vmatpush1.bf16.msra.mxu0 0
    %1299 = vmatprep.subr.bf16.mxu0 0
    %1300 = vmatpush1.bf16.msra.mxu0 0
    %1301 = vmatprep.subr.bf16.mxu0 0
    %1302 = vmatpush1.bf16.msra.mxu0 0
    %1303 = vmatprep.subr.bf16.mxu0 0
    %1304 = vmatpush1.bf16.msra.mxu0 0
    %1305 = vmatprep.subr.bf16.mxu0 0
    %1306 = vmatpush1.bf16.msra.mxu0 0
    %1307 = vmatprep.subr.bf16.mxu0 0
    %1308 = vmatpush1.bf16.msra.mxu0 0
    %1309 = vmatprep.subr.bf16.mxu0 0
    %1310 = vmatpush1.bf16.msra.mxu0 0
    %1311 = vmatprep.subr.bf16.mxu0 0
    %1312 = vmatpush1.bf16.msra.mxu0 0
    %1313 = vmatprep.subr.bf16.mxu0 0
    %1314 = vmatpush1.bf16.msra.mxu0 0
    %1315 = vmatprep.subr.bf16.mxu0 0
    %1316 = vmatpush1.bf16.msra.mxu0 0
    %1317 = vmatprep.subr.bf16.mxu0 0
    %1318 = vmatpush1.bf16.msra.mxu0 0
    %1319 = vmatprep.subr.bf16.mxu0 0
    %1320 = vmatpush1.bf16.msra.mxu0 0
    %1321 = vmatprep.subr.bf16.mxu0 0
    %1322 = vmatpush1.bf16.msra.mxu0 0
    %1323 = vmatprep.subr.bf16.mxu0 0
    %1324 = vmatpush1.bf16.msra.mxu0 0
    %1325 = vmatprep.mubr.bf16.mxu0 0
    %1326 = vmatmul.mubr.bf16.gmra.mrb[0].mxu0 %v1288
    %v1327 = vpop.f32.mrb[0].mxu0
    %v1328 = vadd.f32 0.0, %v1327
    %v1329 = vpop.f32.mrb[0].mxu0
    %v1330 = vpop.f32.mrb[0].mxu0
    %v1331 = vpop.f32.mrb[0].mxu0
    %1332 = vdwg.mxu0
    %1334 = vrot.lane.b32.xlu0 %v1328, 24
    %v1335 = vpop.permute.xlu0 %1334
    %1337 = vst.msk [vmem:[#allocation2 + $0x8] sm:$0xff] %vm883, %v1335
    %v1338 = vld [vmem:[#allocation2] sm:$0xff]
    %v1339 = vld [vmem:[#allocation2 + $0x8] sm:$0xff]
    %v1340 = vpack.c.bf16 %v1339, %v1338
    %v1345 = vunpack.c.l.b16 %v224
    %v1346 = vunpack.c.l.b16 %v225
    %v1347 = vunpack.c.l.b16 %v226
    %v1348 = vunpack.c.l.b16 %v227
    %v1349 = vpack.c.b16 %v1346, %v1345
    %v1350 = vpack.c.b16 %v1348, %v1347
    %v1354 = vsel %vm273, %v1340, 0
    %1356 = vmatprep.subr.bf16.mxu0 0
    %1357 = vmatpush1.bf16.msra.mxu0 %v1349
    %1358 = vmatprep.subr.bf16.mxu0 0
    %1359 = vmatpush1.bf16.msra.mxu0 %v1350
    %1360 = vmatprep.subr.bf16.mxu0 0
    %1361 = vmatpush1.bf16.msra.mxu0 0
    %1362 = vmatprep.subr.bf16.mxu0 0
    %1363 = vmatpush1.bf16.msra.mxu0 0
    %1364 = vmatprep.subr.bf16.mxu0 0
    %1365 = vmatpush1.bf16.msra.mxu0 0
    %1366 = vmatprep.subr.bf16.mxu0 0
    %1367 = vmatpush1.bf16.msra.mxu0 0
    %1368 = vmatprep.subr.bf16.mxu0 0
    %1369 = vmatpush1.bf16.msra.mxu0 0
    %1370 = vmatprep.subr.bf16.mxu0 0
    %1371 = vmatpush1.bf16.msra.mxu0 0
    %1372 = vmatprep.subr.bf16.mxu0 0
    %1373 = vmatpush1.bf16.msra.mxu0 0
    %1374 = vmatprep.subr.bf16.mxu0 0
    %1375 = vmatpush1.bf16.msra.mxu0 0
    %1376 = vmatprep.subr.bf16.mxu0 0
    %1377 = vmatpush1.bf16.msra.mxu0 0
    %1378 = vmatprep.subr.bf16.mxu0 0
    %1379 = vmatpush1.bf16.msra.mxu0 0
    %1380 = vmatprep.subr.bf16.mxu0 0
    %1381 = vmatpush1.bf16.msra.mxu0 0
    %1382 = vmatprep.subr.bf16.mxu0 0
    %1383 = vmatpush1.bf16.msra.mxu0 0
    %1384 = vmatprep.subr.bf16.mxu0 0
    %1385 = vmatpush1.bf16.msra.mxu0 0
    %1386 = vmatprep.subr.bf16.mxu0 0
    %1387 = vmatpush1.bf16.msra.mxu0 0
    %1388 = vmatprep.mubr.bf16.mxu0 0
    %1389 = vmatmul.mubr.bf16.gmra.mrb[0].mxu0 %v1354
    %v1390 = vpop.f32.mrb[0].mxu0
    %v1391 = vadd.f32 %v204, %v1390
    %v1392 = vpop.f32.mrb[0].mxu0
    %v1393 = vpop.f32.mrb[0].mxu0
    %v1394 = vadd.f32 %v205, %v1393
    %v1395 = vpop.f32.mrb[0].mxu0
    %1396 = vdwg.mxu0
    %v1397 = vsel %vm273, %v1391, 0.0
    %1398 = vadd.xlane.f32.xlu0 %v1397
    %v1399 = vpop.xlane.xlu0 %1398
    %v1400 = vsel %vm273, %v1394, 0.0
    %1401 = vadd.xlane.f32.xlu0 %v1400
    %v1402 = vpop.xlane.xlu0 %1401
    %v1403 = vrcp.pop 32.0
    %v1404 = vmul.f32 %v1399, %v1403
    %v1405 = vmul.f32 %v1402, %v1403
    %v1406 = vsub.f32 %v1391, %v1404
    %v1407 = vsub.f32 %v1394, %v1405
    %v1408 = vmul.f32 %v1406, %v1406
    %v1409 = vmul.f32 %v1407, %v1407
    %v1410 = vsel %vm273, %v1408, 0.0
    %1411 = vadd.xlane.f32.xlu0 %v1410
    %v1412 = vpop.xlane.xlu0 %1411
    %v1413 = vsel %vm273, %v1409, 0.0
    %1414 = vadd.xlane.f32.xlu0 %v1413
    %v1415 = vpop.xlane.xlu0 %1414
    %v1416 = vmul.f32 %v1412, 0.032258064
    %v1417 = vmul.f32 %v1415, 0.032258064
    %v1418 = vrsqrt.pop %v1416
    %v1419 = vmul.f32 %v1416, %v1418
    %vm1420 = vcmp.eq.f32.partialorder %v1416, inf
    %v1421 = vsel %vm1420, %v1416, %v1419
    %vm1422 = vcmp.eq.f32.partialorder %v1416, 0.0
    %v1423 = vand.u32 %v1416, 2147483648
    %v1424 = vsel %vm1422, %v1423, %v1421
    %v1425 = vrsqrt.pop %v1417
    %v1426 = vmul.f32 %v1417, %v1425
    %vm1427 = vcmp.eq.f32.partialorder %v1417, inf
    %v1428 = vsel %vm1427, %v1417, %v1426
    %vm1429 = vcmp.eq.f32.partialorder %v1417, 0.0
    %v1430 = vand.u32 %v1417, 2147483648
    %v1431 = vsel %vm1429, %v1430, %v1428
    %v1432 = vadd.f32 %v1424, 1e-06
    %v1433 = vadd.f32 %v1431, 1e-06
    %v1434 = vrcp.pop %v1432
    %v1435 = vrcp.pop %v1433
    %v1436 = vmul.f32 %v1406, %v1434
    %v1437 = vmul.f32 %v1407, %v1435
    %v1439 = vlaneseq
    %v1440 = vshrl.u32 %v1439, 7
    %v1441 = vsub.s32 0, %v1440
    %v1442 = vrot.slane %v248, %v1441
    %v1444 = vmul.f32 %v1442, %v1436
    %v1445 = vmul.f32 %v1442, %v1437
    %v1447 = vlaneseq
    %v1448 = vshrl.u32 %v1447, 7
    %v1449 = vsub.s32 0, %v1448
    %v1450 = vrot.slane %v249, %v1449
    %v1452 = vadd.f32 %v1444, %v1450
    %v1453 = vadd.f32 %v1445, %v1450
    %v1454 = vpack.c.bf16 %v1453, %v1452
    %v1459 = vunpack.c.l.b16 %v228
    %v1460 = vunpack.c.l.b16 %v229
    %v1461 = vunpack.c.l.b16 %v230
    %v1462 = vunpack.c.l.b16 %v231
    %v1463 = vpack.c.b16 %v1460, %v1459
    %v1464 = vpack.c.b16 %v1462, %v1461
    %v1468 = vsel %vm273, %v1454, 0
    %1470 = vmatprep.subr.bf16.mxu0 0
    %1471 = vmatpush1.bf16.msra.mxu0 %v1463
    %1472 = vmatprep.subr.bf16.mxu0 0
    %1473 = vmatpush1.bf16.msra.mxu0 %v1464
    %1474 = vmatprep.subr.bf16.mxu0 0
    %1475 = vmatpush1.bf16.msra.mxu0 0
    %1476 = vmatprep.subr.bf16.mxu0 0
    %1477 = vmatpush1.bf16.msra.mxu0 0
    %1478 = vmatprep.subr.bf16.mxu0 0
    %1479 = vmatpush1.bf16.msra.mxu0 0
    %1480 = vmatprep.subr.bf16.mxu0 0
    %1481 = vmatpush1.bf16.msra.mxu0 0
    %1482 = vmatprep.subr.bf16.mxu0 0
    %1483 = vmatpush1.bf16.msra.mxu0 0
    %1484 = vmatprep.subr.bf16.mxu0 0
    %1485 = vmatpush1.bf16.msra.mxu0 0
    %1486 = vmatprep.subr.bf16.mxu0 0
    %1487 = vmatpush1.bf16.msra.mxu0 0
    %1488 = vmatprep.subr.bf16.mxu0 0
    %1489 = vmatpush1.bf16.msra.mxu0 0
    %1490 = vmatprep.subr.bf16.mxu0 0
    %1491 = vmatpush1.bf16.msra.mxu0 0
    %1492 = vmatprep.subr.bf16.mxu0 0
    %1493 = vmatpush1.bf16.msra.mxu0 0
    %1494 = vmatprep.subr.bf16.mxu0 0
    %1495 = vmatpush1.bf16.msra.mxu0 0
    %1496 = vmatprep.subr.bf16.mxu0 0
    %1497 = vmatpush1.bf16.msra.mxu0 0
    %1498 = vmatprep.subr.bf16.mxu0 0
    %1499 = vmatpush1.bf16.msra.mxu0 0
    %1500 = vmatprep.subr.bf16.mxu0 0
    %1501 = vmatpush1.bf16.msra.mxu0 0
    %1502 = vmatprep.mubr.bf16.mxu0 0
    %1503 = vmatmul.mubr.bf16.gmra.mrb[0].mxu0 %v1468
    %v1504 = vpop.f32.mrb[0].mxu0
    %v1505 = vadd.f32 0.0, %v1504
    %v1506 = vpop.f32.mrb[0].mxu0
    %v1507 = vpop.f32.mrb[0].mxu0
    %v1508 = vadd.f32 0.0, %v1507
    %v1509 = vpop.f32.mrb[0].mxu0
    %1510 = vdwg.mxu0
    %v1511 = vpack.c.bf16 %v1508, %v1505
    %v1516 = vunpack.c.l.b16 %v232
    %v1517 = vunpack.c.l.b16 %v233
    %v1518 = vunpack.c.l.b16 %v234
    %v1519 = vunpack.c.l.b16 %v235
    %v1520 = vpack.c.b16 %v1517, %v1516
    %v1521 = vpack.c.b16 %v1519, %v1518
    %v1525 = vsel %vm273, %v210, 0
    %v1528 = vsel %vm273, %v211, 0
    %1530 = vmatprep.subr.bf16.mxu0 0
    %1531 = vmatpush1.bf16.msra.mxu0 %v1520
    %1532 = vmatprep.subr.bf16.mxu0 0
    %1533 = vmatpush1.bf16.msra.mxu0 %v1521
    %1534 = vmatprep.subr.bf16.mxu0 0
    %1535 = vmatpush1.bf16.msra.mxu0 0
    %1536 = vmatprep.subr.bf16.mxu0 0
    %1537 = vmatpush1.bf16.msra.mxu0 0
    %1538 = vmatprep.subr.bf16.mxu0 0
    %1539 = vmatpush1.bf16.msra.mxu0 0
    %1540 = vmatprep.subr.bf16.mxu0 0
    %1541 = vmatpush1.bf16.msra.mxu0 0
    %1542 = vmatprep.subr.bf16.mxu0 0
    %1543 = vmatpush1.bf16.msra.mxu0 0
    %1544 = vmatprep.subr.bf16.mxu0 0
    %1545 = vmatpush1.bf16.msra.mxu0 0
    %1546 = vmatprep.subr.bf16.mxu0 0
    %1547 = vmatpush1.bf16.msra.mxu0 0
    %1548 = vmatprep.subr.bf16.mxu0 0
    %1549 = vmatpush1.bf16.msra.mxu0 0
    %1550 = vmatprep.subr.bf16.mxu0 0
    %1551 = vmatpush1.bf16.msra.mxu0 0
    %1552 = vmatprep.subr.bf16.mxu0 0
    %1553 = vmatpush1.bf16.msra.mxu0 0
    %1554 = vmatprep.subr.bf16.mxu0 0
    %1555 = vmatpush1.bf16.msra.mxu0 0
    %1556 = vmatprep.subr.bf16.mxu0 0
    %1557 = vmatpush1.bf16.msra.mxu0 0
    %1558 = vmatprep.subr.bf16.mxu0 0
    %1559 = vmatpush1.bf16.msra.mxu0 0
    %1560 = vmatprep.subr.bf16.mxu0 0
    %1561 = vmatpush1.bf16.msra.mxu0 0
    %1562 = vmatprep.mubr.bf16.mxu0 0
    %1563 = vmatmul.mubr.bf16.gmra.mrb[0].mxu0 %v1525
    %v1564 = vpop.f32.mrb[0].mxu0
    %v1565 = vadd.f32 0.0, %v1564
    %v1566 = vpop.f32.mrb[0].mxu0
    %v1567 = vpop.f32.mrb[0].mxu0
    %v1568 = vadd.f32 0.0, %v1567
    %v1569 = vpop.f32.mrb[0].mxu0
    %1570 = vmatprep.mubr.bf16.mxu0 0
    %1571 = vmatmul.mubr.bf16.gmra.mrb[0].mxu0 %v1528
    %v1572 = vpop.f32.mrb[0].mxu0
    %v1573 = vadd.f32 0.0, %v1572
    %v1574 = vpop.f32.mrb[0].mxu0
    %v1575 = vpop.f32.mrb[0].mxu0
    %v1576 = vpop.f32.mrb[0].mxu0
    %1577 = vdwg.mxu0
    %v1578 = vpack.c.bf16 %v1568, %v1565
    %v1579 = vpack.c.bf16 %v1573, %v1573
    %v1584 = vunpack.c.l.b16 %v236
    %v1585 = vunpack.c.l.b16 %v237
    %v1586 = vunpack.c.l.b16 %v238
    %v1587 = vunpack.c.l.b16 %v239
    %v1588 = vpack.c.b16 %v1585, %v1584
    %v1589 = vpack.c.b16 %v1587, %v1586
    %1592 = vmatprep.subr.bf16.mxu0 0
    %1593 = vmatpush1.bf16.msra.mxu0 %v1588
    %1594 = vmatprep.subr.bf16.mxu0 0
    %1595 = vmatpush1.bf16.msra.mxu0 %v1589
    %1596 = vmatprep.subr.bf16.mxu0 0
    %1597 = vmatpush1.bf16.msra.mxu0 0
    %1598 = vmatprep.subr.bf16.mxu0 0
    %1599 = vmatpush1.bf16.msra.mxu0 0
    %1600 = vmatprep.subr.bf16.mxu0 0
    %1601 = vmatpush1.bf16.msra.mxu0 0
    %1602 = vmatprep.subr.bf16.mxu0 0
    %1603 = vmatpush1.bf16.msra.mxu0 0
    %1604 = vmatprep.subr.bf16.mxu0 0
    %1605 = vmatpush1.bf16.msra.mxu0 0
    %1606 = vmatprep.subr.bf16.mxu0 0
    %1607 = vmatpush1.bf16.msra.mxu0 0
    %1608 = vmatprep.subr.bf16.mxu0 0
    %1609 = vmatpush1.bf16.msra.mxu0 0
    %1610 = vmatprep.subr.bf16.mxu0 0
    %1611 = vmatpush1.bf16.msra.mxu0 0
    %1612 = vmatprep.subr.bf16.mxu0 0
    %1613 = vmatpush1.bf16.msra.mxu0 0
    %1614 = vmatprep.subr.bf16.mxu0 0
    %1615 = vmatpush1.bf16.msra.mxu0 0
    %1616 = vmatprep.subr.bf16.mxu0 0
    %1617 = vmatpush1.bf16.msra.mxu0 0
    %1618 = vmatprep.subr.bf16.mxu0 0
    %1619 = vmatpush1.bf16.msra.mxu0 0
    %1620 = vmatprep.subr.bf16.mxu0 0
    %1621 = vmatpush1.bf16.msra.mxu0 0
    %1622 = vmatprep.subr.bf16.mxu0 0
    %1623 = vmatpush1.bf16.msra.mxu0 0
    %1624 = vmatprep.mubr.bf16.mxu0 0
    %1625 = vmatmul.mubr.bf16.gmra.mrb[0].mxu0 %v1525
    %v1626 = vpop.f32.mrb[0].mxu0
    %v1627 = vadd.f32 0.0, %v1626
    %v1628 = vpop.f32.mrb[0].mxu0
    %v1629 = vpop.f32.mrb[0].mxu0
    %v1630 = vadd.f32 0.0, %v1629
    %v1631 = vpop.f32.mrb[0].mxu0
    %1632 = vmatprep.mubr.bf16.mxu0 0
    %1633 = vmatmul.mubr.bf16.gmra.mrb[0].mxu0 %v1528
    %v1634 = vpop.f32.mrb[0].mxu0
    %v1635 = vadd.f32 0.0, %v1634
    %v1636 = vpop.f32.mrb[0].mxu0
    %v1637 = vpop.f32.mrb[0].mxu0
    %v1638 = vpop.f32.mrb[0].mxu0
    %1639 = vdwg.mxu0
    %v1640 = vpack.c.bf16 %v1630, %v1627
    %v1641 = vpack.c.bf16 %v1635, %v1635
    %v1643 = vsel %vm427, %v1511, 0
    %v1646 = vsel %vm427, %v1578, 0
    %1648 = vmatprep.subr.bf16.mxu0 0
    %1649 = vmatpush1.bf16.xpose.msra.mxu0 %v1646
    %1650 = vmatprep.subr.bf16.mxu0 0
    %1651 = vmatpush1.bf16.xpose.msra.mxu0 0
    %1652 = vmatprep.subr.bf16.mxu0 0
    %1653 = vmatpush1.bf16.xpose.msra.mxu0 0
    %1654 = vmatprep.subr.bf16.mxu0 0
    %1655 = vmatpush1.bf16.xpose.msra.mxu0 0
    %1656 = vmatprep.subr.bf16.mxu0 0
    %1657 = vmatpush1.bf16.xpose.msra.mxu0 0
    %1658 = vmatprep.subr.bf16.mxu0 0
    %1659 = vmatpush1.bf16.xpose.msra.mxu0 0
    %1660 = vmatprep.subr.bf16.mxu0 0
    %1661 = vmatpush1.bf16.xpose.msra.mxu0 0
    %1662 = vmatprep.subr.bf16.mxu0 0
    %1663 = vmatpush1.bf16.xpose.msra.mxu0 0
    %1664 = vmatprep.subr.bf16.mxu0 0
    %1665 = vmatpush1.bf16.xpose.msra.mxu0 0
    %1666 = vmatprep.subr.bf16.mxu0 0
    %1667 = vmatpush1.bf16.xpose.msra.mxu0 0
    %1668 = vmatprep.subr.bf16.mxu0 0
    %1669 = vmatpush1.bf16.xpose.msra.mxu0 0
    %1670 = vmatprep.subr.bf16.mxu0 0
    %1671 = vmatpush1.bf16.xpose.msra.mxu0 0
    %1672 = vmatprep.subr.bf16.mxu0 0
    %1673 = vmatpush1.bf16.xpose.msra.mxu0 0
    %1674 = vmatprep.subr.bf16.mxu0 0
    %1675 = vmatpush1.bf16.xpose.msra.mxu0 0
    %1676 = vmatprep.subr.bf16.mxu0 0
    %1677 = vmatpush1.bf16.xpose.msra.mxu0 0
    %1678 = vmatprep.subr.bf16.mxu0 0
    %1679 = vmatpush1.bf16.xpose.msra.mxu0 0
    %1680 = vmatprep.mubr.bf16.mxu0 0
    %1681 = vmatmul.mubr.bf16.gmra.mrb[0].mxu0 %v1643
    %v1682 = vpop.f32.mrb[0].mxu0
    %v1683 = vadd.f32 0.0, %v1682
    %v1684 = vpop.f32.mrb[0].mxu0
    %v1685 = vpop.f32.mrb[0].mxu0
    %v1686 = vpop.f32.mrb[0].mxu0
    %1687 = vdwg.mxu0
    %vm1688 = vcmask 97280
    %v1689 = vsel %vm1688, %v1683, -inf
    %1690 = vmax.xlane.f32.xlu0 %v1689
    %v1691 = vpop.xlane.xlu0 %1690
    %v1692 = vsub.f32 %v1683, %v1691
    %v1693 = vmul.f32 %v1692, 1.442695
    %v1694 = vpow.pop %v1693
    %v1695 = vsel %vm1688, %v1694, 0.0
    %1696 = vadd.xlane.f32.xlu0 %v1695
    %v1697 = vpop.xlane.xlu0 %1696
    %v1698 = vrcp.pop %v1697
    %v1699 = vmul.f32 %v1694, %v1698
    %v1700 = vpack.c.bf16 %v1699, %v1699
    %v1702 = vsel %vm1688, %v1700, 0
    %vm1704 = vcmask 1045504
    %v1706 = vsel %vm1704, %v1640, 0
    %1708 = vmatprep.subr.bf16.mxu0 0
    %1709 = vmatpush1.bf16.msra.mxu0 %v1706
    %1710 = vmatprep.subr.bf16.mxu0 0
    %1711 = vmatpush1.bf16.msra.mxu0 0
    %1712 = vmatprep.subr.bf16.mxu0 0
    %1713 = vmatpush1.bf16.msra.mxu0 0
    %1714 = vmatprep.subr.bf16.mxu0 0
    %1715 = vmatpush1.bf16.msra.mxu0 0
    %1716 = vmatprep.subr.bf16.mxu0 0
    %1717 = vmatpush1.bf16.msra.mxu0 0
    %1718 = vmatprep.subr.bf16.mxu0 0
    %1719 = vmatpush1.bf16.msra.mxu0 0
    %1720 = vmatprep.subr.bf16.mxu0 0
    %1721 = vmatpush1.bf16.msra.mxu0 0
    %1722 = vmatprep.subr.bf16.mxu0 0
    %1723 = vmatpush1.bf16.msra.mxu0 0
    %1724 = vmatprep.subr.bf16.mxu0 0
    %1725 = vmatpush1.bf16.msra.mxu0 0
    %1726 = vmatprep.subr.bf16.mxu0 0
    %1727 = vmatpush1.bf16.msra.mxu0 0
    %1728 = vmatprep.subr.bf16.mxu0 0
    %1729 = vmatpush1.bf16.msra.mxu0 0
    %1730 = vmatprep.subr.bf16.mxu0 0
    %1731 = vmatpush1.bf16.msra.mxu0 0
    %1732 = vmatprep.subr.bf16.mxu0 0
    %1733 = vmatpush1.bf16.msra.mxu0 0
    %1734 = vmatprep.subr.bf16.mxu0 0
    %1735 = vmatpush1.bf16.msra.mxu0 0
    %1736 = vmatprep.subr.bf16.mxu0 0
    %1737 = vmatpush1.bf16.msra.mxu0 0
    %1738 = vmatprep.subr.bf16.mxu0 0
    %1739 = vmatpush1.bf16.msra.mxu0 0
    %1740 = vmatprep.mubr.bf16.mxu0 0
    %1741 = vmatmul.mubr.bf16.gmra.mrb[0].mxu0 %v1702
    %v1742 = vpop.f32.mrb[0].mxu0
    %v1743 = vadd.f32 0.0, %v1742
    %v1744 = vpop.f32.mrb[0].mxu0
    %v1745 = vpop.f32.mrb[0].mxu0
    %v1746 = vpop.f32.mrb[0].mxu0
    %1747 = vdwg.mxu0
    %1748 = vst.msk [vmem:[#allocation2] sm:$0xff] %vm427, %v1743
    %1750 = vrot.lane.b32.xlu0 %v1511, 120
    %v1751 = vpop.permute.xlu0 %1750
    %1753 = vrot.lane.b32.xlu0 %v1578, 120
    %v1754 = vpop.permute.xlu0 %1753
    %v1756 = vsel %vm427, %v1751, 0
    %v1759 = vsel %vm427, %v1754, 0
    %1761 = vmatprep.subr.bf16.mxu0 0
    %1762 = vmatpush1.bf16.xpose.msra.mxu0 %v1759
    %1763 = vmatprep.subr.bf16.mxu0 0
    %1764 = vmatpush1.bf16.xpose.msra.mxu0 0
    %1765 = vmatprep.subr.bf16.mxu0 0
    %1766 = vmatpush1.bf16.xpose.msra.mxu0 0
    %1767 = vmatprep.subr.bf16.mxu0 0
    %1768 = vmatpush1.bf16.xpose.msra.mxu0 0
    %1769 = vmatprep.subr.bf16.mxu0 0
    %1770 = vmatpush1.bf16.xpose.msra.mxu0 0
    %1771 = vmatprep.subr.bf16.mxu0 0
    %1772 = vmatpush1.bf16.xpose.msra.mxu0 0
    %1773 = vmatprep.subr.bf16.mxu0 0
    %1774 = vmatpush1.bf16.xpose.msra.mxu0 0
    %1775 = vmatprep.subr.bf16.mxu0 0
    %1776 = vmatpush1.bf16.xpose.msra.mxu0 0
    %1777 = vmatprep.subr.bf16.mxu0 0
    %1778 = vmatpush1.bf16.xpose.msra.mxu0 0
    %1779 = vmatprep.subr.bf16.mxu0 0
    %1780 = vmatpush1.bf16.xpose.msra.mxu0 0
    %1781 = vmatprep.subr.bf16.mxu0 0
    %1782 = vmatpush1.bf16.xpose.msra.mxu0 0
    %1783 = vmatprep.subr.bf16.mxu0 0
    %1784 = vmatpush1.bf16.xpose.msra.mxu0 0
    %1785 = vmatprep.subr.bf16.mxu0 0
    %1786 = vmatpush1.bf16.xpose.msra.mxu0 0
    %1787 = vmatprep.subr.bf16.mxu0 0
    %1788 = vmatpush1.bf16.xpose.msra.mxu0 0
    %1789 = vmatprep.subr.bf16.mxu0 0
    %1790 = vmatpush1.bf16.xpose.msra.mxu0 0
    %1791 = vmatprep.subr.bf16.mxu0 0
    %1792 = vmatpush1.bf16.xpose.msra.mxu0 0
    %1793 = vmatprep.mubr.bf16.mxu0 0
    %1794 = vmatmul.mubr.bf16.gmra.mrb[0].mxu0 %v1756
    %v1795 = vpop.f32.mrb[0].mxu0
    %v1796 = vadd.f32 0.0, %v1795
    %v1797 = vpop.f32.mrb[0].mxu0
    %v1798 = vpop.f32.mrb[0].mxu0
    %v1799 = vpop.f32.mrb[0].mxu0
    %1800 = vdwg.mxu0
    %v1801 = vsel %vm1688, %v1796, -inf
    %1802 = vmax.xlane.f32.xlu0 %v1801
    %v1803 = vpop.xlane.xlu0 %1802
    %v1804 = vsub.f32 %v1796, %v1803
    %v1805 = vmul.f32 %v1804, 1.442695
    %v1806 = vpow.pop %v1805
    %v1807 = vsel %vm1688, %v1806, 0.0
    %1808 = vadd.xlane.f32.xlu0 %v1807
    %v1809 = vpop.xlane.xlu0 %1808
    %v1810 = vrcp.pop %v1809
    %v1811 = vmul.f32 %v1806, %v1810
    %v1812 = vpack.c.bf16 %v1811, %v1811
    %1814 = vrot.lane.b32.xlu0 %v1640, 120
    %v1815 = vpop.permute.xlu0 %1814
    %v1817 = vsel %vm1688, %v1812, 0
    %v1820 = vsel %vm1704, %v1815, 0
    %1822 = vmatprep.subr.bf16.mxu0 0
    %1823 = vmatpush1.bf16.msra.mxu0 %v1820
    %1824 = vmatprep.subr.bf16.mxu0 0
    %1825 = vmatpush1.bf16.msra.mxu0 0
    %1826 = vmatprep.subr.bf16.mxu0 0
    %1827 = vmatpush1.bf16.msra.mxu0 0
    %1828 = vmatprep.subr.bf16.mxu0 0
    %1829 = vmatpush1.bf16.msra.mxu0 0
    %1830 = vmatprep.subr.bf16.mxu0 0
    %1831 = vmatpush1.bf16.msra.mxu0 0
    %1832 = vmatprep.subr.bf16.mxu0 0
    %1833 = vmatpush1.bf16.msra.mxu0 0
    %1834 = vmatprep.subr.bf16.mxu0 0
    %1835 = vmatpush1.bf16.msra.mxu0 0
    %1836 = vmatprep.subr.bf16.mxu0 0
    %1837 = vmatpush1.bf16.msra.mxu0 0
    %1838 = vmatprep.subr.bf16.mxu0 0
    %1839 = vmatpush1.bf16.msra.mxu0 0
    %1840 = vmatprep.subr.bf16.mxu0 0
    %1841 = vmatpush1.bf16.msra.mxu0 0
    %1842 = vmatprep.subr.bf16.mxu0 0
    %1843 = vmatpush1.bf16.msra.mxu0 0
    %1844 = vmatprep.subr.bf16.mxu0 0
    %1845 = vmatpush1.bf16.msra.mxu0 0
    %1846 = vmatprep.subr.bf16.mxu0 0
    %1847 = vmatpush1.bf16.msra.mxu0 0
    %1848 = vmatprep.subr.bf16.mxu0 0
    %1849 = vmatpush1.bf16.msra.mxu0 0
    %1850 = vmatprep.subr.bf16.mxu0 0
    %1851 = vmatpush1.bf16.msra.mxu0 0
    %1852 = vmatprep.subr.bf16.mxu0 0
    %1853 = vmatpush1.bf16.msra.mxu0 0
    %1854 = vmatprep.mubr.bf16.mxu0 0
    %1855 = vmatmul.mubr.bf16.gmra.mrb[0].mxu0 %v1817
    %v1856 = vpop.f32.mrb[0].mxu0
    %v1857 = vadd.f32 0.0, %v1856
    %v1858 = vpop.f32.mrb[0].mxu0
    %v1859 = vpop.f32.mrb[0].mxu0
    %v1860 = vpop.f32.mrb[0].mxu0
    %1861 = vdwg.mxu0
    %1863 = vrot.lane.b32.xlu0 %v1857, 8
    %v1864 = vpop.permute.xlu0 %1863
    %1866 = vst.msk [vmem:[#allocation2] sm:$0xff] %vm651, %v1864
    %1867 = vrot.lane.b32.xlu0 %v1511, 112
    %v1868 = vpop.permute.xlu0 %1867
    %1869 = vrot.lane.b32.xlu0 %v1578, 112
    %v1870 = vpop.permute.xlu0 %1869
    %v1872 = vsel %vm427, %v1868, 0
    %v1875 = vsel %vm427, %v1870, 0
    %1877 = vmatprep.subr.bf16.mxu0 0
    %1878 = vmatpush1.bf16.xpose.msra.mxu0 %v1875
    %1879 = vmatprep.subr.bf16.mxu0 0
    %1880 = vmatpush1.bf16.xpose.msra.mxu0 0
    %1881 = vmatprep.subr.bf16.mxu0 0
    %1882 = vmatpush1.bf16.xpose.msra.mxu0 0
    %1883 = vmatprep.subr.bf16.mxu0 0
    %1884 = vmatpush1.bf16.xpose.msra.mxu0 0
    %1885 = vmatprep.subr.bf16.mxu0 0
    %1886 = vmatpush1.bf16.xpose.msra.mxu0 0
    %1887 = vmatprep.subr.bf16.mxu0 0
    %1888 = vmatpush1.bf16.xpose.msra.mxu0 0
    %1889 = vmatprep.subr.bf16.mxu0 0
    %1890 = vmatpush1.bf16.xpose.msra.mxu0 0
    %1891 = vmatprep.subr.bf16.mxu0 0
    %1892 = vmatpush1.bf16.xpose.msra.mxu0 0
    %1893 = vmatprep.subr.bf16.mxu0 0
    %1894 = vmatpush1.bf16.xpose.msra.mxu0 0
    %1895 = vmatprep.subr.bf16.mxu0 0
    %1896 = vmatpush1.bf16.xpose.msra.mxu0 0
    %1897 = vmatprep.subr.bf16.mxu0 0
    %1898 = vmatpush1.bf16.xpose.msra.mxu0 0
    %1899 = vmatprep.subr.bf16.mxu0 0
    %1900 = vmatpush1.bf16.xpose.msra.mxu0 0
    %1901 = vmatprep.subr.bf16.mxu0 0
    %1902 = vmatpush1.bf16.xpose.msra.mxu0 0
    %1903 = vmatprep.subr.bf16.mxu0 0
    %1904 = vmatpush1.bf16.xpose.msra.mxu0 0
    %1905 = vmatprep.subr.bf16.mxu0 0
    %1906 = vmatpush1.bf16.xpose.msra.mxu0 0
    %1907 = vmatprep.subr.bf16.mxu0 0
    %1908 = vmatpush1.bf16.xpose.msra.mxu0 0
    %1909 = vmatprep.mubr.bf16.mxu0 0
    %1910 = vmatmul.mubr.bf16.gmra.mrb[0].mxu0 %v1872
    %v1911 = vpop.f32.mrb[0].mxu0
    %v1912 = vadd.f32 0.0, %v1911
    %v1913 = vpop.f32.mrb[0].mxu0
    %v1914 = vpop.f32.mrb[0].mxu0
    %v1915 = vpop.f32.mrb[0].mxu0
    %1916 = vdwg.mxu0
    %v1917 = vsel %vm1688, %v1912, -inf
    %1918 = vmax.xlane.f32.xlu0 %v1917
    %v1919 = vpop.xlane.xlu0 %1918
    %v1920 = vsub.f32 %v1912, %v1919
    %v1921 = vmul.f32 %v1920, 1.442695
    %v1922 = vpow.pop %v1921
    %v1923 = vsel %vm1688, %v1922, 0.0
    %1924 = vadd.xlane.f32.xlu0 %v1923
    %v1925 = vpop.xlane.xlu0 %1924
    %v1926 = vrcp.pop %v1925
    %v1927 = vmul.f32 %v1922, %v1926
    %v1928 = vpack.c.bf16 %v1927, %v1927
    %1929 = vrot.lane.b32.xlu0 %v1640, 112
    %v1930 = vpop.permute.xlu0 %1929
    %v1932 = vsel %vm1688, %v1928, 0
    %v1935 = vsel %vm1704, %v1930, 0
    %1937 = vmatprep.subr.bf16.mxu0 0
    %1938 = vmatpush1.bf16.msra.mxu0 %v1935
    %1939 = vmatprep.subr.bf16.mxu0 0
    %1940 = vmatpush1.bf16.msra.mxu0 0
    %1941 = vmatprep.subr.bf16.mxu0 0
    %1942 = vmatpush1.bf16.msra.mxu0 0
    %1943 = vmatprep.subr.bf16.mxu0 0
    %1944 = vmatpush1.bf16.msra.mxu0 0
    %1945 = vmatprep.subr.bf16.mxu0 0
    %1946 = vmatpush1.bf16.msra.mxu0 0
    %1947 = vmatprep.subr.bf16.mxu0 0
    %1948 = vmatpush1.bf16.msra.mxu0 0
    %1949 = vmatprep.subr.bf16.mxu0 0
    %1950 = vmatpush1.bf16.msra.mxu0 0
    %1951 = vmatprep.subr.bf16.mxu0 0
    %1952 = vmatpush1.bf16.msra.mxu0 0
    %1953 = vmatprep.subr.bf16.mxu0 0
    %1954 = vmatpush1.bf16.msra.mxu0 0
    %1955 = vmatprep.subr.bf16.mxu0 0
    %1956 = vmatpush1.bf16.msra.mxu0 0
    %1957 = vmatprep.subr.bf16.mxu0 0
    %1958 = vmatpush1.bf16.msra.mxu0 0
    %1959 = vmatprep.subr.bf16.mxu0 0
    %1960 = vmatpush1.bf16.msra.mxu0 0
    %1961 = vmatprep.subr.bf16.mxu0 0
    %1962 = vmatpush1.bf16.msra.mxu0 0
    %1963 = vmatprep.subr.bf16.mxu0 0
    %1964 = vmatpush1.bf16.msra.mxu0 0
    %1965 = vmatprep.subr.bf16.mxu0 0
    %1966 = vmatpush1.bf16.msra.mxu0 0
    %1967 = vmatprep.subr.bf16.mxu0 0
    %1968 = vmatpush1.bf16.msra.mxu0 0
    %1969 = vmatprep.mubr.bf16.mxu0 0
    %1970 = vmatmul.mubr.bf16.gmra.mrb[0].mxu0 %v1932
    %v1971 = vpop.f32.mrb[0].mxu0
    %v1972 = vadd.f32 0.0, %v1971
    %v1973 = vpop.f32.mrb[0].mxu0
    %v1974 = vpop.f32.mrb[0].mxu0
    %v1975 = vpop.f32.mrb[0].mxu0
    %1976 = vdwg.mxu0
    %1978 = vrot.lane.b32.xlu0 %v1972, 16
    %v1979 = vpop.permute.xlu0 %1978
    %1981 = vst.msk [vmem:[#allocation2] sm:$0xff] %vm767, %v1979
    %1982 = vrot.lane.b32.xlu0 %v1511, 104
    %v1983 = vpop.permute.xlu0 %1982
    %1984 = vrot.lane.b32.xlu0 %v1578, 104
    %v1985 = vpop.permute.xlu0 %1984
    %v1987 = vsel %vm427, %v1983, 0
    %v1990 = vsel %vm427, %v1985, 0
    %1992 = vmatprep.subr.bf16.mxu0 0
    %1993 = vmatpush1.bf16.xpose.msra.mxu0 %v1990
    %1994 = vmatprep.subr.bf16.mxu0 0
    %1995 = vmatpush1.bf16.xpose.msra.mxu0 0
    %1996 = vmatprep.subr.bf16.mxu0 0
    %1997 = vmatpush1.bf16.xpose.msra.mxu0 0
    %1998 = vmatprep.subr.bf16.mxu0 0
    %1999 = vmatpush1.bf16.xpose.msra.mxu0 0
    %2000 = vmatprep.subr.bf16.mxu0 0
    %2001 = vmatpush1.bf16.xpose.msra.mxu0 0
    %2002 = vmatprep.subr.bf16.mxu0 0
    %2003 = vmatpush1.bf16.xpose.msra.mxu0 0
    %2004 = vmatprep.subr.bf16.mxu0 0
    %2005 = vmatpush1.bf16.xpose.msra.mxu0 0
    %2006 = vmatprep.subr.bf16.mxu0 0
    %2007 = vmatpush1.bf16.xpose.msra.mxu0 0
    %2008 = vmatprep.subr.bf16.mxu0 0
    %2009 = vmatpush1.bf16.xpose.msra.mxu0 0
    %2010 = vmatprep.subr.bf16.mxu0 0
    %2011 = vmatpush1.bf16.xpose.msra.mxu0 0
    %2012 = vmatprep.subr.bf16.mxu0 0
    %2013 = vmatpush1.bf16.xpose.msra.mxu0 0
    %2014 = vmatprep.subr.bf16.mxu0 0
    %2015 = vmatpush1.bf16.xpose.msra.mxu0 0
    %2016 = vmatprep.subr.bf16.mxu0 0
    %2017 = vmatpush1.bf16.xpose.msra.mxu0 0
    %2018 = vmatprep.subr.bf16.mxu0 0
    %2019 = vmatpush1.bf16.xpose.msra.mxu0 0
    %2020 = vmatprep.subr.bf16.mxu0 0
    %2021 = vmatpush1.bf16.xpose.msra.mxu0 0
    %2022 = vmatprep.subr.bf16.mxu0 0
    %2023 = vmatpush1.bf16.xpose.msra.mxu0 0
    %2024 = vmatprep.mubr.bf16.mxu0 0
    %2025 = vmatmul.mubr.bf16.gmra.mrb[0].mxu0 %v1987
    %v2026 = vpop.f32.mrb[0].mxu0
    %v2027 = vadd.f32 0.0, %v2026
    %v2028 = vpop.f32.mrb[0].mxu0
    %v2029 = vpop.f32.mrb[0].mxu0
    %v2030 = vpop.f32.mrb[0].mxu0
    %2031 = vdwg.mxu0
    %v2032 = vsel %vm1688, %v2027, -inf
    %2033 = vmax.xlane.f32.xlu0 %v2032
    %v2034 = vpop.xlane.xlu0 %2033
    %v2035 = vsub.f32 %v2027, %v2034
    %v2036 = vmul.f32 %v2035, 1.442695
    %v2037 = vpow.pop %v2036
    %v2038 = vsel %vm1688, %v2037, 0.0
    %2039 = vadd.xlane.f32.xlu0 %v2038
    %v2040 = vpop.xlane.xlu0 %2039
    %v2041 = vrcp.pop %v2040
    %v2042 = vmul.f32 %v2037, %v2041
    %v2043 = vpack.c.bf16 %v2042, %v2042
    %2044 = vrot.lane.b32.xlu0 %v1640, 104
    %v2045 = vpop.permute.xlu0 %2044
    %v2047 = vsel %vm1688, %v2043, 0
    %v2050 = vsel %vm1704, %v2045, 0
    %2052 = vmatprep.subr.bf16.mxu0 0
    %2053 = vmatpush1.bf16.msra.mxu0 %v2050
    %2054 = vmatprep.subr.bf16.mxu0 0
    %2055 = vmatpush1.bf16.msra.mxu0 0
    %2056 = vmatprep.subr.bf16.mxu0 0
    %2057 = vmatpush1.bf16.msra.mxu0 0
    %2058 = vmatprep.subr.bf16.mxu0 0
    %2059 = vmatpush1.bf16.msra.mxu0 0
    %2060 = vmatprep.subr.bf16.mxu0 0
    %2061 = vmatpush1.bf16.msra.mxu0 0
    %2062 = vmatprep.subr.bf16.mxu0 0
    %2063 = vmatpush1.bf16.msra.mxu0 0
    %2064 = vmatprep.subr.bf16.mxu0 0
    %2065 = vmatpush1.bf16.msra.mxu0 0
    %2066 = vmatprep.subr.bf16.mxu0 0
    %2067 = vmatpush1.bf16.msra.mxu0 0
    %2068 = vmatprep.subr.bf16.mxu0 0
    %2069 = vmatpush1.bf16.msra.mxu0 0
    %2070 = vmatprep.subr.bf16.mxu0 0
    %2071 = vmatpush1.bf16.msra.mxu0 0
    %2072 = vmatprep.subr.bf16.mxu0 0
    %2073 = vmatpush1.bf16.msra.mxu0 0
    %2074 = vmatprep.subr.bf16.mxu0 0
    %2075 = vmatpush1.bf16.msra.mxu0 0
    %2076 = vmatprep.subr.bf16.mxu0 0
    %2077 = vmatpush1.bf16.msra.mxu0 0
    %2078 = vmatprep.subr.bf16.mxu0 0
    %2079 = vmatpush1.bf16.msra.mxu0 0
    %2080 = vmatprep.subr.bf16.mxu0 0
    %2081 = vmatpush1.bf16.msra.mxu0 0
    %2082 = vmatprep.subr.bf16.mxu0 0
    %2083 = vmatpush1.bf16.msra.mxu0 0
    %2084 = vmatprep.mubr.bf16.mxu0 0
    %2085 = vmatmul.mubr.bf16.gmra.mrb[0].mxu0 %v2047
    %v2086 = vpop.f32.mrb[0].mxu0
    %v2087 = vadd.f32 0.0, %v2086
    %v2088 = vpop.f32.mrb[0].mxu0
    %v2089 = vpop.f32.mrb[0].mxu0
    %v2090 = vpop.f32.mrb[0].mxu0
    %2091 = vdwg.mxu0
    %2093 = vrot.lane.b32.xlu0 %v2087, 24
    %v2094 = vpop.permute.xlu0 %2093
    %2096 = vst.msk [vmem:[#allocation2] sm:$0xff] %vm883, %v2094
    %v2097 = vrot.slane %v1511, 4
    %vm2099 = vcmask 1041408
    %v2100 = vrot.slane %v1578, 6
    %v2101 = vrot.slane %v1579, 6
    %v2102 = vsel %vm2099, %v2100, %v2101
    %v2104 = vsel %vm427, %v2097, 0
    %v2107 = vsel %vm427, %v2102, 0
    %2109 = vmatprep.subr.bf16.mxu0 0
    %2110 = vmatpush1.bf16.xpose.msra.mxu0 %v2107
    %2111 = vmatprep.subr.bf16.mxu0 0
    %2112 = vmatpush1.bf16.xpose.msra.mxu0 0
    %2113 = vmatprep.subr.bf16.mxu0 0
    %2114 = vmatpush1.bf16.xpose.msra.mxu0 0
    %2115 = vmatprep.subr.bf16.mxu0 0
    %2116 = vmatpush1.bf16.xpose.msra.mxu0 0
    %2117 = vmatprep.subr.bf16.mxu0 0
    %2118 = vmatpush1.bf16.xpose.msra.mxu0 0
    %2119 = vmatprep.subr.bf16.mxu0 0
    %2120 = vmatpush1.bf16.xpose.msra.mxu0 0
    %2121 = vmatprep.subr.bf16.mxu0 0
    %2122 = vmatpush1.bf16.xpose.msra.mxu0 0
    %2123 = vmatprep.subr.bf16.mxu0 0
    %2124 = vmatpush1.bf16.xpose.msra.mxu0 0
    %2125 = vmatprep.subr.bf16.mxu0 0
    %2126 = vmatpush1.bf16.xpose.msra.mxu0 0
    %2127 = vmatprep.subr.bf16.mxu0 0
    %2128 = vmatpush1.bf16.xpose.msra.mxu0 0
    %2129 = vmatprep.subr.bf16.mxu0 0
    %2130 = vmatpush1.bf16.xpose.msra.mxu0 0
    %2131 = vmatprep.subr.bf16.mxu0 0
    %2132 = vmatpush1.bf16.xpose.msra.mxu0 0
    %2133 = vmatprep.subr.bf16.mxu0 0
    %2134 = vmatpush1.bf16.xpose.msra.mxu0 0
    %2135 = vmatprep.subr.bf16.mxu0 0
    %2136 = vmatpush1.bf16.xpose.msra.mxu0 0
    %2137 = vmatprep.subr.bf16.mxu0 0
    %2138 = vmatpush1.bf16.xpose.msra.mxu0 0
    %2139 = vmatprep.subr.bf16.mxu0 0
    %2140 = vmatpush1.bf16.xpose.msra.mxu0 0
    %2141 = vmatprep.mubr.bf16.mxu0 0
    %2142 = vmatmul.mubr.bf16.gmra.mrb[0].mxu0 %v2104
    %v2143 = vpop.f32.mrb[0].mxu0
    %v2144 = vadd.f32 0.0, %v2143
    %v2145 = vpop.f32.mrb[0].mxu0
    %v2146 = vpop.f32.mrb[0].mxu0
    %v2147 = vpop.f32.mrb[0].mxu0
    %2148 = vdwg.mxu0
    %v2149 = vsel %vm1688, %v2144, -inf
    %2150 = vmax.xlane.f32.xlu0 %v2149
    %v2151 = vpop.xlane.xlu0 %2150
    %v2152 = vsub.f32 %v2144, %v2151
    %v2153 = vmul.f32 %v2152, 1.442695
    %v2154 = vpow.pop %v2153
    %v2155 = vsel %vm1688, %v2154, 0.0
    %2156 = vadd.xlane.f32.xlu0 %v2155
    %v2157 = vpop.xlane.xlu0 %2156
    %v2158 = vrcp.pop %v2157
    %v2159 = vmul.f32 %v2154, %v2158
    %v2160 = vpack.c.bf16 %v2159, %v2159
    %v2162 = vrot.slane %v1640, 6
    %v2163 = vrot.slane %v1641, 6
    %v2164 = vsel %vm2099, %v2162, %v2163
    %v2166 = vsel %vm1688, %v2160, 0
    %v2169 = vsel %vm1704, %v2164, 0
    %2171 = vmatprep.subr.bf16.mxu0 0
    %2172 = vmatpush1.bf16.msra.mxu0 %v2169
    %2173 = vmatprep.subr.bf16.mxu0 0
    %2174 = vmatpush1.bf16.msra.mxu0 0
    %2175 = vmatprep.subr.bf16.mxu0 0
    %2176 = vmatpush1.bf16.msra.mxu0 0
    %2177 = vmatprep.subr.bf16.mxu0 0
    %2178 = vmatpush1.bf16.msra.mxu0 0
    %2179 = vmatprep.subr.bf16.mxu0 0
    %2180 = vmatpush1.bf16.msra.mxu0 0
    %2181 = vmatprep.subr.bf16.mxu0 0
    %2182 = vmatpush1.bf16.msra.mxu0 0
    %2183 = vmatprep.subr.bf16.mxu0 0
    %2184 = vmatpush1.bf16.msra.mxu0 0
    %2185 = vmatprep.subr.bf16.mxu0 0
    %2186 = vmatpush1.bf16.msra.mxu0 0
    %2187 = vmatprep.subr.bf16.mxu0 0
    %2188 = vmatpush1.bf16.msra.mxu0 0
    %2189 = vmatprep.subr.bf16.mxu0 0
    %2190 = vmatpush1.bf16.msra.mxu0 0
    %2191 = vmatprep.subr.bf16.mxu0 0
    %2192 = vmatpush1.bf16.msra.mxu0 0
    %2193 = vmatprep.subr.bf16.mxu0 0
    %2194 = vmatpush1.bf16.msra.mxu0 0
    %2195 = vmatprep.subr.bf16.mxu0 0
    %2196 = vmatpush1.bf16.msra.mxu0 0
    %2197 = vmatprep.subr.bf16.mxu0 0
    %2198 = vmatpush1.bf16.msra.mxu0 0
    %2199 = vmatprep.subr.bf16.mxu0 0
    %2200 = vmatpush1.bf16.msra.mxu0 0
    %2201 = vmatprep.subr.bf16.mxu0 0
    %2202 = vmatpush1.bf16.msra.mxu0 0
    %2203 = vmatprep.mubr.bf16.mxu0 0
    %2204 = vmatmul.mubr.bf16.gmra.mrb[0].mxu0 %v2166
    %v2205 = vpop.f32.mrb[0].mxu0
    %v2206 = vadd.f32 0.0, %v2205
    %v2207 = vpop.f32.mrb[0].mxu0
    %v2208 = vpop.f32.mrb[0].mxu0
    %v2209 = vpop.f32.mrb[0].mxu0
    %2210 = vdwg.mxu0
    %2211 = vst.msk [vmem:[#allocation2 + $0x8] sm:$0xff] %vm427, %v2206
    %2212 = vrot.lane.b32.xlu0 %v2097, 120
    %v2213 = vpop.permute.xlu0 %2212
    %2214 = vrot.lane.b32.xlu0 %v2102, 120
    %v2215 = vpop.permute.xlu0 %2214
    %v2217 = vsel %vm427, %v2213, 0
    %v2220 = vsel %vm427, %v2215, 0
    %2222 = vmatprep.subr.bf16.mxu0 0
    %2223 = vmatpush1.bf16.xpose.msra.mxu0 %v2220
    %2224 = vmatprep.subr.bf16.mxu0 0
    %2225 = vmatpush1.bf16.xpose.msra.mxu0 0
    %2226 = vmatprep.subr.bf16.mxu0 0
    %2227 = vmatpush1.bf16.xpose.msra.mxu0 0
    %2228 = vmatprep.subr.bf16.mxu0 0
    %2229 = vmatpush1.bf16.xpose.msra.mxu0 0
    %2230 = vmatprep.subr.bf16.mxu0 0
    %2231 = vmatpush1.bf16.xpose.msra.mxu0 0
    %2232 = vmatprep.subr.bf16.mxu0 0
    %2233 = vmatpush1.bf16.xpose.msra.mxu0 0
    %2234 = vmatprep.subr.bf16.mxu0 0
    %2235 = vmatpush1.bf16.xpose.msra.mxu0 0
    %2236 = vmatprep.subr.bf16.mxu0 0
    %2237 = vmatpush1.bf16.xpose.msra.mxu0 0
    %2238 = vmatprep.subr.bf16.mxu0 0
    %2239 = vmatpush1.bf16.xpose.msra.mxu0 0
    %2240 = vmatprep.subr.bf16.mxu0 0
    %2241 = vmatpush1.bf16.xpose.msra.mxu0 0
    %2242 = vmatprep.subr.bf16.mxu0 0
    %2243 = vmatpush1.bf16.xpose.msra.mxu0 0
    %2244 = vmatprep.subr.bf16.mxu0 0
    %2245 = vmatpush1.bf16.xpose.msra.mxu0 0
    %2246 = vmatprep.subr.bf16.mxu0 0
    %2247 = vmatpush1.bf16.xpose.msra.mxu0 0
    %2248 = vmatprep.subr.bf16.mxu0 0
    %2249 = vmatpush1.bf16.xpose.msra.mxu0 0
    %2250 = vmatprep.subr.bf16.mxu0 0
    %2251 = vmatpush1.bf16.xpose.msra.mxu0 0
    %2252 = vmatprep.subr.bf16.mxu0 0
    %2253 = vmatpush1.bf16.xpose.msra.mxu0 0
    %2254 = vmatprep.mubr.bf16.mxu0 0
    %2255 = vmatmul.mubr.bf16.gmra.mrb[0].mxu0 %v2217
    %v2256 = vpop.f32.mrb[0].mxu0
    %v2257 = vadd.f32 0.0, %v2256
    %v2258 = vpop.f32.mrb[0].mxu0
    %v2259 = vpop.f32.mrb[0].mxu0
    %v2260 = vpop.f32.mrb[0].mxu0
    %2261 = vdwg.mxu0
    %v2262 = vsel %vm1688, %v2257, -inf
    %2263 = vmax.xlane.f32.xlu0 %v2262
    %v2264 = vpop.xlane.xlu0 %2263
    %v2265 = vsub.f32 %v2257, %v2264
    %v2266 = vmul.f32 %v2265, 1.442695
    %v2267 = vpow.pop %v2266
    %v2268 = vsel %vm1688, %v2267, 0.0
    %2269 = vadd.xlane.f32.xlu0 %v2268
    %v2270 = vpop.xlane.xlu0 %2269
    %v2271 = vrcp.pop %v2270
    %v2272 = vmul.f32 %v2267, %v2271
    %v2273 = vpack.c.bf16 %v2272, %v2272
    %2274 = vrot.lane.b32.xlu0 %v2164, 120
    %v2275 = vpop.permute.xlu0 %2274
    %v2277 = vsel %vm1688, %v2273, 0
    %v2280 = vsel %vm1704, %v2275, 0
    %2282 = vmatprep.subr.bf16.mxu0 0
    %2283 = vmatpush1.bf16.msra.mxu0 %v2280
    %2284 = vmatprep.subr.bf16.mxu0 0
    %2285 = vmatpush1.bf16.msra.mxu0 0
    %2286 = vmatprep.subr.bf16.mxu0 0
    %2287 = vmatpush1.bf16.msra.mxu0 0
    %2288 = vmatprep.subr.bf16.mxu0 0
    %2289 = vmatpush1.bf16.msra.mxu0 0
    %2290 = vmatprep.subr.bf16.mxu0 0
    %2291 = vmatpush1.bf16.msra.mxu0 0
    %2292 = vmatprep.subr.bf16.mxu0 0
    %2293 = vmatpush1.bf16.msra.mxu0 0
    %2294 = vmatprep.subr.bf16.mxu0 0
    %2295 = vmatpush1.bf16.msra.mxu0 0
    %2296 = vmatprep.subr.bf16.mxu0 0
    %2297 = vmatpush1.bf16.msra.mxu0 0
    %2298 = vmatprep.subr.bf16.mxu0 0
    %2299 = vmatpush1.bf16.msra.mxu0 0
    %2300 = vmatprep.subr.bf16.mxu0 0
    %2301 = vmatpush1.bf16.msra.mxu0 0
    %2302 = vmatprep.subr.bf16.mxu0 0
    %2303 = vmatpush1.bf16.msra.mxu0 0
    %2304 = vmatprep.subr.bf16.mxu0 0
    %2305 = vmatpush1.bf16.msra.mxu0 0
    %2306 = vmatprep.subr.bf16.mxu0 0
    %2307 = vmatpush1.bf16.msra.mxu0 0
    %2308 = vmatprep.subr.bf16.mxu0 0
    %2309 = vmatpush1.bf16.msra.mxu0 0
    %2310 = vmatprep.subr.bf16.mxu0 0
    %2311 = vmatpush1.bf16.msra.mxu0 0
    %2312 = vmatprep.subr.bf16.mxu0 0
    %2313 = vmatpush1.bf16.msra.mxu0 0
    %2314 = vmatprep.mubr.bf16.mxu0 0
    %2315 = vmatmul.mubr.bf16.gmra.mrb[0].mxu0 %v2277
    %v2316 = vpop.f32.mrb[0].mxu0
    %v2317 = vadd.f32 0.0, %v2316
    %v2318 = vpop.f32.mrb[0].mxu0
    %v2319 = vpop.f32.mrb[0].mxu0
    %v2320 = vpop.f32.mrb[0].mxu0
    %2321 = vdwg.mxu0
    %2323 = vrot.lane.b32.xlu0 %v2317, 8
    %v2324 = vpop.permute.xlu0 %2323
    %2326 = vst.msk [vmem:[#allocation2 + $0x8] sm:$0xff] %vm651, %v2324
    %2327 = vrot.lane.b32.xlu0 %v2097, 112
    %v2328 = vpop.permute.xlu0 %2327
    %2329 = vrot.lane.b32.xlu0 %v2102, 112
    %v2330 = vpop.permute.xlu0 %2329
    %v2332 = vsel %vm427, %v2328, 0
    %v2335 = vsel %vm427, %v2330, 0
    %2337 = vmatprep.subr.bf16.mxu0 0
    %2338 = vmatpush1.bf16.xpose.msra.mxu0 %v2335
    %2339 = vmatprep.subr.bf16.mxu0 0
    %2340 = vmatpush1.bf16.xpose.msra.mxu0 0
    %2341 = vmatprep.subr.bf16.mxu0 0
    %2342 = vmatpush1.bf16.xpose.msra.mxu0 0
    %2343 = vmatprep.subr.bf16.mxu0 0
    %2344 = vmatpush1.bf16.xpose.msra.mxu0 0
    %2345 = vmatprep.subr.bf16.mxu0 0
    %2346 = vmatpush1.bf16.xpose.msra.mxu0 0
    %2347 = vmatprep.subr.bf16.mxu0 0
    %2348 = vmatpush1.bf16.xpose.msra.mxu0 0
    %2349 = vmatprep.subr.bf16.mxu0 0
    %2350 = vmatpush1.bf16.xpose.msra.mxu0 0
    %2351 = vmatprep.subr.bf16.mxu0 0
    %2352 = vmatpush1.bf16.xpose.msra.mxu0 0
    %2353 = vmatprep.subr.bf16.mxu0 0
    %2354 = vmatpush1.bf16.xpose.msra.mxu0 0
    %2355 = vmatprep.subr.bf16.mxu0 0
    %2356 = vmatpush1.bf16.xpose.msra.mxu0 0
    %2357 = vmatprep.subr.bf16.mxu0 0
    %2358 = vmatpush1.bf16.xpose.msra.mxu0 0
    %2359 = vmatprep.subr.bf16.mxu0 0
    %2360 = vmatpush1.bf16.xpose.msra.mxu0 0
    %2361 = vmatprep.subr.bf16.mxu0 0
    %2362 = vmatpush1.bf16.xpose.msra.mxu0 0
    %2363 = vmatprep.subr.bf16.mxu0 0
    %2364 = vmatpush1.bf16.xpose.msra.mxu0 0
    %2365 = vmatprep.subr.bf16.mxu0 0
    %2366 = vmatpush1.bf16.xpose.msra.mxu0 0
    %2367 = vmatprep.subr.bf16.mxu0 0
    %2368 = vmatpush1.bf16.xpose.msra.mxu0 0
    %2369 = vmatprep.mubr.bf16.mxu0 0
    %2370 = vmatmul.mubr.bf16.gmra.mrb[0].mxu0 %v2332
    %v2371 = vpop.f32.mrb[0].mxu0
    %v2372 = vadd.f32 0.0, %v2371
    %v2373 = vpop.f32.mrb[0].mxu0
    %v2374 = vpop.f32.mrb[0].mxu0
    %v2375 = vpop.f32.mrb[0].mxu0
    %2376 = vdwg.mxu0
    %v2377 = vsel %vm1688, %v2372, -inf
    %2378 = vmax.xlane.f32.xlu0 %v2377
    %v2379 = vpop.xlane.xlu0 %2378
    %v2380 = vsub.f32 %v2372, %v2379
    %v2381 = vmul.f32 %v2380, 1.442695
    %v2382 = vpow.pop %v2381
    %v2383 = vsel %vm1688, %v2382, 0.0
    %2384 = vadd.xlane.f32.xlu0 %v2383
    %v2385 = vpop.xlane.xlu0 %2384
    %v2386 = vrcp.pop %v2385
    %v2387 = vmul.f32 %v2382, %v2386
    %v2388 = vpack.c.bf16 %v2387, %v2387
    %2389 = vrot.lane.b32.xlu0 %v2164, 112
    %v2390 = vpop.permute.xlu0 %2389
    %v2392 = vsel %vm1688, %v2388, 0
    %v2395 = vsel %vm1704, %v2390, 0
    %2397 = vmatprep.subr.bf16.mxu0 0
    %2398 = vmatpush1.bf16.msra.mxu0 %v2395
    %2399 = vmatprep.subr.bf16.mxu0 0
    %2400 = vmatpush1.bf16.msra.mxu0 0
    %2401 = vmatprep.subr.bf16.mxu0 0
    %2402 = vmatpush1.bf16.msra.mxu0 0
    %2403 = vmatprep.subr.bf16.mxu0 0
    %2404 = vmatpush1.bf16.msra.mxu0 0
    %2405 = vmatprep.subr.bf16.mxu0 0
    %2406 = vmatpush1.bf16.msra.mxu0 0
    %2407 = vmatprep.subr.bf16.mxu0 0
    %2408 = vmatpush1.bf16.msra.mxu0 0
    %2409 = vmatprep.subr.bf16.mxu0 0
    %2410 = vmatpush1.bf16.msra.mxu0 0
    %2411 = vmatprep.subr.bf16.mxu0 0
    %2412 = vmatpush1.bf16.msra.mxu0 0
    %2413 = vmatprep.subr.bf16.mxu0 0
    %2414 = vmatpush1.bf16.msra.mxu0 0
    %2415 = vmatprep.subr.bf16.mxu0 0
    %2416 = vmatpush1.bf16.msra.mxu0 0
    %2417 = vmatprep.subr.bf16.mxu0 0
    %2418 = vmatpush1.bf16.msra.mxu0 0
    %2419 = vmatprep.subr.bf16.mxu0 0
    %2420 = vmatpush1.bf16.msra.mxu0 0
    %2421 = vmatprep.subr.bf16.mxu0 0
    %2422 = vmatpush1.bf16.msra.mxu0 0
    %2423 = vmatprep.subr.bf16.mxu0 0
    %2424 = vmatpush1.bf16.msra.mxu0 0
    %2425 = vmatprep.subr.bf16.mxu0 0
    %2426 = vmatpush1.bf16.msra.mxu0 0
    %2427 = vmatprep.subr.bf16.mxu0 0
    %2428 = vmatpush1.bf16.msra.mxu0 0
    %2429 = vmatprep.mubr.bf16.mxu0 0
    %2430 = vmatmul.mubr.bf16.gmra.mrb[0].mxu0 %v2392
    %v2431 = vpop.f32.mrb[0].mxu0
    %v2432 = vadd.f32 0.0, %v2431
    %v2433 = vpop.f32.mrb[0].mxu0
    %v2434 = vpop.f32.mrb[0].mxu0
    %v2435 = vpop.f32.mrb[0].mxu0
    %2436 = vdwg.mxu0
    %2438 = vrot.lane.b32.xlu0 %v2432, 16
    %v2439 = vpop.permute.xlu0 %2438
    %2441 = vst.msk [vmem:[#allocation2 + $0x8] sm:$0xff] %vm767, %v2439
    %2442 = vrot.lane.b32.xlu0 %v2097, 104
    %v2443 = vpop.permute.xlu0 %2442
    %2444 = vrot.lane.b32.xlu0 %v2102, 104
    %v2445 = vpop.permute.xlu0 %2444
    %v2447 = vsel %vm427, %v2443, 0
    %v2450 = vsel %vm427, %v2445, 0
    %2452 = vmatprep.subr.bf16.mxu0 0
    %2453 = vmatpush1.bf16.xpose.msra.mxu0 %v2450
    %2454 = vmatprep.subr.bf16.mxu0 0
    %2455 = vmatpush1.bf16.xpose.msra.mxu0 0
    %2456 = vmatprep.subr.bf16.mxu0 0
    %2457 = vmatpush1.bf16.xpose.msra.mxu0 0
    %2458 = vmatprep.subr.bf16.mxu0 0
    %2459 = vmatpush1.bf16.xpose.msra.mxu0 0
    %2460 = vmatprep.subr.bf16.mxu0 0
    %2461 = vmatpush1.bf16.xpose.msra.mxu0 0
    %2462 = vmatprep.subr.bf16.mxu0 0
    %2463 = vmatpush1.bf16.xpose.msra.mxu0 0
    %2464 = vmatprep.subr.bf16.mxu0 0
    %2465 = vmatpush1.bf16.xpose.msra.mxu0 0
    %2466 = vmatprep.subr.bf16.mxu0 0
    %2467 = vmatpush1.bf16.xpose.msra.mxu0 0
    %2468 = vmatprep.subr.bf16.mxu0 0
    %2469 = vmatpush1.bf16.xpose.msra.mxu0 0
    %2470 = vmatprep.subr.bf16.mxu0 0
    %2471 = vmatpush1.bf16.xpose.msra.mxu0 0
    %2472 = vmatprep.subr.bf16.mxu0 0
    %2473 = vmatpush1.bf16.xpose.msra.mxu0 0
    %2474 = vmatprep.subr.bf16.mxu0 0
    %2475 = vmatpush1.bf16.xpose.msra.mxu0 0
    %2476 = vmatprep.subr.bf16.mxu0 0
    %2477 = vmatpush1.bf16.xpose.msra.mxu0 0
    %2478 = vmatprep.subr.bf16.mxu0 0
    %2479 = vmatpush1.bf16.xpose.msra.mxu0 0
    %2480 = vmatprep.subr.bf16.mxu0 0
    %2481 = vmatpush1.bf16.xpose.msra.mxu0 0
    %2482 = vmatprep.subr.bf16.mxu0 0
    %2483 = vmatpush1.bf16.xpose.msra.mxu0 0
    %2484 = vmatprep.mubr.bf16.mxu0 0
    %2485 = vmatmul.mubr.bf16.gmra.mrb[0].mxu0 %v2447
    %v2486 = vpop.f32.mrb[0].mxu0
    %v2487 = vadd.f32 0.0, %v2486
    %v2488 = vpop.f32.mrb[0].mxu0
    %v2489 = vpop.f32.mrb[0].mxu0
    %v2490 = vpop.f32.mrb[0].mxu0
    %2491 = vdwg.mxu0
    %v2492 = vsel %vm1688, %v2487, -inf
    %2493 = vmax.xlane.f32.xlu0 %v2492
    %v2494 = vpop.xlane.xlu0 %2493
    %v2495 = vsub.f32 %v2487, %v2494
    %v2496 = vmul.f32 %v2495, 1.442695
    %v2497 = vpow.pop %v2496
    %v2498 = vsel %vm1688, %v2497, 0.0
    %2499 = vadd.xlane.f32.xlu0 %v2498
    %v2500 = vpop.xlane.xlu0 %2499
    %v2501 = vrcp.pop %v2500
    %v2502 = vmul.f32 %v2497, %v2501
    %v2503 = vpack.c.bf16 %v2502, %v2502
    %2504 = vrot.lane.b32.xlu0 %v2164, 104
    %v2505 = vpop.permute.xlu0 %2504
    %v2507 = vsel %vm1688, %v2503, 0
    %v2510 = vsel %vm1704, %v2505, 0
    %2512 = vmatprep.subr.bf16.mxu0 0
    %2513 = vmatpush1.bf16.msra.mxu0 %v2510
    %2514 = vmatprep.subr.bf16.mxu0 0
    %2515 = vmatpush1.bf16.msra.mxu0 0
    %2516 = vmatprep.subr.bf16.mxu0 0
    %2517 = vmatpush1.bf16.msra.mxu0 0
    %2518 = vmatprep.subr.bf16.mxu0 0
    %2519 = vmatpush1.bf16.msra.mxu0 0
    %2520 = vmatprep.subr.bf16.mxu0 0
    %2521 = vmatpush1.bf16.msra.mxu0 0
    %2522 = vmatprep.subr.bf16.mxu0 0
    %2523 = vmatpush1.bf16.msra.mxu0 0
    %2524 = vmatprep.subr.bf16.mxu0 0
    %2525 = vmatpush1.bf16.msra.mxu0 0
    %2526 = vmatprep.subr.bf16.mxu0 0
    %2527 = vmatpush1.bf16.msra.mxu0 0
    %2528 = vmatprep.subr.bf16.mxu0 0
    %2529 = vmatpush1.bf16.msra.mxu0 0
    %2530 = vmatprep.subr.bf16.mxu0 0
    %2531 = vmatpush1.bf16.msra.mxu0 0
    %2532 = vmatprep.subr.bf16.mxu0 0
    %2533 = vmatpush1.bf16.msra.mxu0 0
    %2534 = vmatprep.subr.bf16.mxu0 0
    %2535 = vmatpush1.bf16.msra.mxu0 0
    %2536 = vmatprep.subr.bf16.mxu0 0
    %2537 = vmatpush1.bf16.msra.mxu0 0
    %2538 = vmatprep.subr.bf16.mxu0 0
    %2539 = vmatpush1.bf16.msra.mxu0 0
    %2540 = vmatprep.subr.bf16.mxu0 0
    %2541 = vmatpush1.bf16.msra.mxu0 0
    %2542 = vmatprep.subr.bf16.mxu0 0
    %2543 = vmatpush1.bf16.msra.mxu0 0
    %2544 = vmatprep.mubr.bf16.mxu0 0
    %2545 = vmatmul.mubr.bf16.gmra.mrb[0].mxu0 %v2507
    %v2546 = vpop.f32.mrb[0].mxu0
    %v2547 = vadd.f32 0.0, %v2546
    %v2548 = vpop.f32.mrb[0].mxu0
    %v2549 = vpop.f32.mrb[0].mxu0
    %v2550 = vpop.f32.mrb[0].mxu0
    %2551 = vdwg.mxu0
    %2553 = vrot.lane.b32.xlu0 %v2547, 24
    %v2554 = vpop.permute.xlu0 %2553
    %2556 = vst.msk [vmem:[#allocation2 + $0x8] sm:$0xff] %vm883, %v2554
    %v2557 = vld [vmem:[#allocation2] sm:$0xff]
    %v2558 = vld [vmem:[#allocation2 + $0x8] sm:$0xff]
    %v2559 = vpack.c.bf16 %v2558, %v2557
    %v2564 = vunpack.c.l.b16 %v240
    %v2565 = vunpack.c.l.b16 %v241
    %v2566 = vunpack.c.l.b16 %v242
    %v2567 = vunpack.c.l.b16 %v243
    %v2568 = vpack.c.b16 %v2565, %v2564
    %v2569 = vpack.c.b16 %v2567, %v2566
    %v2573 = vsel %vm273, %v2559, 0
    %2575 = vmatprep.subr.bf16.mxu0 0
    %2576 = vmatpush1.bf16.msra.mxu0 %v2568
    %2577 = vmatprep.subr.bf16.mxu0 0
    %2578 = vmatpush1.bf16.msra.mxu0 %v2569
    %2579 = vmatprep.subr.bf16.mxu0 0
    %2580 = vmatpush1.bf16.msra.mxu0 0
    %2581 = vmatprep.subr.bf16.mxu0 0
    %2582 = vmatpush1.bf16.msra.mxu0 0
    %2583 = vmatprep.subr.bf16.mxu0 0
    %2584 = vmatpush1.bf16.msra.mxu0 0
    %2585 = vmatprep.subr.bf16.mxu0 0
    %2586 = vmatpush1.bf16.msra.mxu0 0
    %2587 = vmatprep.subr.bf16.mxu0 0
    %2588 = vmatpush1.bf16.msra.mxu0 0
    %2589 = vmatprep.subr.bf16.mxu0 0
    %2590 = vmatpush1.bf16.msra.mxu0 0
    %2591 = vmatprep.subr.bf16.mxu0 0
    %2592 = vmatpush1.bf16.msra.mxu0 0
    %2593 = vmatprep.subr.bf16.mxu0 0
    %2594 = vmatpush1.bf16.msra.mxu0 0
    %2595 = vmatprep.subr.bf16.mxu0 0
    %2596 = vmatpush1.bf16.msra.mxu0 0
    %2597 = vmatprep.subr.bf16.mxu0 0
    %2598 = vmatpush1.bf16.msra.mxu0 0
    %2599 = vmatprep.subr.bf16.mxu0 0
    %2600 = vmatpush1.bf16.msra.mxu0 0
    %2601 = vmatprep.subr.bf16.mxu0 0
    %2602 = vmatpush1.bf16.msra.mxu0 0
    %2603 = vmatprep.subr.bf16.mxu0 0
    %2604 = vmatpush1.bf16.msra.mxu0 0
    %2605 = vmatprep.subr.bf16.mxu0 0
    %2606 = vmatpush1.bf16.msra.mxu0 0
    %2607 = vmatprep.mubr.bf16.mxu0 0
    %2608 = vmatmul.mubr.bf16.gmra.mrb[0].mxu0 %v2573
    %v2609 = vpop.f32.mrb[0].mxu0
    %v2610 = vadd.f32 %v1452, %v2609
    %v2611 = vpop.f32.mrb[0].mxu0
    %v2612 = vpop.f32.mrb[0].mxu0
    %v2613 = vadd.f32 %v1453, %v2612
    %v2614 = vpop.f32.mrb[0].mxu0
    %2615 = vdwg.mxu0
    %v2616 = vsel %vm273, %v2610, 0.0
    %2617 = vadd.xlane.f32.xlu0 %v2616
    %v2618 = vpop.xlane.xlu0 %2617
    %v2619 = vsel %vm273, %v2613, 0.0
    %2620 = vadd.xlane.f32.xlu0 %v2619
    %v2621 = vpop.xlane.xlu0 %2620
    %v2622 = vmul.f32 %v2618, %v1403
    %v2623 = vmul.f32 %v2621, %v1403
    %v2624 = vsub.f32 %v2610, %v2622
    %v2625 = vsub.f32 %v2613, %v2623
    %v2626 = vmul.f32 %v2624, %v2624
    %v2627 = vmul.f32 %v2625, %v2625
    %v2628 = vsel %vm273, %v2626, 0.0
    %2629 = vadd.xlane.f32.xlu0 %v2628
    %v2630 = vpop.xlane.xlu0 %2629
    %v2631 = vsel %vm273, %v2627, 0.0
    %2632 = vadd.xlane.f32.xlu0 %v2631
    %v2633 = vpop.xlane.xlu0 %2632
    %v2634 = vmul.f32 %v2630, 0.032258064
    %v2635 = vmul.f32 %v2633, 0.032258064
    %v2636 = vrsqrt.pop %v2634
    %v2637 = vmul.f32 %v2634, %v2636
    %vm2638 = vcmp.eq.f32.partialorder %v2634, inf
    %v2639 = vsel %vm2638, %v2634, %v2637
    %vm2640 = vcmp.eq.f32.partialorder %v2634, 0.0
    %v2641 = vand.u32 %v2634, 2147483648
    %v2642 = vsel %vm2640, %v2641, %v2639
    %v2643 = vrsqrt.pop %v2635
    %v2644 = vmul.f32 %v2635, %v2643
    %vm2645 = vcmp.eq.f32.partialorder %v2635, inf
    %v2646 = vsel %vm2645, %v2635, %v2644
    %vm2647 = vcmp.eq.f32.partialorder %v2635, 0.0
    %v2648 = vand.u32 %v2635, 2147483648
    %v2649 = vsel %vm2647, %v2648, %v2646
    %v2650 = vadd.f32 %v2642, 1e-06
    %v2651 = vadd.f32 %v2649, 1e-06
    %v2652 = vrcp.pop %v2650
    %v2653 = vrcp.pop %v2651
    %v2654 = vmul.f32 %v2624, %v2652
    %v2655 = vmul.f32 %v2625, %v2653
    %v2657 = vlaneseq
    %v2658 = vshrl.u32 %v2657, 7
    %v2659 = vsub.s32 0, %v2658
    %v2660 = vrot.slane %v250, %v2659
    %v2662 = vmul.f32 %v2660, %v2654
    %v2663 = vmul.f32 %v2660, %v2655
    %v2665 = vlaneseq
    %v2666 = vshrl.u32 %v2665, 7
    %v2667 = vsub.s32 0, %v2666
    %v2668 = vrot.slane %v251, %v2667
    %v2670 = vadd.f32 %v2662, %v2668
    %v2671 = vadd.f32 %v2663, %v2668
    %v2672 = vpack.c.bf16 %v2671, %v2670
    %v2674 = vlaneseq
    %v2675 = vshrl.u32 %v2674, 7
    %v2676 = vsub.s32 0, %v2675
    %v2677 = vrot.slane %v254, %v2676
    %v2683 = vunpack.c.l.b16 %v244
    %v2684 = vunpack.c.l.b16 %v245
    %v2685 = vunpack.c.l.b16 %v246
    %v2686 = vunpack.c.l.b16 %v247
    %v2687 = vpack.c.b16 %v2684, %v2683
    %v2688 = vpack.c.b16 %v2686, %v2685
    %v2692 = vsel %vm273, %v2672, 0
    %2694 = vmatprep.subr.bf16.mxu0 0
    %2695 = vmatpush1.bf16.msra.mxu0 %v2687
    %2696 = vmatprep.subr.bf16.mxu0 0
    %2697 = vmatpush1.bf16.msra.mxu0 %v2688
    %2698 = vmatprep.subr.bf16.mxu0 0
    %2699 = vmatpush1.bf16.msra.mxu0 0
    %2700 = vmatprep.subr.bf16.mxu0 0
    %2701 = vmatpush1.bf16.msra.mxu0 0
    %2702 = vmatprep.subr.bf16.mxu0 0
    %2703 = vmatpush1.bf16.msra.mxu0 0
    %2704 = vmatprep.subr.bf16.mxu0 0
    %2705 = vmatpush1.bf16.msra.mxu0 0
    %2706 = vmatprep.subr.bf16.mxu0 0
    %2707 = vmatpush1.bf16.msra.mxu0 0
    %2708 = vmatprep.subr.bf16.mxu0 0
    %2709 = vmatpush1.bf16.msra.mxu0 0
    %2710 = vmatprep.subr.bf16.mxu0 0
    %2711 = vmatpush1.bf16.msra.mxu0 0
    %2712 = vmatprep.subr.bf16.mxu0 0
    %2713 = vmatpush1.bf16.msra.mxu0 0
    %2714 = vmatprep.subr.bf16.mxu0 0
    %2715 = vmatpush1.bf16.msra.mxu0 0
    %2716 = vmatprep.subr.bf16.mxu0 0
    %2717 = vmatpush1.bf16.msra.mxu0 0
    %2718 = vmatprep.subr.bf16.mxu0 0
    %2719 = vmatpush1.bf16.msra.mxu0 0
    %2720 = vmatprep.subr.bf16.mxu0 0
    %2721 = vmatpush1.bf16.msra.mxu0 0
    %2722 = vmatprep.subr.bf16.mxu0 0
    %2723 = vmatpush1.bf16.msra.mxu0 0
    %2724 = vmatprep.subr.bf16.mxu0 0
    %2725 = vmatpush1.bf16.msra.mxu0 0
    %2726 = vmatprep.mubr.bf16.mxu0 0
    %2727 = vmatmul.mubr.bf16.gmra.mrb[0].mxu0 %v2692
    %v2728 = vpop.f32.mrb[0].mxu0
    %v2729 = vadd.f32 %v2677, %v2728
    %v2730 = vpop.f32.mrb[0].mxu0
    %v2731 = vpop.f32.mrb[0].mxu0
    %v2732 = vadd.f32 %v2677, %v2731
    %v2733 = vpop.f32.mrb[0].mxu0
    %2734 = vdwg.mxu0
    %v2735 = vadd.f32 %v2729, %v2670
    %v2736 = vadd.f32 %v2732, %v2671
    %v2737 = vsel %vm273, %v2735, 0.0
    %2738 = vadd.xlane.f32.xlu0 %v2737
    %v2739 = vpop.xlane.xlu0 %2738
    %v2740 = vsel %vm273, %v2736, 0.0
    %2741 = vadd.xlane.f32.xlu0 %v2740
    %v2742 = vpop.xlane.xlu0 %2741
    %v2743 = vmul.f32 %v2739, %v1403
    %v2744 = vmul.f32 %v2742, %v1403
    %v2745 = vsub.f32 %v2735, %v2743
    %v2746 = vsub.f32 %v2736, %v2744
    %v2747 = vmul.f32 %v2745, %v2745
    %v2748 = vmul.f32 %v2746, %v2746
    %v2749 = vsel %vm273, %v2747, 0.0
    %2750 = vadd.xlane.f32.xlu0 %v2749
    %v2751 = vpop.xlane.xlu0 %2750
    %v2752 = vsel %vm273, %v2748, 0.0
    %2753 = vadd.xlane.f32.xlu0 %v2752
    %v2754 = vpop.xlane.xlu0 %2753
    %v2755 = vmul.f32 %v2751, 0.032258064
    %v2756 = vmul.f32 %v2754, 0.032258064
    %v2757 = vrsqrt.pop %v2755
    %v2758 = vmul.f32 %v2755, %v2757
    %vm2759 = vcmp.eq.f32.partialorder %v2755, inf
    %v2760 = vsel %vm2759, %v2755, %v2758
    %vm2761 = vcmp.eq.f32.partialorder %v2755, 0.0
    %v2762 = vand.u32 %v2755, 2147483648
    %v2763 = vsel %vm2761, %v2762, %v2760
    %v2764 = vrsqrt.pop %v2756
    %v2765 = vmul.f32 %v2756, %v2764
    %vm2766 = vcmp.eq.f32.partialorder %v2756, inf
    %v2767 = vsel %vm2766, %v2756, %v2765
    %vm2768 = vcmp.eq.f32.partialorder %v2756, 0.0
    %v2769 = vand.u32 %v2756, 2147483648
    %v2770 = vsel %vm2768, %v2769, %v2767
    %v2771 = vadd.f32 %v2763, 1e-06
    %v2772 = vadd.f32 %v2770, 1e-06
    %v2773 = vrcp.pop %v2771
    %v2774 = vrcp.pop %v2772
    %v2775 = vmul.f32 %v2745, %v2773
    %v2776 = vmul.f32 %v2746, %v2774
    %v2778 = vlaneseq
    %v2779 = vshrl.u32 %v2778, 7
    %v2780 = vsub.s32 0, %v2779
    %v2781 = vrot.slane %v252, %v2780
    %v2783 = vmul.f32 %v2781, %v2775
    %v2784 = vmul.f32 %v2781, %v2776
    %v2786 = vlaneseq
    %v2787 = vshrl.u32 %v2786, 7
    %v2788 = vsub.s32 0, %v2787
    %v2789 = vrot.slane %v253, %v2788
    %v2791 = vadd.f32 %v2783, %v2789
    %v2792 = vadd.f32 %v2784, %v2789
    %2793 = vst.msk [vmem:[#allocation21] sm:$0xff] %vm273, %v2791
    %2794 = vst.msk [vmem:[#allocation21 + $0x8] sm:$0xff] %vm273, %v2792
    // Predicated region
    $region118: #{tpu_custom_call.1} parent=1 // pred_check
      _
    $region119: #{tpu_custom_call.1} parent=1 // pred_check_branch
      %2796 = sbr.rel (0) target = $region121
    $region120: #{tpu_custom_call.1} parent=1 // pred_region
      %s2798 = ssub.s32 256, 256
      %2799 = vsyncadd [#allocation5], %s2798
      %s2800 = sshll.u32 [#allocation21], 4
      %s2801 = int_to_ptr.vmem [resolvable:$true] %s2800
      %2806 = dma.vmem_to_hbm [thread:$0]  %s2801, 256, %s18, [#allocation5], 128, 128, 8
    $region121: #{tpu_custom_call.1} parent=1 // pred_fallthru
      _
    // Predicated region
    $region122: #{tpu_custom_call.1} parent=1 // pred_check
      _
    $region123: #{tpu_custom_call.1} parent=1 // pred_check_branch
      %2808 = sbr.rel (0) target = $region125
    $region124: #{tpu_custom_call.1} parent=1 // pred_region
      %2809 = dma.done [#allocation5], 256
    $region125: #{tpu_custom_call.1} parent=1 // pred_fallthru
      _
    %2810 = vsyncpa [#allocation4], 1
    %2811 = vsyncpa [#allocation7], 1
    %2812 = vsyncpa [#allocation10], 1
    %2813 = vsyncpa [#allocation13], 1
    %2814 = vsyncpa [#allocation16], 1
    %2815 = vsyncpa [#allocation19], 1
    %2816 = vsyncpa [#allocation5], 1

</llo_original>
